<compile_context>
chip_gen: v7x
topology: tpu7x:2x2x1
jax: 0.10.0
libtpu: 0.0.40
codegen_flags: <defaults>
</compile_context>

<pallas_src>
import numpy as np
import jax
import jax.numpy as jnp
from jax import lax
from jax.experimental import pallas as pl
from jax.experimental.pallas import tpu as pltpu

# ----- module hyper-parameters (consistent with the hard-coded lenn = 6670 = C(116,2)) ---
LENN = 6670          # hard-coded in the reference forward()
ROI = 116            # roi_num
HID = 8              # hidden_channels
HC = ROI * HID       # 928   (lin1 / lin11 in-features)
HC2 = 32
HC3 = 2 * ROI * HID  # 1856  (lin6 in-features)
HC4 = 2 * HID        # conv4 kernel width
RATIO_HC = 16
B = 2                # graphs per batch
TPAD = 128           # 128-lane-aligned offset of the SC block in the padded target axis


# ------------------------------------------------------------------ fused Pallas kernel --

def _gvae_fused_kernel(
    # per-batch data (leading batch dim squeezed by BlockSpec)
    a1t_ref, a2t_ref, xfct_ref, xsct_ref, sf_ref, ss_ref, tmat_ref,
    # GCN weights (pre-transposed)
    w1t_ref, b1_ref, w11t_ref, b11_ref, w2t_ref, b2_ref,
    # FC head (lin1 / lin3), SC head (lin11 / lin33) -- flatten weights pre-reshaped
    wcat1_ref, l1b_ref, l3w_ref, l3b_ref,
    wcat11_ref, l11b_ref, l33w_ref, l33b_ref,
    # fusion branch (conv4 / lin4 / lin5)
    wc1_ref, wc2_ref, bc_ref, l4w_ref, l4b_ref, l5w_ref, l5b_ref,
    # final head (lin6 / lin7)
    w6f_ref, w6s_ref, l6b_ref, l7w_ref, l7b_ref,
    # outputs
    xout_ref, x1_ref, x2_ref, all_ref,
):
    f32 = jnp.float32

    # ---- shared in-degree terms (self-loops already folded into A^T) -----------------
    deg1 = jnp.sum(a1t_ref[...], axis=0, keepdims=True)          # (1, ROI)
    deg2 = jnp.sum(a2t_ref[...], axis=0, keepdims=True)
    d1 = lax.rsqrt(deg1)
    d2 = lax.rsqrt(deg2)

    def gcn_t(at_ref, xt_ref, wt_ref, b_ref, d):
        # transposed GCNConv + ReLU:  z^T = relu(((W^T X^T) * d) @ A^T * d + b)
        xw = jnp.dot(wt_ref[...], xt_ref[...], preferred_element_type=f32)   # (H, ROI)
        y = jnp.dot(xw * d, at_ref[...], preferred_element_type=f32)         # (H, ROI)
        return jnp.maximum(y * d + b_ref[...], 0.0)

    z1t = gcn_t(a1t_ref, xfct_ref, w1t_ref, b1_ref, d1)                      # (H, ROI)
    z2t = gcn_t(a2t_ref, xsct_ref, w11t_ref, b11_ref, d2)                    # (H, ROI)

    # ---- flatten-MLP heads: ONE (H,ROI)@(ROI,H*HC2) dot each, diag-block fold --------
    #   flatten(z) @ W  ==  sum_k  (z^T @ W.reshape(ROI, H*HC2))[k, k*HC2:(k+1)*HC2]
    def finish_head(r, bias_row, w2_ref, b2_ref, out_ref):
        acc = bias_row                                                       # (1, HC2)
        for k in range(HID):                                                 # static unroll
            acc = acc + r[k:k + 1, k * HC2:(k + 1) * HC2]
        h = jnp.maximum(acc, 0.0)
        logits = jnp.dot(h, w2_ref[...], preferred_element_type=f32) + b2_ref[...]
        m = jnp.max(logits, axis=1, keepdims=True)
        e = jnp.exp(logits - m)
        out_ref[...] = e / jnp.sum(e, axis=1, keepdims=True)

    r1 = jnp.dot(z1t, wcat1_ref[...], preferred_element_type=f32)            # (H, H*HC2)
    finish_head(r1, l1b_ref[...], l3w_ref, l3b_ref, x1_ref)
    r2 = jnp.dot(z2t, wcat11_ref[...], preferred_element_type=f32)
    finish_head(r2, l11b_ref[...], l33w_ref, l33b_ref, x2_ref)

    # ---- fusion branch: conv4 (VPU mul + one sublane reduce) -> lin4 -> lin5 ---------
    conv = (jnp.sum(z1t * wc1_ref[...] + z2t * wc2_ref[...], axis=0, keepdims=True)
            + bc_ref[...])                                                   # (1, ROI)
    h4 = jnp.maximum(jnp.dot(conv, l4w_ref[...], preferred_element_type=f32)
                     + l4b_ref[...], 0.0)                                    # (1, RATIO_HC)
    allr = jnp.maximum(jnp.dot(h4, l5w_ref[...], preferred_element_type=f32)
                       + l5b_ref[...], 0.0)                                  # (1, ROI)
    all_ref[...] = allr

    # ---- conv2 on the per-batch "full" graph in block form (adjacency never built) ---
    # A_full = [[A1, 0], [0, A2]] + fusion edges weighted by `all`.
    # Padded target axis: lanes [0, ROI) = fc targets, [TPAD, TPAD+ROI) = sc targets.
    dadd = jnp.dot(allr, tmat_ref[...].astype(f32),
                   preferred_element_type=f32)                               # (1, 2*TPAD)
    d2f = lax.rsqrt(deg1 + dadd[:, :ROI])
    d2s = lax.rsqrt(deg2 + dadd[:, TPAD:TPAD + ROI])
    vf = jnp.dot(w2t_ref[...], z1t, preferred_element_type=f32) * d2f        # (H, ROI)
    vs = jnp.dot(w2t_ref[...], z2t, preferred_element_type=f32) * d2s
    # gather along fusion edges (src one-hots), weight by `all`, scatter to targets
    pt = (jnp.dot(vf, sf_ref[...].astype(f32), preferred_element_type=f32)
          + jnp.dot(vs, ss_ref[...].astype(f32), preferred_element_type=f32)) * allr  # (H, E)
    ptt = jnp.dot(pt, tmat_ref[...].astype(f32), preferred_element_type=f32)          # (H, 2*TPAD)
    yf = jnp.dot(vf, a1t_ref[...], preferred_element_type=f32) + ptt[:, :ROI]
    ys = jnp.dot(vs, a2t_ref[...], preferred_element_type=f32) + ptt[:, TPAD:TPAD + ROI]
    b2c = b2_ref[...]
    hf = jnp.maximum(yf * d2f + b2c, 0.0)                                    # (H, ROI)
    hs = jnp.maximum(ys * d2s + b2c, 0.0)

    # ---- final head: softmax(lin7(relu(lin6(flatten([h_fc; h_sc]))))) ----------------
    r6 = (jnp.dot(hf, w6f_ref[...], preferred_element_type=f32)
          + jnp.dot(hs, w6s_ref[...], preferred_element_type=f32))           # (H, H*HC2)
    finish_head(r6, l6b_ref[...], l7w_ref, l7b_ref, xout_ref)


# ------------------------------------------------------------------ forward wrapper ------

def _gvae_forward_impl(params, x, edge_index, edge_weight, roi_num, batch_size):
    Bn = int(batch_size)
    roi = int(roi_num)
    lenn = LENN
    H = HID
    feat = x.shape[1]
    f32 = jnp.float32
    bf16 = jnp.bfloat16

    # ---------------- edge bookkeeping (mirrors the torch slicing loops) -------------
    seg2_e = edge_weight.shape[0] // Bn
    ew = edge_weight.reshape(Bn, seg2_e)
    ei = edge_index.reshape(2, Bn, seg2_e)
    # batched graphs are disjoint per 2*roi block (same assumption as the torch index
    # arithmetic), so all node ids are made local to their block.
    block_base = (2 * roi * jnp.arange(Bn, dtype=edge_index.dtype))[None, :, None]
    ei_local = ei - block_base

    fc_src, fc_tgt = ei_local[0, :, :lenn], ei_local[1, :, :lenn]            # in [0, roi)
    sc_src = ei_local[0, :, lenn:2 * lenn] - roi                             # in [0, roi)
    sc_tgt = ei_local[1, :, lenn:2 * lenn] - roi
    fu_src, fu_tgt = ei_local[0, :, 2 * lenn:], ei_local[1, :, 2 * lenn:]    # in [0, 2*roi)

    # ---------------- per-batch dense adjacency blocks, transposed A^T[src, tgt] -----
    # One flat scatter-add; gcn_norm's unit self-loops are folded into the operand.
    # NOTE: this scatter and the one-hot builds below depend only on edge_index /
    # edge_weight and could be cached across calls when the topology is static.
    b_ix = jnp.arange(Bn, dtype=edge_index.dtype)[:, None]
    idx_fc = (((b_ix * 2 + 0) * roi + fc_src) * roi + fc_tgt).reshape(-1)
    idx_sc = (((b_ix * 2 + 1) * roi + sc_src) * roi + sc_tgt).reshape(-1)
    flat_idx = jnp.concatenate([idx_fc, idx_sc])
    flat_w = jnp.concatenate([ew[:, :lenn].reshape(-1),
                              ew[:, lenn:2 * lenn].reshape(-1)])
    eye_init = jnp.broadcast_to(jnp.eye(roi, dtype=f32), (Bn, 2, roi, roi)).reshape(-1)
    adj = eye_init.at[flat_idx].add(flat_w, unique_indices=True,
                                    indices_are_sorted=False,
                                    mode="promise_in_bounds")
    adj = adj.reshape(Bn, 2, roi, roi)
    a1t, a2t = adj[:, 0], adj[:, 1]

    # fusion-edge incidence operators (bf16: exact 0/1 values, half the DMA bytes)
    n_ix = jnp.arange(roi, dtype=edge_index.dtype)
    sf = (fu_src[:, None, :] == n_ix[None, :, None]).astype(bf16)            # (Bn, roi, E)
    ss = (fu_src[:, None, :] == (n_ix + roi)[None, :, None]).astype(bf16)    # (Bn, roi, E)
    # combined target one-hot; SC targets relocated to a 128-lane-aligned offset so the
    # in-kernel fc/sc splits are vreg-aligned slices.
    tgt_cols = jnp.where(fu_tgt < roi, fu_tgt, fu_tgt - roi + TPAD)
    t_ix = jnp.arange(2 * TPAD, dtype=edge_index.dtype)
    tmat = (tgt_cols[:, :, None] == t_ix[None, None, :]).astype(bf16)        # (Bn, E, 256)

    # ---------------- node features, transposed per batch ----------------------------
    node = x.reshape(Bn, 2, roi, feat)
    xfct = jnp.transpose(node[:, 0], (0, 2, 1))    # (Bn, feat, roi)
    xsct = jnp.transpose(node[:, 1], (0, 2, 1))

    # ---------------- weights pre-arranged for the lane-major kernel layout ----------
    def col(v):
        return v.reshape(-1, 1)

    def row(v):
        return v.reshape(1, -1)

    w1t = params["conv1_w"].T
    w11t = params["conv11_w"].T
    w2t = params["conv2_w"].T
    # flatten-head weights: (roi*H, HC2) reinterpreted as (roi, H*HC2) -- pure reshape
    wcat1 = params["lin1_w"].reshape(roi, H * HC2)
    wcat11 = params["lin11_w"].reshape(roi, H * HC2)
    w6f = params["lin6_w"][: roi * H].reshape(roi, H * HC2)
    w6s = params["lin6_w"][roi * H:].reshape(roi, H * HC2)
    wc1 = col(params["conv4_w"][:H])
    wc2 = col(params["conv4_w"][H:])

    per_batch = (a1t, a2t, xfct, xsct, sf, ss, tmat)
    weights = (
        w1t, col(params["conv1_b"]), w11t, col(params["conv11_b"]),
        w2t, col(params["conv2_b"]),
        wcat1, row(params["lin1_b"]), params["lin3_w"], row(params["lin3_b"]),
        wcat11, row(params["lin11_b"]), params["lin33_w"], row(params["lin33_b"]),
        wc1, wc2, params["conv4_b"].reshape(1, 1),
        params["lin4_w"], row(params["lin4_b"]), params["lin5_w"], row(params["lin5_b"]),
        w6f, w6s, row(params["lin6_b"]), params["lin7_w"], row(params["lin7_b"]),
    )

    def pb_spec(a):   # per-batch 3-D operand, leading batch dim squeezed in the kernel
        return pl.BlockSpec((None,) + tuple(a.shape[1:]), lambda b: (b, 0, 0))

    def w_spec(a):    # whole 2-D weight, re-used by every grid step
        return pl.BlockSpec(tuple(a.shape), lambda b: (0, 0))

    flops_per_graph = 2 * (2 * H * feat * roi + 6 * H * roi * roi
                           + 4 * H * roi * H * HC2 + 2 * H * roi * 2 * TPAD
                           + 2 * roi * RATIO_HC + roi * 2 * TPAD)
    bytes_accessed = (sum(int(a.size) * a.dtype.itemsize for a in per_batch)
                      + sum(int(w.size) * w.dtype.itemsize for w in weights)
                      + 4 * Bn * (6 + roi))
    cost = pl.CostEstimate(flops=int(Bn * flops_per_graph),
                           transcendentals=int(Bn * (4 * roi + 16)),
                           bytes_accessed=int(bytes_accessed))

    out_shapes = (
        jax.ShapeDtypeStruct((Bn, 1, 2), f32),      # x (final lin7 softmax)
        jax.ShapeDtypeStruct((Bn, 1, 2), f32),      # x1
        jax.ShapeDtypeStruct((Bn, 1, 2), f32),      # x2
        jax.ShapeDtypeStruct((Bn, 1, roi), f32),    # all
    )
    out_specs = (
        pl.BlockSpec((None, 1, 2), lambda b: (b, 0, 0)),
        pl.BlockSpec((None, 1, 2), lambda b: (b, 0, 0)),
        pl.BlockSpec((None, 1, 2), lambda b: (b, 0, 0)),
        pl.BlockSpec((None, 1, roi), lambda b: (b, 0, 0)),
    )

    x_out, x1, x2, all_out = pl.pallas_call(
        _gvae_fused_kernel,
        out_shape=out_shapes,
        grid=(Bn,),
        in_specs=[pb_spec(a) for a in per_batch] + [w_spec(w) for w in weights],
        out_specs=out_specs,
        compiler_params=pltpu.CompilerParams(
            dimension_semantics=("parallel",),       # one graph per TensorCore on v7x
            vmem_limit_bytes=16 * 1024 * 1024,       # actual footprint ~2 MiB
        ),
        cost_estimate=cost,
    )(*per_batch, *weights)

    return [x_out[:, 0, :], x1[:, 0, :], x2[:, 0, :], all_out[:, 0, :]]


forward = jax.jit(_gvae_forward_impl, static_argnums=(4, 5))


# ------------------------------------------------------------------ pure-JAX reference ---

def _reference_forward(params, x, edge_index, edge_weight, roi_num, batch_size):
    """Straightforward dense reference (same math as the torch module, inference)."""
    Bn, roi, lenn, H = batch_size, roi_num, LENN, HID
    seg2_e = edge_weight.shape[0] // Bn
    ew = edge_weight.reshape(Bn, seg2_e)
    ei = edge_index.reshape(2, Bn, seg2_e)
    shift1 = (roi * jnp.arange(Bn, dtype=edge_index.dtype))[None, :, None]
    shift2 = (roi * (jnp.arange(Bn, dtype=edge_index.dtype) + 1))[None, :, None]
    ei1 = (ei[:, :, :lenn] - shift1).reshape(2, -1)
    ei2 = (ei[:, :, lenn:2 * lenn] - shift2).reshape(2, -1)
    ew1 = ew[:, :lenn].reshape(-1)
    ew2 = ew[:, lenn:2 * lenn].reshape(-1)

    def adj(eidx, w, n):
        A = jnp.zeros((n, n), jnp.float32).at[eidx[1], eidx[0]].add(w)
        return A + jnp.eye(n, dtype=jnp.float32)

    def gcn(A, X, W, b):
        d = lax.rsqrt(jnp.sum(A, axis=1, keepdims=True))
        return jnp.maximum(d * (A @ ((X @ W) * d)) + b, 0.0)

    feat = x.shape[1]
    node = x.reshape(Bn, 2, roi, feat)
    nfc = node[:, 0].reshape(Bn * roi, feat)
    nsc = node[:, 1].reshape(Bn * roi, feat)
    z1 = gcn(adj(ei1, ew1, Bn * roi), nfc, params["conv1_w"], params["conv1_b"])
    z2 = gcn(adj(ei2, ew2, Bn * roi), nsc, params["conv11_w"], params["conv11_b"])

    def head(zf, w1, b1, w2, b2):
        h = jnp.maximum(zf @ w1 + b1, 0.0)
        return jax.nn.softmax(h @ w2 + b2, axis=1)

    x1 = head(z1.reshape(Bn, roi * H), params["lin1_w"], params["lin1_b"],
              params["lin3_w"], params["lin3_b"])
    x2 = head(z2.reshape(Bn, roi * H), params["lin11_w"], params["lin11_b"],
              params["lin33_w"], params["lin33_b"])

    cat = jnp.concatenate([z1, z2], axis=1).reshape(Bn, roi, 2 * H)
    conv = jnp.sum(cat * params["conv4_w"][None, None, :], axis=-1) + params["conv4_b"]
    h4 = jnp.maximum(conv @ params["lin4_w"] + params["lin4_b"], 0.0)
    allo = jnp.maximum(h4 @ params["lin5_w"] + params["lin5_b"], 0.0)

    ew_mod = ew.at[:, -roi:].set(allo).reshape(-1)
    xn = jnp.concatenate([z1.reshape(Bn, roi, H), z2.reshape(Bn, roi, H)],
                         axis=1).reshape(Bn * 2 * roi, H)
    Af = adj(edge_index.reshape(2, -1), ew_mod, Bn * 2 * roi)
    h = gcn(Af, xn, params["conv2_w"], params["conv2_b"])
    xo = head(h.reshape(Bn, 2 * roi * H), params["lin6_w"], params["lin6_b"],
              params["lin7_w"], params["lin7_b"])
    return [xo, x1, x2, allo]


# ------------------------------------------------------------------ params & inputs ------

def init_params(key):
    def lin(k, fan_in, fan_out):
        k1, k2 = jax.random.split(k)
        bound = 1.0 / np.sqrt(fan_in)
        w = jax.random.uniform(k1, (fan_in, fan_out), jnp.float32, -bound, bound)
        b = jax.random.uniform(k2, (fan_out,), jnp.float32, -bound, bound)
        return w, b

    keys = jax.random.split(key, 12)
    p = {}
    p["conv1_w"], p["conv1_b"] = lin(keys[0], ROI - 1, HID)     # GCNConv(roi-1, hidden)
    p["conv11_w"], p["conv11_b"] = lin(keys[1], ROI - 1, HID)
    p["conv2_w"], p["conv2_b"] = lin(keys[2], HID, HID)         # GCNConv(hidden, hidden)
    w4, b4 = lin(keys[3], HC4, 1)                               # Conv2d(1, 1, (1, hc4))
    p["conv4_w"], p["conv4_b"] = w4.reshape(HC4), b4
    p["lin1_w"], p["lin1_b"] = lin(keys[4], HC, HC2)
    p["lin11_w"], p["lin11_b"] = lin(keys[5], HC, HC2)
    p["lin3_w"], p["lin3_b"] = lin(keys[6], HC2, 2)
    p["lin33_w"], p["lin33_b"] = lin(keys[7], HC2, 2)
    p["lin4_w"], p["lin4_b"] = lin(keys[8], ROI, RATIO_HC)
    p["lin5_w"], p["lin5_b"] = lin(keys[9], RATIO_HC, ROI)
    p["lin6_w"], p["lin6_b"] = lin(keys[10], HC3, HC2)
    p["lin7_w"], p["lin7_b"] = lin(keys[11], HC2, 2)
    # note: lin2 / hidden_channels2 exist in __init__ but are unused in forward()
    return p


def make_inputs(key, roi_num=ROI, batch_size=B):
    seg2_e = 2 * LENN + roi_num               # edges per batch block
    iu, ju = np.triu_indices(roi_num, 1)      # exactly LENN = 6670 pairs

    src_list, tgt_list = [], []
    for i in range(batch_size):
        base_fc = i * 2 * roi_num
        base_sc = base_fc + roi_num
        src_list.append(iu + base_fc); tgt_list.append(ju + base_fc)   # FC edges
        src_list.append(iu + base_sc); tgt_list.append(ju + base_sc)   # SC edges
        k = np.arange(roi_num)                                         # fusion edges
        src_list.append(k + base_fc); tgt_list.append(k + base_sc)
    src = np.concatenate(src_list)
    tgt = np.concatenate(tgt_list)
    edge_index = jnp.asarray(np.stack([src, tgt]).astype(np.int32))

    k1, k2 = jax.random.split(key)
    edge_weight = jax.random.uniform(k1, (batch_size * seg2_e,), jnp.float32, 0.1, 1.0)
    x = jax.random.normal(k2, (batch_size * 2 * roi_num, roi_num - 1), dtype=jnp.float32)
    return x, edge_index, edge_weight


if __name__ == "__main__":
    key = jax.random.PRNGKey(0)
    kp, kx = jax.random.split(key)
    params = init_params(kp)
    x, edge_index, edge_weight = make_inputs(kx)

    out = forward(params, x, edge_index, edge_weight, ROI, B)
    out = jax.block_until_ready(out)

    assert out[0].shape == (B, 2) and out[0].dtype == jnp.float32
    assert out[1].shape == (B, 2) and out[2].shape == (B, 2)
    assert out[3].shape == (B, ROI)
    # softmax rows sum to 1
    assert np.allclose(np.asarray(out[0]).sum(axis=1), 1.0, atol=1e-5)
    assert np.allclose(np.asarray(out[1]).sum(axis=1), 1.0, atol=1e-5)
    assert np.allclose(np.asarray(out[2]).sum(axis=1), 1.0, atol=1e-5)

    # numerical check against the straightforward dense reference.  The kernel is
    # algebraically identical to the reference (block-form conv2 == gcn_norm on the
    # full graph); remaining slack is TPU matmul pass precision of the two
    # independently-ordered f32 matmul chains, so the bound is set to 1e-2 (tightened
    # from 2e-2), not to machine epsilon.
    ref = _reference_forward(params, x, edge_index, edge_weight, ROI, B)
    ref = jax.block_until_ready(ref)
    for got, want in zip(out, ref):
        g, w = np.asarray(got), np.asarray(want)
        assert np.allclose(g, w, rtol=1e-2, atol=1e-2), float(np.max(np.abs(g - w)))

    print("KERNEL_OK")
</pallas_src>

<mosaic_0001>
module attributes {stable_mosaic.version = 11 : i64} {
  func.func @_gvae_fused_kernel(%arg0: i32, %arg1: memref<1x116x116xf32, #tpu.memory_space<vmem>>, %arg2: memref<1x116x116xf32, #tpu.memory_space<vmem>>, %arg3: memref<1x115x116xf32, #tpu.memory_space<vmem>>, %arg4: memref<1x115x116xf32, #tpu.memory_space<vmem>>, %arg5: memref<1x116x116xbf16, #tpu.memory_space<vmem>>, %arg6: memref<1x116x116xbf16, #tpu.memory_space<vmem>>, %arg7: memref<1x116x256xbf16, #tpu.memory_space<vmem>>, %arg8: memref<8x115xf32, #tpu.memory_space<vmem>>, %arg9: memref<8x1xf32, #tpu.memory_space<vmem>>, %arg10: memref<8x115xf32, #tpu.memory_space<vmem>>, %arg11: memref<8x1xf32, #tpu.memory_space<vmem>>, %arg12: memref<8x8xf32, #tpu.memory_space<vmem>>, %arg13: memref<8x1xf32, #tpu.memory_space<vmem>>, %arg14: memref<116x256xf32, #tpu.memory_space<vmem>>, %arg15: memref<1x32xf32, #tpu.memory_space<vmem>>, %arg16: memref<32x2xf32, #tpu.memory_space<vmem>>, %arg17: memref<1x2xf32, #tpu.memory_space<vmem>>, %arg18: memref<116x256xf32, #tpu.memory_space<vmem>>, %arg19: memref<1x32xf32, #tpu.memory_space<vmem>>, %arg20: memref<32x2xf32, #tpu.memory_space<vmem>>, %arg21: memref<1x2xf32, #tpu.memory_space<vmem>>, %arg22: memref<8x1xf32, #tpu.memory_space<vmem>>, %arg23: memref<8x1xf32, #tpu.memory_space<vmem>>, %arg24: memref<1x1xf32, #tpu.memory_space<vmem>>, %arg25: memref<116x16xf32, #tpu.memory_space<vmem>>, %arg26: memref<1x16xf32, #tpu.memory_space<vmem>>, %arg27: memref<16x116xf32, #tpu.memory_space<vmem>>, %arg28: memref<1x116xf32, #tpu.memory_space<vmem>>, %arg29: memref<116x256xf32, #tpu.memory_space<vmem>>, %arg30: memref<116x256xf32, #tpu.memory_space<vmem>>, %arg31: memref<1x32xf32, #tpu.memory_space<vmem>>, %arg32: memref<32x2xf32, #tpu.memory_space<vmem>>, %arg33: memref<1x2xf32, #tpu.memory_space<vmem>>, %arg34: memref<1x1x2xf32, #tpu.memory_space<vmem>>, %arg35: memref<1x1x2xf32, #tpu.memory_space<vmem>>, %arg36: memref<1x1x2xf32, #tpu.memory_space<vmem>>, %arg37: memref<1x1x116xf32, #tpu.memory_space<vmem>>) attributes {dimension_semantics = [#tpu.dimension_semantics<parallel>], iteration_bounds = array<i64: 2>, scalar_prefetch = 0 : i64, scratch_operands = 0 : i64, tpu.core_type = #tpu.core_type<tc>, window_params = [{transform_indices = @transform_0, window_bounds = array<i64: 1, 116, 116>}, {transform_indices = @transform_1, window_bounds = array<i64: 1, 116, 116>}, {transform_indices = @transform_2, window_bounds = array<i64: 1, 115, 116>}, {transform_indices = @transform_3, window_bounds = array<i64: 1, 115, 116>}, {transform_indices = @transform_4, window_bounds = array<i64: 1, 116, 116>}, {transform_indices = @transform_5, window_bounds = array<i64: 1, 116, 116>}, {transform_indices = @transform_6, window_bounds = array<i64: 1, 116, 256>}, {pipeline_mode = #tpu.pipeline_mode<synchronous>, transform_indices = @transform_7, window_bounds = array<i64: 8, 115>}, {pipeline_mode = #tpu.pipeline_mode<synchronous>, transform_indices = @transform_8, window_bounds = array<i64: 8, 1>}, {pipeline_mode = #tpu.pipeline_mode<synchronous>, transform_indices = @transform_9, window_bounds = array<i64: 8, 115>}, {pipeline_mode = #tpu.pipeline_mode<synchronous>, transform_indices = @transform_10, window_bounds = array<i64: 8, 1>}, {pipeline_mode = #tpu.pipeline_mode<synchronous>, transform_indices = @transform_11, window_bounds = array<i64: 8, 8>}, {pipeline_mode = #tpu.pipeline_mode<synchronous>, transform_indices = @transform_12, window_bounds = array<i64: 8, 1>}, {pipeline_mode = #tpu.pipeline_mode<synchronous>, transform_indices = @transform_13, window_bounds = array<i64: 116, 256>}, {pipeline_mode = #tpu.pipeline_mode<synchronous>, transform_indices = @transform_14, window_bounds = array<i64: 1, 32>}, {pipeline_mode = #tpu.pipeline_mode<synchronous>, transform_indices = @transform_15, window_bounds = array<i64: 32, 2>}, {pipeline_mode = #tpu.pipeline_mode<synchronous>, transform_indices = @transform_16, window_bounds = array<i64: 1, 2>}, {pipeline_mode = #tpu.pipeline_mode<synchronous>, transform_indices = @transform_17, window_bounds = array<i64: 116, 256>}, {pipeline_mode = #tpu.pipeline_mode<synchronous>, transform_indices = @transform_18, window_bounds = array<i64: 1, 32>}, {pipeline_mode = #tpu.pipeline_mode<synchronous>, transform_indices = @transform_19, window_bounds = array<i64: 32, 2>}, {pipeline_mode = #tpu.pipeline_mode<synchronous>, transform_indices = @transform_20, window_bounds = array<i64: 1, 2>}, {pipeline_mode = #tpu.pipeline_mode<synchronous>, transform_indices = @transform_21, window_bounds = array<i64: 8, 1>}, {pipeline_mode = #tpu.pipeline_mode<synchronous>, transform_indices = @transform_22, window_bounds = array<i64: 8, 1>}, {pipeline_mode = #tpu.pipeline_mode<synchronous>, transform_indices = @transform_23, window_bounds = array<i64: 1, 1>}, {pipeline_mode = #tpu.pipeline_mode<synchronous>, transform_indices = @transform_24, window_bounds = array<i64: 116, 16>}, {pipeline_mode = #tpu.pipeline_mode<synchronous>, transform_indices = @transform_25, window_bounds = array<i64: 1, 16>}, {pipeline_mode = #tpu.pipeline_mode<synchronous>, transform_indices = @transform_26, window_bounds = array<i64: 16, 116>}, {pipeline_mode = #tpu.pipeline_mode<synchronous>, transform_indices = @transform_27, window_bounds = array<i64: 1, 116>}, {pipeline_mode = #tpu.pipeline_mode<synchronous>, transform_indices = @transform_28, window_bounds = array<i64: 116, 256>}, {pipeline_mode = #tpu.pipeline_mode<synchronous>, transform_indices = @transform_29, window_bounds = array<i64: 116, 256>}, {pipeline_mode = #tpu.pipeline_mode<synchronous>, transform_indices = @transform_30, window_bounds = array<i64: 1, 32>}, {pipeline_mode = #tpu.pipeline_mode<synchronous>, transform_indices = @transform_31, window_bounds = array<i64: 32, 2>}, {pipeline_mode = #tpu.pipeline_mode<synchronous>, transform_indices = @transform_32, window_bounds = array<i64: 1, 2>}, {transform_indices = @transform_33, window_bounds = array<i64: 1, 1, 2>}, {transform_indices = @transform_34, window_bounds = array<i64: 1, 1, 2>}, {transform_indices = @transform_35, window_bounds = array<i64: 1, 1, 2>}, {transform_indices = @transform_36, window_bounds = array<i64: 1, 1, 116>}]} {
    %c0 = arith.constant 0 : index
    %c0_0 = arith.constant 0 : index
    %c0_1 = arith.constant 0 : index
    %0 = vector.load %arg1[%c0, %c0_0, %c0_1] : memref<1x116x116xf32, #tpu.memory_space<vmem>>, vector<1x116x116xf32>
    %1 = vector.shape_cast %0 : vector<1x116x116xf32> to vector<116x116xf32>
    %cst = arith.constant dense<0.000000e+00> : vector<116xf32>
    %2 = vector.multi_reduction <add>, %1, %cst [0] : vector<116x116xf32> to vector<116xf32>
    %3 = vector.shape_cast %2 : vector<116xf32> to vector<1x116xf32>
    %c0_2 = arith.constant 0 : index
    %c0_3 = arith.constant 0 : index
    %c0_4 = arith.constant 0 : index
    %4 = vector.load %arg2[%c0_2, %c0_3, %c0_4] : memref<1x116x116xf32, #tpu.memory_space<vmem>>, vector<1x116x116xf32>
    %5 = vector.shape_cast %4 : vector<1x116x116xf32> to vector<116x116xf32>
    %cst_5 = arith.constant dense<0.000000e+00> : vector<116xf32>
    %6 = vector.multi_reduction <add>, %5, %cst_5 [0] : vector<116x116xf32> to vector<116xf32>
    %7 = vector.shape_cast %6 : vector<116xf32> to vector<1x116xf32>
    %8 = math.rsqrt %3 : vector<1x116xf32>
    %9 = math.rsqrt %7 : vector<1x116xf32>
    %c0_6 = arith.constant 0 : index
    %c0_7 = arith.constant 0 : index
    %10 = vector.load %arg8[%c0_6, %c0_7] : memref<8x115xf32, #tpu.memory_space<vmem>>, vector<8x115xf32>
    %c0_8 = arith.constant 0 : index
    %c0_9 = arith.constant 0 : index
    %c0_10 = arith.constant 0 : index
    %11 = vector.load %arg3[%c0_8, %c0_9, %c0_10] : memref<1x115x116xf32, #tpu.memory_space<vmem>>, vector<1x115x116xf32>
    %12 = vector.shape_cast %11 : vector<1x115x116xf32> to vector<115x116xf32>
    %cst_11 = arith.constant dense<0.000000e+00> : vector<8x116xf32>
    %13 = tpu.matmul %10, %12, %cst_11 {dimension_numbers = #tpu.dot_dimension_numbers<[1], [0], [0], [1], [0, 0, 1, 1], [], []>} : vector<8x115xf32>, vector<115x116xf32>, vector<8x116xf32> -> vector<8x116xf32>
    %14 = vector.broadcast %8 : vector<1x116xf32> to vector<8x116xf32>
    %15 = arith.mulf %13, %14 : vector<8x116xf32>
    %c0_12 = arith.constant 0 : index
    %c0_13 = arith.constant 0 : index
    %c0_14 = arith.constant 0 : index
    %16 = vector.load %arg1[%c0_12, %c0_13, %c0_14] : memref<1x116x116xf32, #tpu.memory_space<vmem>>, vector<1x116x116xf32>
    %17 = vector.shape_cast %16 : vector<1x116x116xf32> to vector<116x116xf32>
    %cst_15 = arith.constant dense<0.000000e+00> : vector<8x116xf32>
    %18 = tpu.matmul %15, %17, %cst_15 {dimension_numbers = #tpu.dot_dimension_numbers<[1], [0], [0], [1], [0, 0, 1, 1], [], []>} : vector<8x116xf32>, vector<116x116xf32>, vector<8x116xf32> -> vector<8x116xf32>
    %19 = vector.broadcast %8 : vector<1x116xf32> to vector<8x116xf32>
    %20 = arith.mulf %18, %19 : vector<8x116xf32>
    %c0_16 = arith.constant 0 : index
    %c0_17 = arith.constant 0 : index
    %21 = vector.load %arg9[%c0_16, %c0_17] : memref<8x1xf32, #tpu.memory_space<vmem>>, vector<8x1xf32>
    %22 = vector.broadcast %21 : vector<8x1xf32> to vector<8x116xf32>
    %23 = arith.addf %20, %22 : vector<8x116xf32>
    %cst_18 = arith.constant 0.000000e+00 : f32
    %24 = vector.broadcast %cst_18 : f32 to vector<8x116xf32>
    %25 = arith.maximumf %23, %24 : vector<8x116xf32>
    %c0_19 = arith.constant 0 : index
    %c0_20 = arith.constant 0 : index
    %26 = vector.load %arg10[%c0_19, %c0_20] : memref<8x115xf32, #tpu.memory_space<vmem>>, vector<8x115xf32>
    %c0_21 = arith.constant 0 : index
    %c0_22 = arith.constant 0 : index
    %c0_23 = arith.constant 0 : index
    %27 = vector.load %arg4[%c0_21, %c0_22, %c0_23] : memref<1x115x116xf32, #tpu.memory_space<vmem>>, vector<1x115x116xf32>
    %28 = vector.shape_cast %27 : vector<1x115x116xf32> to vector<115x116xf32>
    %cst_24 = arith.constant dense<0.000000e+00> : vector<8x116xf32>
    %29 = tpu.matmul %26, %28, %cst_24 {dimension_numbers = #tpu.dot_dimension_numbers<[1], [0], [0], [1], [0, 0, 1, 1], [], []>} : vector<8x115xf32>, vector<115x116xf32>, vector<8x116xf32> -> vector<8x116xf32>
    %30 = vector.broadcast %9 : vector<1x116xf32> to vector<8x116xf32>
    %31 = arith.mulf %29, %30 : vector<8x116xf32>
    %c0_25 = arith.constant 0 : index
    %c0_26 = arith.constant 0 : index
    %c0_27 = arith.constant 0 : index
    %32 = vector.load %arg2[%c0_25, %c0_26, %c0_27] : memref<1x116x116xf32, #tpu.memory_space<vmem>>, vector<1x116x116xf32>
    %33 = vector.shape_cast %32 : vector<1x116x116xf32> to vector<116x116xf32>
    %cst_28 = arith.constant dense<0.000000e+00> : vector<8x116xf32>
    %34 = tpu.matmul %31, %33, %cst_28 {dimension_numbers = #tpu.dot_dimension_numbers<[1], [0], [0], [1], [0, 0, 1, 1], [], []>} : vector<8x116xf32>, vector<116x116xf32>, vector<8x116xf32> -> vector<8x116xf32>
    %35 = vector.broadcast %9 : vector<1x116xf32> to vector<8x116xf32>
    %36 = arith.mulf %34, %35 : vector<8x116xf32>
    %c0_29 = arith.constant 0 : index
    %c0_30 = arith.constant 0 : index
    %37 = vector.load %arg11[%c0_29, %c0_30] : memref<8x1xf32, #tpu.memory_space<vmem>>, vector<8x1xf32>
    %38 = vector.broadcast %37 : vector<8x1xf32> to vector<8x116xf32>
    %39 = arith.addf %36, %38 : vector<8x116xf32>
    %cst_31 = arith.constant 0.000000e+00 : f32
    %40 = vector.broadcast %cst_31 : f32 to vector<8x116xf32>
    %41 = arith.maximumf %39, %40 : vector<8x116xf32>
    %c0_32 = arith.constant 0 : index
    %c0_33 = arith.constant 0 : index
    %42 = vector.load %arg14[%c0_32, %c0_33] : memref<116x256xf32, #tpu.memory_space<vmem>>, vector<116x256xf32>
    %cst_34 = arith.constant dense<0.000000e+00> : vector<8x256xf32>
    %43 = tpu.matmul %25, %42, %cst_34 {dimension_numbers = #tpu.dot_dimension_numbers<[1], [0], [0], [1], [0, 0, 1, 1], [], []>} : vector<8x116xf32>, vector<116x256xf32>, vector<8x256xf32> -> vector<8x256xf32>
    %c0_35 = arith.constant 0 : index
    %c0_36 = arith.constant 0 : index
    %44 = vector.load %arg15[%c0_35, %c0_36] : memref<1x32xf32, #tpu.memory_space<vmem>>, vector<1x32xf32>
    %45 = vector.extract_strided_slice %43 {offsets = [0, 0], sizes = [1, 32], strides = [1, 1]} : vector<8x256xf32> to vector<1x32xf32>
    %46 = arith.addf %44, %45 : vector<1x32xf32>
    %47 = vector.extract_strided_slice %43 {offsets = [1, 32], sizes = [1, 32], strides = [1, 1]} : vector<8x256xf32> to vector<1x32xf32>
    %48 = arith.addf %46, %47 : vector<1x32xf32>
    %49 = vector.extract_strided_slice %43 {offsets = [2, 64], sizes = [1, 32], strides = [1, 1]} : vector<8x256xf32> to vector<1x32xf32>
    %50 = arith.addf %48, %49 : vector<1x32xf32>
    %51 = vector.extract_strided_slice %43 {offsets = [3, 96], sizes = [1, 32], strides = [1, 1]} : vector<8x256xf32> to vector<1x32xf32>
    %52 = arith.addf %50, %51 : vector<1x32xf32>
    %53 = vector.extract_strided_slice %43 {offsets = [4, 128], sizes = [1, 32], strides = [1, 1]} : vector<8x256xf32> to vector<1x32xf32>
    %54 = arith.addf %52, %53 : vector<1x32xf32>
    %55 = vector.extract_strided_slice %43 {offsets = [5, 160], sizes = [1, 32], strides = [1, 1]} : vector<8x256xf32> to vector<1x32xf32>
    %56 = arith.addf %54, %55 : vector<1x32xf32>
    %57 = vector.extract_strided_slice %43 {offsets = [6, 192], sizes = [1, 32], strides = [1, 1]} : vector<8x256xf32> to vector<1x32xf32>
    %58 = arith.addf %56, %57 : vector<1x32xf32>
    %59 = vector.extract_strided_slice %43 {offsets = [7, 224], sizes = [1, 32], strides = [1, 1]} : vector<8x256xf32> to vector<1x32xf32>
    %60 = arith.addf %58, %59 : vector<1x32xf32>
    %cst_37 = arith.constant 0.000000e+00 : f32
    %61 = vector.broadcast %cst_37 : f32 to vector<1x32xf32>
    %62 = arith.maximumf %60, %61 : vector<1x32xf32>
    %c0_38 = arith.constant 0 : index
    %c0_39 = arith.constant 0 : index
    %63 = vector.load %arg16[%c0_38, %c0_39] : memref<32x2xf32, #tpu.memory_space<vmem>>, vector<32x2xf32>
    %cst_40 = arith.constant dense<0.000000e+00> : vector<1x2xf32>
    %64 = tpu.matmul %62, %63, %cst_40 {dimension_numbers = #tpu.dot_dimension_numbers<[1], [0], [0], [1], [0, 0, 1, 1], [], []>} : vector<1x32xf32>, vector<32x2xf32>, vector<1x2xf32> -> vector<1x2xf32>
    %c0_41 = arith.constant 0 : index
    %c0_42 = arith.constant 0 : index
    %65 = vector.load %arg17[%c0_41, %c0_42] : memref<1x2xf32, #tpu.memory_space<vmem>>, vector<1x2xf32>
    %66 = arith.addf %64, %65 : vector<1x2xf32>
    %cst_43 = arith.constant dense<0xFF800000> : vector<1xf32>
    %67 = vector.multi_reduction <maximumf>, %66, %cst_43 [1] : vector<1x2xf32> to vector<1xf32>
    %68 = vector.shape_cast %67 : vector<1xf32> to vector<1x1xf32>
    %69 = vector.broadcast %68 : vector<1x1xf32> to vector<1x2xf32>
    %70 = arith.subf %66, %69 : vector<1x2xf32>
    %71 = math.exp %70 : vector<1x2xf32>
    %cst_44 = arith.constant dense<0.000000e+00> : vector<1xf32>
    %72 = vector.multi_reduction <add>, %71, %cst_44 [1] : vector<1x2xf32> to vector<1xf32>
    %73 = vector.shape_cast %72 : vector<1xf32> to vector<1x1xf32>
    %74 = vector.broadcast %73 : vector<1x1xf32> to vector<1x2xf32>
    %75 = arith.divf %71, %74 : vector<1x2xf32>
    %c0_45 = arith.constant 0 : index
    %c0_46 = arith.constant 0 : index
    %c0_47 = arith.constant 0 : index
    %76 = vector.load %arg35[%c0_45, %c0_46, %c0_47] : memref<1x1x2xf32, #tpu.memory_space<vmem>>, vector<1x1x2xf32>
    %77 = vector.shape_cast %76 : vector<1x1x2xf32> to vector<1x2xf32>
    %78 = vector.shape_cast %75 : vector<1x2xf32> to vector<1x1x2xf32>
    tpu.vector_store %arg35[%c0_45, %c0_46, %c0_47], %78 {strides = array<i32>} : memref<1x1x2xf32, #tpu.memory_space<vmem>>, vector<1x1x2xf32>,
    %c0_48 = arith.constant 0 : index
    %c0_49 = arith.constant 0 : index
    %79 = vector.load %arg18[%c0_48, %c0_49] : memref<116x256xf32, #tpu.memory_space<vmem>>, vector<116x256xf32>
    %cst_50 = arith.constant dense<0.000000e+00> : vector<8x256xf32>
    %80 = tpu.matmul %41, %79, %cst_50 {dimension_numbers = #tpu.dot_dimension_numbers<[1], [0], [0], [1], [0, 0, 1, 1], [], []>} : vector<8x116xf32>, vector<116x256xf32>, vector<8x256xf32> -> vector<8x256xf32>
    %c0_51 = arith.constant 0 : index
    %c0_52 = arith.constant 0 : index
    %81 = vector.load %arg19[%c0_51, %c0_52] : memref<1x32xf32, #tpu.memory_space<vmem>>, vector<1x32xf32>
    %82 = vector.extract_strided_slice %80 {offsets = [0, 0], sizes = [1, 32], strides = [1, 1]} : vector<8x256xf32> to vector<1x32xf32>
    %83 = arith.addf %81, %82 : vector<1x32xf32>
    %84 = vector.extract_strided_slice %80 {offsets = [1, 32], sizes = [1, 32], strides = [1, 1]} : vector<8x256xf32> to vector<1x32xf32>
    %85 = arith.addf %83, %84 : vector<1x32xf32>
    %86 = vector.extract_strided_slice %80 {offsets = [2, 64], sizes = [1, 32], strides = [1, 1]} : vector<8x256xf32> to vector<1x32xf32>
    %87 = arith.addf %85, %86 : vector<1x32xf32>
    %88 = vector.extract_strided_slice %80 {offsets = [3, 96], sizes = [1, 32], strides = [1, 1]} : vector<8x256xf32> to vector<1x32xf32>
    %89 = arith.addf %87, %88 : vector<1x32xf32>
    %90 = vector.extract_strided_slice %80 {offsets = [4, 128], sizes = [1, 32], strides = [1, 1]} : vector<8x256xf32> to vector<1x32xf32>
    %91 = arith.addf %89, %90 : vector<1x32xf32>
    %92 = vector.extract_strided_slice %80 {offsets = [5, 160], sizes = [1, 32], strides = [1, 1]} : vector<8x256xf32> to vector<1x32xf32>
    %93 = arith.addf %91, %92 : vector<1x32xf32>
    %94 = vector.extract_strided_slice %80 {offsets = [6, 192], sizes = [1, 32], strides = [1, 1]} : vector<8x256xf32> to vector<1x32xf32>
    %95 = arith.addf %93, %94 : vector<1x32xf32>
    %96 = vector.extract_strided_slice %80 {offsets = [7, 224], sizes = [1, 32], strides = [1, 1]} : vector<8x256xf32> to vector<1x32xf32>
    %97 = arith.addf %95, %96 : vector<1x32xf32>
    %cst_53 = arith.constant 0.000000e+00 : f32
    %98 = vector.broadcast %cst_53 : f32 to vector<1x32xf32>
    %99 = arith.maximumf %97, %98 : vector<1x32xf32>
    %c0_54 = arith.constant 0 : index
    %c0_55 = arith.constant 0 : index
    %100 = vector.load %arg20[%c0_54, %c0_55] : memref<32x2xf32, #tpu.memory_space<vmem>>, vector<32x2xf32>
    %cst_56 = arith.constant dense<0.000000e+00> : vector<1x2xf32>
    %101 = tpu.matmul %99, %100, %cst_56 {dimension_numbers = #tpu.dot_dimension_numbers<[1], [0], [0], [1], [0, 0, 1, 1], [], []>} : vector<1x32xf32>, vector<32x2xf32>, vector<1x2xf32> -> vector<1x2xf32>
    %c0_57 = arith.constant 0 : index
    %c0_58 = arith.constant 0 : index
    %102 = vector.load %arg21[%c0_57, %c0_58] : memref<1x2xf32, #tpu.memory_space<vmem>>, vector<1x2xf32>
    %103 = arith.addf %101, %102 : vector<1x2xf32>
    %cst_59 = arith.constant dense<0xFF800000> : vector<1xf32>
    %104 = vector.multi_reduction <maximumf>, %103, %cst_59 [1] : vector<1x2xf32> to vector<1xf32>
    %105 = vector.shape_cast %104 : vector<1xf32> to vector<1x1xf32>
    %106 = vector.broadcast %105 : vector<1x1xf32> to vector<1x2xf32>
    %107 = arith.subf %103, %106 : vector<1x2xf32>
    %108 = math.exp %107 : vector<1x2xf32>
    %cst_60 = arith.constant dense<0.000000e+00> : vector<1xf32>
    %109 = vector.multi_reduction <add>, %108, %cst_60 [1] : vector<1x2xf32> to vector<1xf32>
    %110 = vector.shape_cast %109 : vector<1xf32> to vector<1x1xf32>
    %111 = vector.broadcast %110 : vector<1x1xf32> to vector<1x2xf32>
    %112 = arith.divf %108, %111 : vector<1x2xf32>
    %c0_61 = arith.constant 0 : index
    %c0_62 = arith.constant 0 : index
    %c0_63 = arith.constant 0 : index
    %113 = vector.load %arg36[%c0_61, %c0_62, %c0_63] : memref<1x1x2xf32, #tpu.memory_space<vmem>>, vector<1x1x2xf32>
    %114 = vector.shape_cast %113 : vector<1x1x2xf32> to vector<1x2xf32>
    %115 = vector.shape_cast %112 : vector<1x2xf32> to vector<1x1x2xf32>
    tpu.vector_store %arg36[%c0_61, %c0_62, %c0_63], %115 {strides = array<i32>} : memref<1x1x2xf32, #tpu.memory_space<vmem>>, vector<1x1x2xf32>,
    %c0_64 = arith.constant 0 : index
    %c0_65 = arith.constant 0 : index
    %116 = vector.load %arg22[%c0_64, %c0_65] : memref<8x1xf32, #tpu.memory_space<vmem>>, vector<8x1xf32>
    %117 = vector.broadcast %116 : vector<8x1xf32> to vector<8x116xf32>
    %118 = arith.mulf %25, %117 : vector<8x116xf32>
    %c0_66 = arith.constant 0 : index
    %c0_67 = arith.constant 0 : index
    %119 = vector.load %arg23[%c0_66, %c0_67] : memref<8x1xf32, #tpu.memory_space<vmem>>, vector<8x1xf32>
    %120 = vector.broadcast %119 : vector<8x1xf32> to vector<8x116xf32>
    %121 = arith.mulf %41, %120 : vector<8x116xf32>
    %122 = arith.addf %118, %121 : vector<8x116xf32>
    %cst_68 = arith.constant dense<0.000000e+00> : vector<116xf32>
    %123 = vector.multi_reduction <add>, %122, %cst_68 [0] : vector<8x116xf32> to vector<116xf32>
    %124 = vector.shape_cast %123 : vector<116xf32> to vector<1x116xf32>
    %c0_69 = arith.constant 0 : index
    %c0_70 = arith.constant 0 : index
    %125 = vector.load %arg24[%c0_69, %c0_70] : memref<1x1xf32, #tpu.memory_space<vmem>>, vector<1x1xf32>
    %126 = vector.broadcast %125 : vector<1x1xf32> to vector<1x116xf32>
    %127 = arith.addf %124, %126 : vector<1x116xf32>
    %c0_71 = arith.constant 0 : index
    %c0_72 = arith.constant 0 : index
    %128 = vector.load %arg25[%c0_71, %c0_72] : memref<116x16xf32, #tpu.memory_space<vmem>>, vector<116x16xf32>
    %cst_73 = arith.constant dense<0.000000e+00> : vector<1x16xf32>
    %129 = tpu.matmul %127, %128, %cst_73 {dimension_numbers = #tpu.dot_dimension_numbers<[1], [0], [0], [1], [0, 0, 1, 1], [], []>} : vector<1x116xf32>, vector<116x16xf32>, vector<1x16xf32> -> vector<1x16xf32>
    %c0_74 = arith.constant 0 : index
    %c0_75 = arith.constant 0 : index
    %130 = vector.load %arg26[%c0_74, %c0_75] : memref<1x16xf32, #tpu.memory_space<vmem>>, vector<1x16xf32>
    %131 = arith.addf %129, %130 : vector<1x16xf32>
    %cst_76 = arith.constant 0.000000e+00 : f32
    %132 = vector.broadcast %cst_76 : f32 to vector<1x16xf32>
    %133 = arith.maximumf %131, %132 : vector<1x16xf32>
    %c0_77 = arith.constant 0 : index
    %c0_78 = arith.constant 0 : index
    %134 = vector.load %arg27[%c0_77, %c0_78] : memref<16x116xf32, #tpu.memory_space<vmem>>, vector<16x116xf32>
    %cst_79 = arith.constant dense<0.000000e+00> : vector<1x116xf32>
    %135 = tpu.matmul %133, %134, %cst_79 {dimension_numbers = #tpu.dot_dimension_numbers<[1], [0], [0], [1], [0, 0, 1, 1], [], []>} : vector<1x16xf32>, vector<16x116xf32>, vector<1x116xf32> -> vector<1x116xf32>
    %c0_80 = arith.constant 0 : index
    %c0_81 = arith.constant 0 : index
    %136 = vector.load %arg28[%c0_80, %c0_81] : memref<1x116xf32, #tpu.memory_space<vmem>>, vector<1x116xf32>
    %137 = arith.addf %135, %136 : vector<1x116xf32>
    %cst_82 = arith.constant 0.000000e+00 : f32
    %138 = vector.broadcast %cst_82 : f32 to vector<1x116xf32>
    %139 = arith.maximumf %137, %138 : vector<1x116xf32>
    %c0_83 = arith.constant 0 : index
    %c0_84 = arith.constant 0 : index
    %c0_85 = arith.constant 0 : index
    %140 = vector.load %arg37[%c0_83, %c0_84, %c0_85] : memref<1x1x116xf32, #tpu.memory_space<vmem>>, vector<1x1x116xf32>
    %141 = vector.shape_cast %140 : vector<1x1x116xf32> to vector<1x116xf32>
    %142 = vector.shape_cast %139 : vector<1x116xf32> to vector<1x1x116xf32>
    tpu.vector_store %arg37[%c0_83, %c0_84, %c0_85], %142 {strides = array<i32>} : memref<1x1x116xf32, #tpu.memory_space<vmem>>, vector<1x1x116xf32>,
    %c0_86 = arith.constant 0 : index
    %c0_87 = arith.constant 0 : index
    %c0_88 = arith.constant 0 : index
    %143 = vector.load %arg7[%c0_86, %c0_87, %c0_88] : memref<1x116x256xbf16, #tpu.memory_space<vmem>>, vector<1x116x256xbf16>
    %144 = vector.shape_cast %143 : vector<1x116x256xbf16> to vector<116x256xbf16>
    %145 = arith.extf %144 : vector<116x256xbf16> to vector<116x256xf32>
    %cst_89 = arith.constant dense<0.000000e+00> : vector<1x256xf32>
    %146 = tpu.matmul %139, %145, %cst_89 {dimension_numbers = #tpu.dot_dimension_numbers<[1], [0], [0], [1], [0, 0, 1, 1], [], []>} : vector<1x116xf32>, vector<116x256xf32>, vector<1x256xf32> -> vector<1x256xf32>
    %147 = vector.extract_strided_slice %146 {offsets = [0, 0], sizes = [1, 116], strides = [1, 1]} : vector<1x256xf32> to vector<1x116xf32>
    %148 = arith.addf %3, %147 : vector<1x116xf32>
    %149 = math.rsqrt %148 : vector<1x116xf32>
    %150 = vector.extract_strided_slice %146 {offsets = [0, 128], sizes = [1, 116], strides = [1, 1]} : vector<1x256xf32> to vector<1x116xf32>
    %151 = arith.addf %7, %150 : vector<1x116xf32>
    %152 = math.rsqrt %151 : vector<1x116xf32>
    %c0_90 = arith.constant 0 : index
    %c0_91 = arith.constant 0 : index
    %153 = vector.load %arg12[%c0_90, %c0_91] : memref<8x8xf32, #tpu.memory_space<vmem>>, vector<8x8xf32>
    %cst_92 = arith.constant dense<0.000000e+00> : vector<8x116xf32>
    %154 = tpu.matmul %153, %25, %cst_92 {dimension_numbers = #tpu.dot_dimension_numbers<[1], [0], [0], [1], [0, 0, 1, 1], [], []>} : vector<8x8xf32>, vector<8x116xf32>, vector<8x116xf32> -> vector<8x116xf32>
    %155 = vector.broadcast %149 : vector<1x116xf32> to vector<8x116xf32>
    %156 = arith.mulf %154, %155 : vector<8x116xf32>
    %c0_93 = arith.constant 0 : index
    %c0_94 = arith.constant 0 : index
    %157 = vector.load %arg12[%c0_93, %c0_94] : memref<8x8xf32, #tpu.memory_space<vmem>>, vector<8x8xf32>
    %cst_95 = arith.constant dense<0.000000e+00> : vector<8x116xf32>
    %158 = tpu.matmul %157, %41, %cst_95 {dimension_numbers = #tpu.dot_dimension_numbers<[1], [0], [0], [1], [0, 0, 1, 1], [], []>} : vector<8x8xf32>, vector<8x116xf32>, vector<8x116xf32> -> vector<8x116xf32>
    %159 = vector.broadcast %152 : vector<1x116xf32> to vector<8x116xf32>
    %160 = arith.mulf %158, %159 : vector<8x116xf32>
    %c0_96 = arith.constant 0 : index
    %c0_97 = arith.constant 0 : index
    %c0_98 = arith.constant 0 : index
    %161 = vector.load %arg5[%c0_96, %c0_97, %c0_98] : memref<1x116x116xbf16, #tpu.memory_space<vmem>>, vector<1x116x116xbf16>
    %162 = vector.shape_cast %161 : vector<1x116x116xbf16> to vector<116x116xbf16>
    %163 = arith.extf %162 : vector<116x116xbf16> to vector<116x116xf32>
    %cst_99 = arith.constant dense<0.000000e+00> : vector<8x116xf32>
    %164 = tpu.matmul %156, %163, %cst_99 {dimension_numbers = #tpu.dot_dimension_numbers<[1], [0], [0], [1], [0, 0, 1, 1], [], []>} : vector<8x116xf32>, vector<116x116xf32>, vector<8x116xf32> -> vector<8x116xf32>
    %c0_100 = arith.constant 0 : index
    %c0_101 = arith.constant 0 : index
    %c0_102 = arith.constant 0 : index
    %165 = vector.load %arg6[%c0_100, %c0_101, %c0_102] : memref<1x116x116xbf16, #tpu.memory_space<vmem>>, vector<1x116x116xbf16>
    %166 = vector.shape_cast %165 : vector<1x116x116xbf16> to vector<116x116xbf16>
    %167 = arith.extf %166 : vector<116x116xbf16> to vector<116x116xf32>
    %cst_103 = arith.constant dense<0.000000e+00> : vector<8x116xf32>
    %168 = tpu.matmul %160, %167, %cst_103 {dimension_numbers = #tpu.dot_dimension_numbers<[1], [0], [0], [1], [0, 0, 1, 1], [], []>} : vector<8x116xf32>, vector<116x116xf32>, vector<8x116xf32> -> vector<8x116xf32>
    %169 = arith.addf %164, %168 : vector<8x116xf32>
    %170 = vector.broadcast %139 : vector<1x116xf32> to vector<8x116xf32>
    %171 = arith.mulf %169, %170 : vector<8x116xf32>
    %c0_104 = arith.constant 0 : index
    %c0_105 = arith.constant 0 : index
    %c0_106 = arith.constant 0 : index
    %172 = vector.load %arg7[%c0_104, %c0_105, %c0_106] : memref<1x116x256xbf16, #tpu.memory_space<vmem>>, vector<1x116x256xbf16>
    %173 = vector.shape_cast %172 : vector<1x116x256xbf16> to vector<116x256xbf16>
    %174 = arith.extf %173 : vector<116x256xbf16> to vector<116x256xf32>
    %cst_107 = arith.constant dense<0.000000e+00> : vector<8x256xf32>
    %175 = tpu.matmul %171, %174, %cst_107 {dimension_numbers = #tpu.dot_dimension_numbers<[1], [0], [0], [1], [0, 0, 1, 1], [], []>} : vector<8x116xf32>, vector<116x256xf32>, vector<8x256xf32> -> vector<8x256xf32>
    %c0_108 = arith.constant 0 : index
    %c0_109 = arith.constant 0 : index
    %c0_110 = arith.constant 0 : index
    %176 = vector.load %arg1[%c0_108, %c0_109, %c0_110] : memref<1x116x116xf32, #tpu.memory_space<vmem>>, vector<1x116x116xf32>
    %177 = vector.shape_cast %176 : vector<1x116x116xf32> to vector<116x116xf32>
    %cst_111 = arith.constant dense<0.000000e+00> : vector<8x116xf32>
    %178 = tpu.matmul %156, %177, %cst_111 {dimension_numbers = #tpu.dot_dimension_numbers<[1], [0], [0], [1], [0, 0, 1, 1], [], []>} : vector<8x116xf32>, vector<116x116xf32>, vector<8x116xf32> -> vector<8x116xf32>
    %179 = vector.extract_strided_slice %175 {offsets = [0, 0], sizes = [8, 116], strides = [1, 1]} : vector<8x256xf32> to vector<8x116xf32>
    %180 = arith.addf %178, %179 : vector<8x116xf32>
    %c0_112 = arith.constant 0 : index
    %c0_113 = arith.constant 0 : index
    %c0_114 = arith.constant 0 : index
    %181 = vector.load %arg2[%c0_112, %c0_113, %c0_114] : memref<1x116x116xf32, #tpu.memory_space<vmem>>, vector<1x116x116xf32>
    %182 = vector.shape_cast %181 : vector<1x116x116xf32> to vector<116x116xf32>
    %cst_115 = arith.constant dense<0.000000e+00> : vector<8x116xf32>
    %183 = tpu.matmul %160, %182, %cst_115 {dimension_numbers = #tpu.dot_dimension_numbers<[1], [0], [0], [1], [0, 0, 1, 1], [], []>} : vector<8x116xf32>, vector<116x116xf32>, vector<8x116xf32> -> vector<8x116xf32>
    %184 = vector.extract_strided_slice %175 {offsets = [0, 128], sizes = [8, 116], strides = [1, 1]} : vector<8x256xf32> to vector<8x116xf32>
    %185 = arith.addf %183, %184 : vector<8x116xf32>
    %c0_116 = arith.constant 0 : index
    %c0_117 = arith.constant 0 : index
    %186 = vector.load %arg13[%c0_116, %c0_117] : memref<8x1xf32, #tpu.memory_space<vmem>>, vector<8x1xf32>
    %187 = vector.broadcast %149 : vector<1x116xf32> to vector<8x116xf32>
    %188 = arith.mulf %180, %187 : vector<8x116xf32>
    %189 = vector.broadcast %186 : vector<8x1xf32> to vector<8x116xf32>
    %190 = arith.addf %188, %189 : vector<8x116xf32>
    %cst_118 = arith.constant 0.000000e+00 : f32
    %191 = vector.broadcast %cst_118 : f32 to vector<8x116xf32>
    %192 = arith.maximumf %190, %191 : vector<8x116xf32>
    %193 = vector.broadcast %152 : vector<1x116xf32> to vector<8x116xf32>
    %194 = arith.mulf %185, %193 : vector<8x116xf32>
    %195 = vector.broadcast %186 : vector<8x1xf32> to vector<8x116xf32>
    %196 = arith.addf %194, %195 : vector<8x116xf32>
    %cst_119 = arith.constant 0.000000e+00 : f32
    %197 = vector.broadcast %cst_119 : f32 to vector<8x116xf32>
    %198 = arith.maximumf %196, %197 : vector<8x116xf32>
    %c0_120 = arith.constant 0 : index
    %c0_121 = arith.constant 0 : index
    %199 = vector.load %arg29[%c0_120, %c0_121] : memref<116x256xf32, #tpu.memory_space<vmem>>, vector<116x256xf32>
    %cst_122 = arith.constant dense<0.000000e+00> : vector<8x256xf32>
    %200 = tpu.matmul %192, %199, %cst_122 {dimension_numbers = #tpu.dot_dimension_numbers<[1], [0], [0], [1], [0, 0, 1, 1], [], []>} : vector<8x116xf32>, vector<116x256xf32>, vector<8x256xf32> -> vector<8x256xf32>
    %c0_123 = arith.constant 0 : index
    %c0_124 = arith.constant 0 : index
    %201 = vector.load %arg30[%c0_123, %c0_124] : memref<116x256xf32, #tpu.memory_space<vmem>>, vector<116x256xf32>
    %cst_125 = arith.constant dense<0.000000e+00> : vector<8x256xf32>
    %202 = tpu.matmul %198, %201, %cst_125 {dimension_numbers = #tpu.dot_dimension_numbers<[1], [0], [0], [1], [0, 0, 1, 1], [], []>} : vector<8x116xf32>, vector<116x256xf32>, vector<8x256xf32> -> vector<8x256xf32>
    %203 = arith.addf %200, %202 : vector<8x256xf32>
    %c0_126 = arith.constant 0 : index
    %c0_127 = arith.constant 0 : index
    %204 = vector.load %arg31[%c0_126, %c0_127] : memref<1x32xf32, #tpu.memory_space<vmem>>, vector<1x32xf32>
    %205 = vector.extract_strided_slice %203 {offsets = [0, 0], sizes = [1, 32], strides = [1, 1]} : vector<8x256xf32> to vector<1x32xf32>
    %206 = arith.addf %204, %205 : vector<1x32xf32>
    %207 = vector.extract_strided_slice %203 {offsets = [1, 32], sizes = [1, 32], strides = [1, 1]} : vector<8x256xf32> to vector<1x32xf32>
    %208 = arith.addf %206, %207 : vector<1x32xf32>
    %209 = vector.extract_strided_slice %203 {offsets = [2, 64], sizes = [1, 32], strides = [1, 1]} : vector<8x256xf32> to vector<1x32xf32>
    %210 = arith.addf %208, %209 : vector<1x32xf32>
    %211 = vector.extract_strided_slice %203 {offsets = [3, 96], sizes = [1, 32], strides = [1, 1]} : vector<8x256xf32> to vector<1x32xf32>
    %212 = arith.addf %210, %211 : vector<1x32xf32>
    %213 = vector.extract_strided_slice %203 {offsets = [4, 128], sizes = [1, 32], strides = [1, 1]} : vector<8x256xf32> to vector<1x32xf32>
    %214 = arith.addf %212, %213 : vector<1x32xf32>
    %215 = vector.extract_strided_slice %203 {offsets = [5, 160], sizes = [1, 32], strides = [1, 1]} : vector<8x256xf32> to vector<1x32xf32>
    %216 = arith.addf %214, %215 : vector<1x32xf32>
    %217 = vector.extract_strided_slice %203 {offsets = [6, 192], sizes = [1, 32], strides = [1, 1]} : vector<8x256xf32> to vector<1x32xf32>
    %218 = arith.addf %216, %217 : vector<1x32xf32>
    %219 = vector.extract_strided_slice %203 {offsets = [7, 224], sizes = [1, 32], strides = [1, 1]} : vector<8x256xf32> to vector<1x32xf32>
    %220 = arith.addf %218, %219 : vector<1x32xf32>
    %cst_128 = arith.constant 0.000000e+00 : f32
    %221 = vector.broadcast %cst_128 : f32 to vector<1x32xf32>
    %222 = arith.maximumf %220, %221 : vector<1x32xf32>
    %c0_129 = arith.constant 0 : index
    %c0_130 = arith.constant 0 : index
    %223 = vector.load %arg32[%c0_129, %c0_130] : memref<32x2xf32, #tpu.memory_space<vmem>>, vector<32x2xf32>
    %cst_131 = arith.constant dense<0.000000e+00> : vector<1x2xf32>
    %224 = tpu.matmul %222, %223, %cst_131 {dimension_numbers = #tpu.dot_dimension_numbers<[1], [0], [0], [1], [0, 0, 1, 1], [], []>} : vector<1x32xf32>, vector<32x2xf32>, vector<1x2xf32> -> vector<1x2xf32>
    %c0_132 = arith.constant 0 : index
    %c0_133 = arith.constant 0 : index
    %225 = vector.load %arg33[%c0_132, %c0_133] : memref<1x2xf32, #tpu.memory_space<vmem>>, vector<1x2xf32>
    %226 = arith.addf %224, %225 : vector<1x2xf32>
    %cst_134 = arith.constant dense<0xFF800000> : vector<1xf32>
    %227 = vector.multi_reduction <maximumf>, %226, %cst_134 [1] : vector<1x2xf32> to vector<1xf32>
    %228 = vector.shape_cast %227 : vector<1xf32> to vector<1x1xf32>
    %229 = vector.broadcast %228 : vector<1x1xf32> to vector<1x2xf32>
    %230 = arith.subf %226, %229 : vector<1x2xf32>
    %231 = math.exp %230 : vector<1x2xf32>
    %cst_135 = arith.constant dense<0.000000e+00> : vector<1xf32>
    %232 = vector.multi_reduction <add>, %231, %cst_135 [1] : vector<1x2xf32> to vector<1xf32>
    %233 = vector.shape_cast %232 : vector<1xf32> to vector<1x1xf32>
    %234 = vector.broadcast %233 : vector<1x1xf32> to vector<1x2xf32>
    %235 = arith.divf %231, %234 : vector<1x2xf32>
    %c0_136 = arith.constant 0 : index
    %c0_137 = arith.constant 0 : index
    %c0_138 = arith.constant 0 : index
    %236 = vector.load %arg34[%c0_136, %c0_137, %c0_138] : memref<1x1x2xf32, #tpu.memory_space<vmem>>, vector<1x1x2xf32>
    %237 = vector.shape_cast %236 : vector<1x1x2xf32> to vector<1x2xf32>
    %238 = vector.shape_cast %235 : vector<1x2xf32> to vector<1x1x2xf32>
    tpu.vector_store %arg34[%c0_136, %c0_137, %c0_138], %238 {strides = array<i32>} : memref<1x1x2xf32, #tpu.memory_space<vmem>>, vector<1x1x2xf32>,
    return
  }
  func.func @transform_0(%arg0: i32) -> (i32, i32, i32) {
    %c0_i32 = arith.constant 0 : i32
    %c0_i32_0 = arith.constant 0 : i32
    %c0_i32_1 = arith.constant 0 : i32
    return %arg0, %c0_i32, %c0_i32_0 : i32, i32, i32
  }
  func.func @transform_1(%arg0: i32) -> (i32, i32, i32) {
    %c0_i32 = arith.constant 0 : i32
    %c0_i32_0 = arith.constant 0 : i32
    %c0_i32_1 = arith.constant 0 : i32
    return %arg0, %c0_i32, %c0_i32_0 : i32, i32, i32
  }
  func.func @transform_2(%arg0: i32) -> (i32, i32, i32) {
    %c0_i32 = arith.constant 0 : i32
    %c0_i32_0 = arith.constant 0 : i32
    %c0_i32_1 = arith.constant 0 : i32
    return %arg0, %c0_i32, %c0_i32_0 : i32, i32, i32
  }
  func.func @transform_3(%arg0: i32) -> (i32, i32, i32) {
    %c0_i32 = arith.constant 0 : i32
    %c0_i32_0 = arith.constant 0 : i32
    %c0_i32_1 = arith.constant 0 : i32
    return %arg0, %c0_i32, %c0_i32_0 : i32, i32, i32
  }
  func.func @transform_4(%arg0: i32) -> (i32, i32, i32) {
    %c0_i32 = arith.constant 0 : i32
    %c0_i32_0 = arith.constant 0 : i32
    %c0_i32_1 = arith.constant 0 : i32
    return %arg0, %c0_i32, %c0_i32_0 : i32, i32, i32
  }
  func.func @transform_5(%arg0: i32) -> (i32, i32, i32) {
    %c0_i32 = arith.constant 0 : i32
    %c0_i32_0 = arith.constant 0 : i32
    %c0_i32_1 = arith.constant 0 : i32
    return %arg0, %c0_i32, %c0_i32_0 : i32, i32, i32
  }
  func.func @transform_6(%arg0: i32) -> (i32, i32, i32) {
    %c0_i32 = arith.constant 0 : i32
    %c0_i32_0 = arith.constant 0 : i32
    %c0_i32_1 = arith.constant 0 : i32
    return %arg0, %c0_i32, %c0_i32_0 : i32, i32, i32
  }
  func.func @transform_7(%arg0: i32) -> (i32, i32) {
    %c0_i32 = arith.constant 0 : i32
    %c0_i32_0 = arith.constant 0 : i32
    %c0_i32_1 = arith.constant 0 : i32
    return %c0_i32, %c0_i32_0 : i32, i32
  }
  func.func @transform_8(%arg0: i32) -> (i32, i32) {
    %c0_i32 = arith.constant 0 : i32
    %c0_i32_0 = arith.constant 0 : i32
    %c0_i32_1 = arith.constant 0 : i32
    return %c0_i32, %c0_i32_0 : i32, i32
  }
  func.func @transform_9(%arg0: i32) -> (i32, i32) {
    %c0_i32 = arith.constant 0 : i32
    %c0_i32_0 = arith.constant 0 : i32
    %c0_i32_1 = arith.constant 0 : i32
    return %c0_i32, %c0_i32_0 : i32, i32
  }
  func.func @transform_10(%arg0: i32) -> (i32, i32) {
    %c0_i32 = arith.constant 0 : i32
    %c0_i32_0 = arith.constant 0 : i32
    %c0_i32_1 = arith.constant 0 : i32
    return %c0_i32, %c0_i32_0 : i32, i32
  }
  func.func @transform_11(%arg0: i32) -> (i32, i32) {
    %c0_i32 = arith.constant 0 : i32
    %c0_i32_0 = arith.constant 0 : i32
    %c0_i32_1 = arith.constant 0 : i32
    return %c0_i32, %c0_i32_0 : i32, i32
  }
  func.func @transform_12(%arg0: i32) -> (i32, i32) {
    %c0_i32 = arith.constant 0 : i32
    %c0_i32_0 = arith.constant 0 : i32
    %c0_i32_1 = arith.constant 0 : i32
    return %c0_i32, %c0_i32_0 : i32, i32
  }
  func.func @transform_13(%arg0: i32) -> (i32, i32) {
    %c0_i32 = arith.constant 0 : i32
    %c0_i32_0 = arith.constant 0 : i32
    %c0_i32_1 = arith.constant 0 : i32
    return %c0_i32, %c0_i32_0 : i32, i32
  }
  func.func @transform_14(%arg0: i32) -> (i32, i32) {
    %c0_i32 = arith.constant 0 : i32
    %c0_i32_0 = arith.constant 0 : i32
    %c0_i32_1 = arith.constant 0 : i32
    return %c0_i32, %c0_i32_0 : i32, i32
  }
  func.func @transform_15(%arg0: i32) -> (i32, i32) {
    %c0_i32 = arith.constant 0 : i32
    %c0_i32_0 = arith.constant 0 : i32
    %c0_i32_1 = arith.constant 0 : i32
    return %c0_i32, %c0_i32_0 : i32, i32
  }
  func.func @transform_16(%arg0: i32) -> (i32, i32) {
    %c0_i32 = arith.constant 0 : i32
    %c0_i32_0 = arith.constant 0 : i32
    %c0_i32_1 = arith.constant 0 : i32
    return %c0_i32, %c0_i32_0 : i32, i32
  }
  func.func @transform_17(%arg0: i32) -> (i32, i32) {
    %c0_i32 = arith.constant 0 : i32
    %c0_i32_0 = arith.constant 0 : i32
    %c0_i32_1 = arith.constant 0 : i32
    return %c0_i32, %c0_i32_0 : i32, i32
  }
  func.func @transform_18(%arg0: i32) -> (i32, i32) {
    %c0_i32 = arith.constant 0 : i32
    %c0_i32_0 = arith.constant 0 : i32
    %c0_i32_1 = arith.constant 0 : i32
    return %c0_i32, %c0_i32_0 : i32, i32
  }
  func.func @transform_19(%arg0: i32) -> (i32, i32) {
    %c0_i32 = arith.constant 0 : i32
    %c0_i32_0 = arith.constant 0 : i32
    %c0_i32_1 = arith.constant 0 : i32
    return %c0_i32, %c0_i32_0 : i32, i32
  }
  func.func @transform_20(%arg0: i32) -> (i32, i32) {
    %c0_i32 = arith.constant 0 : i32
    %c0_i32_0 = arith.constant 0 : i32
    %c0_i32_1 = arith.constant 0 : i32
    return %c0_i32, %c0_i32_0 : i32, i32
  }
  func.func @transform_21(%arg0: i32) -> (i32, i32) {
    %c0_i32 = arith.constant 0 : i32
    %c0_i32_0 = arith.constant 0 : i32
    %c0_i32_1 = arith.constant 0 : i32
    return %c0_i32, %c0_i32_0 : i32, i32
  }
  func.func @transform_22(%arg0: i32) -> (i32, i32) {
    %c0_i32 = arith.constant 0 : i32
    %c0_i32_0 = arith.constant 0 : i32
    %c0_i32_1 = arith.constant 0 : i32
    return %c0_i32, %c0_i32_0 : i32, i32
  }
  func.func @transform_23(%arg0: i32) -> (i32, i32) {
    %c0_i32 = arith.constant 0 : i32
    %c0_i32_0 = arith.constant 0 : i32
    %c0_i32_1 = arith.constant 0 : i32
    return %c0_i32, %c0_i32_0 : i32, i32
  }
  func.func @transform_24(%arg0: i32) -> (i32, i32) {
    %c0_i32 = arith.constant 0 : i32
    %c0_i32_0 = arith.constant 0 : i32
    %c0_i32_1 = arith.constant 0 : i32
    return %c0_i32, %c0_i32_0 : i32, i32
  }
  func.func @transform_25(%arg0: i32) -> (i32, i32) {
    %c0_i32 = arith.constant 0 : i32
    %c0_i32_0 = arith.constant 0 : i32
    %c0_i32_1 = arith.constant 0 : i32
    return %c0_i32, %c0_i32_0 : i32, i32
  }
  func.func @transform_26(%arg0: i32) -> (i32, i32) {
    %c0_i32 = arith.constant 0 : i32
    %c0_i32_0 = arith.constant 0 : i32
    %c0_i32_1 = arith.constant 0 : i32
    return %c0_i32, %c0_i32_0 : i32, i32
  }
  func.func @transform_27(%arg0: i32) -> (i32, i32) {
    %c0_i32 = arith.constant 0 : i32
    %c0_i32_0 = arith.constant 0 : i32
    %c0_i32_1 = arith.constant 0 : i32
    return %c0_i32, %c0_i32_0 : i32, i32
  }
  func.func @transform_28(%arg0: i32) -> (i32, i32) {
    %c0_i32 = arith.constant 0 : i32
    %c0_i32_0 = arith.constant 0 : i32
    %c0_i32_1 = arith.constant 0 : i32
    return %c0_i32, %c0_i32_0 : i32, i32
  }
  func.func @transform_29(%arg0: i32) -> (i32, i32) {
    %c0_i32 = arith.constant 0 : i32
    %c0_i32_0 = arith.constant 0 : i32
    %c0_i32_1 = arith.constant 0 : i32
    return %c0_i32, %c0_i32_0 : i32, i32
  }
  func.func @transform_30(%arg0: i32) -> (i32, i32) {
    %c0_i32 = arith.constant 0 : i32
    %c0_i32_0 = arith.constant 0 : i32
    %c0_i32_1 = arith.constant 0 : i32
    return %c0_i32, %c0_i32_0 : i32, i32
  }
  func.func @transform_31(%arg0: i32) -> (i32, i32) {
    %c0_i32 = arith.constant 0 : i32
    %c0_i32_0 = arith.constant 0 : i32
    %c0_i32_1 = arith.constant 0 : i32
    return %c0_i32, %c0_i32_0 : i32, i32
  }
  func.func @transform_32(%arg0: i32) -> (i32, i32) {
    %c0_i32 = arith.constant 0 : i32
    %c0_i32_0 = arith.constant 0 : i32
    %c0_i32_1 = arith.constant 0 : i32
    return %c0_i32, %c0_i32_0 : i32, i32
  }
  func.func @transform_33(%arg0: i32) -> (i32, i32, i32) {
    %c0_i32 = arith.constant 0 : i32
    %c0_i32_0 = arith.constant 0 : i32
    %c0_i32_1 = arith.constant 0 : i32
    return %arg0, %c0_i32, %c0_i32_0 : i32, i32, i32
  }
  func.func @transform_34(%arg0: i32) -> (i32, i32, i32) {
    %c0_i32 = arith.constant 0 : i32
    %c0_i32_0 = arith.constant 0 : i32
    %c0_i32_1 = arith.constant 0 : i32
    return %arg0, %c0_i32, %c0_i32_0 : i32, i32, i32
  }
  func.func @transform_35(%arg0: i32) -> (i32, i32, i32) {
    %c0_i32 = arith.constant 0 : i32
    %c0_i32_0 = arith.constant 0 : i32
    %c0_i32_1 = arith.constant 0 : i32
    return %arg0, %c0_i32, %c0_i32_0 : i32, i32, i32
  }
  func.func @transform_36(%arg0: i32) -> (i32, i32, i32) {
    %c0_i32 = arith.constant 0 : i32
    %c0_i32_0 = arith.constant 0 : i32
    %c0_i32_1 = arith.constant 0 : i32
    return %arg0, %c0_i32, %c0_i32_0 : i32, i32, i32
  }
}

</mosaic_0001>

<llo_original>
// kernel: _gvae_forward_impl.1
$region0: #{_gvae_forward_impl.1}
  #allocation0 [shape = 'u32[]', space=smem, size = 0x4, offset = 0x4, fixed_abs, tag = 'smem constant byte address 0x4 - core index']
  #allocation1 [shape = 'u32[144,128]{1,0:T(1,128)}', space=vmem, size = 0x12000, scoped, tag = 'internal scratch']
  #allocation2 [shape = 'f32[1,1]{1,0:T(1,128)S(1)}', space=vmem, size = 0x200, scoped, tag = 'scoped memory for _gvae_forward_impl.1']
  %s0 = inlined_call_operand.smem [shape: u32[37], index: -1, kind: input, shape index: {}]
  %s1 = sld [smem:[%s0]]
  %s2 = scalar_lea.smem %s0, 1
  %s3 = sld [smem:[%s2]]
  %s4 = scalar_lea.smem %s0, 2
  %s5 = sld [smem:[%s4]]
  %s6 = scalar_lea.smem %s0, 3
  %s7 = sld [smem:[%s6]]
  %s8 = scalar_lea.smem %s0, 4
  %s9 = sld [smem:[%s8]]
  %s10 = scalar_lea.smem %s0, 5
  %s11 = sld [smem:[%s10]]
  %s12 = scalar_lea.smem %s0, 6
  %s13 = sld [smem:[%s12]]
  %s14 = scalar_lea.smem %s0, 7
  %s15 = sld [smem:[%s14]]
  %s16 = scalar_lea.smem %s0, 8
  %s17 = sld [smem:[%s16]]
  %s18 = scalar_lea.smem %s0, 9
  %s19 = sld [smem:[%s18]]
  %s20 = scalar_lea.smem %s0, 10
  %s21 = sld [smem:[%s20]]
  %s22 = scalar_lea.smem %s0, 11
  %s23 = sld [smem:[%s22]]
  %s24 = scalar_lea.smem %s0, 12
  %s25 = sld [smem:[%s24]]
  %s26 = scalar_lea.smem %s0, 13
  %s27 = sld [smem:[%s26]]
  %s28 = scalar_lea.smem %s0, 14
  %s29 = sld [smem:[%s28]]
  %s30 = scalar_lea.smem %s0, 15
  %s31 = sld [smem:[%s30]]
  %s32 = scalar_lea.smem %s0, 16
  %s33 = sld [smem:[%s32]]
  %s34 = scalar_lea.smem %s0, 17
  %s35 = sld [smem:[%s34]]
  %s36 = scalar_lea.smem %s0, 18
  %s37 = sld [smem:[%s36]]
  %s38 = scalar_lea.smem %s0, 19
  %s39 = sld [smem:[%s38]]
  %s40 = scalar_lea.smem %s0, 20
  %s41 = sld [smem:[%s40]]
  %s42 = scalar_lea.smem %s0, 21
  %s43 = sld [smem:[%s42]]
  %s44 = scalar_lea.smem %s0, 22
  %s45 = sld [smem:[%s44]]
  %s46 = scalar_lea.smem %s0, 23
  %s47 = sld [smem:[%s46]]
  %s48 = scalar_lea.smem %s0, 24
  %s49 = sld [smem:[%s48]]
  %s50 = scalar_lea.smem %s0, 25
  %s51 = sld [smem:[%s50]]
  %s52 = scalar_lea.smem %s0, 26
  %s53 = sld [smem:[%s52]]
  %s54 = scalar_lea.smem %s0, 27
  %s55 = sld [smem:[%s54]]
  %s56 = scalar_lea.smem %s0, 28
  %s57 = sld [smem:[%s56]]
  %s58 = scalar_lea.smem %s0, 29
  %s59 = sld [smem:[%s58]]
  %s60 = scalar_lea.smem %s0, 30
  %s61 = sld [smem:[%s60]]
  %s62 = scalar_lea.smem %s0, 31
  %s63 = sld [smem:[%s62]]
  %s64 = scalar_lea.smem %s0, 32
  %s65 = sld [smem:[%s64]]
  %s66 = scalar_lea.smem %s0, 33
  %s67 = sld [smem:[%s66]]
  %s68 = scalar_lea.smem %s0, 34
  %s69 = sld [smem:[%s68]]
  %s70 = scalar_lea.smem %s0, 35
  %s71 = sld [smem:[%s70]]
  %s72 = scalar_lea.smem %s0, 36
  %s73 = sld [smem:[%s72]]
  %74 = xla_tuple %s67, %s69, %s71, %s73
  %s75 = sld [smem:[#allocation0]]
  $region189: #{_gvae_forward_impl.1} parent=0
    _
  %s77 = ssub.s32 1, %s75
  %s78 = scalar_select 0, %s77, %s75
  %v79 = vstv %s47
  %80 = vst [vmem:[#allocation2] sm:$0x1] %v79
  $region1: #{_gvae_forward_impl.1} parent=0
    #allocation3 [shape = 'u8[1024]{0}', space=vmem, size = 0x400, scoped, tag = 'output window, operand 0']
    #allocation4 [shape = 's32[2]{0}', space=sflag, size = 0x8, scoped, tag = 'scoped memory for _gvae_forward_impl.1']
    #allocation5 [shape = 'u8[1024]{0}', space=vmem, size = 0x400, scoped, tag = 'output window, operand 1']
    #allocation6 [shape = 's32[2]{0}', space=sflag, size = 0x8, scoped, tag = 'scoped memory for _gvae_forward_impl.1']
    #allocation7 [shape = 'u8[1024]{0}', space=vmem, size = 0x400, scoped, tag = 'output window, operand 2']
    #allocation8 [shape = 'u8[1024]{0}', space=vmem, size = 0x400, scoped, tag = 'output window, operand 3']
    #allocation9 [shape = 's32[2]{0}', space=sflag, size = 0x8, scoped, tag = 'scoped memory for _gvae_forward_impl.1']
    %81 = vsyncpa [#allocation4], 0
    %s82 = scalar_lea.sflag [#allocation4], 1
    %83 = vsyncpa %s82, 0
    %84 = vsyncpa [#allocation6], 0
    %s85 = scalar_lea.sflag [#allocation6], 1
    %86 = vsyncpa %s85, 0
    %87 = vsyncpa [#allocation9], 0
    %s88 = scalar_lea.sflag [#allocation9], 1
    %89 = vsyncpa %s88, 0
    loop: start=0, step=1, limit=4
    $region2: #{_gvae_forward_impl.1} parent=1 // loop_pre_header
      _
    $region3: #{_gvae_forward_impl.1} parent=1 // loop_header
      %s91 = sphi 0, %s95
      %p92 = scmp.ge.s32.totalorder %s91, 4
      %s101 = sphi 0, %s103
      %s104 = sphi 0, %s101
      %s105 = sphi 0, %s104
      %s121 = sphi 0, %s105
      %s127 = sphi 0, %s129
      %s130 = sphi 0, %s127
      %s131 = sphi 0, %s130
      %s147 = sphi 0, %s131
      %s153 = sphi 0, %s155
      %s156 = sphi 0, %s153
      %s157 = sphi 0, %s156
      %s173 = sphi 0, %s157
      %s179 = sphi 0, %s181
      %s182 = sphi 0, %s179
      %s183 = sphi 0, %s182
      %s199 = sphi 0, %s183
      %s205 = sphi 0, %s207
      %s208 = sphi 0, %s205
      %s209 = sphi 0, %s208
      %s225 = sphi 0, %s209
      %s231 = sphi 0, %s233
      %s234 = sphi 0, %s231
      %s235 = sphi 0, %s234
      %s251 = sphi 0, %s235
      %s257 = sphi 0, %s259
      %s260 = sphi 0, %s257
      %s261 = sphi 0, %s260
      %s277 = sphi 0, %s261
      %s281 = sphi 0, %s281
      %s283 = sphi 0, %s281
      %s284 = sphi 0, %s283
      %s298 = sphi 0, %s284
      %s302 = sphi 0, %s302
      %s304 = sphi 0, %s302
      %s305 = sphi 0, %s304
      %s319 = sphi 0, %s305
      %s323 = sphi 0, %s323
      %s325 = sphi 0, %s323
      %s326 = sphi 0, %s325
      %s340 = sphi 0, %s326
      %s344 = sphi 0, %s344
      %s346 = sphi 0, %s344
      %s347 = sphi 0, %s346
      %s361 = sphi 0, %s347
      %s365 = sphi 0, %s365
      %s367 = sphi 0, %s365
      %s368 = sphi 0, %s367
      %s382 = sphi 0, %s368
      %s386 = sphi 0, %s386
      %s388 = sphi 0, %s386
      %s389 = sphi 0, %s388
      %s403 = sphi 0, %s389
      %s407 = sphi 0, %s407
      %s409 = sphi 0, %s407
      %s410 = sphi 0, %s409
      %s424 = sphi 0, %s410
      %s428 = sphi 0, %s428
      %s430 = sphi 0, %s428
      %s431 = sphi 0, %s430
      %s445 = sphi 0, %s431
      %s449 = sphi 0, %s449
      %s451 = sphi 0, %s449
      %s452 = sphi 0, %s451
      %s466 = sphi 0, %s452
      %s470 = sphi 0, %s470
      %s472 = sphi 0, %s470
      %s473 = sphi 0, %s472
      %s487 = sphi 0, %s473
      %s491 = sphi 0, %s491
      %s493 = sphi 0, %s491
      %s494 = sphi 0, %s493
      %s508 = sphi 0, %s494
      %s512 = sphi 0, %s512
      %s514 = sphi 0, %s512
      %s515 = sphi 0, %s514
      %s529 = sphi 0, %s515
      %s533 = sphi 0, %s533
      %s535 = sphi 0, %s533
      %s536 = sphi 0, %s535
      %s550 = sphi 0, %s536
      %s554 = sphi 0, %s554
      %s556 = sphi 0, %s554
      %s557 = sphi 0, %s556
      %s571 = sphi 0, %s557
      %s575 = sphi 0, %s575
      %s577 = sphi 0, %s575
      %s578 = sphi 0, %s577
      %s592 = sphi 0, %s578
      %s596 = sphi 0, %s596
      %s598 = sphi 0, %s596
      %s599 = sphi 0, %s598
      %s613 = sphi 0, %s599
      %s617 = sphi 0, %s617
      %s619 = sphi 0, %s617
      %s620 = sphi 0, %s619
      %s634 = sphi 0, %s620
      %s638 = sphi 0, %s638
      %s640 = sphi 0, %s638
      %s641 = sphi 0, %s640
      %s655 = sphi 0, %s641
      %s659 = sphi 0, %s659
      %s661 = sphi 0, %s659
      %s662 = sphi 0, %s661
      %s676 = sphi 0, %s662
      %s680 = sphi 0, %s680
      %s682 = sphi 0, %s680
      %s683 = sphi 0, %s682
      %s697 = sphi 0, %s683
      %s701 = sphi 0, %s701
      %s703 = sphi 0, %s701
      %s704 = sphi 0, %s703
      %s718 = sphi 0, %s704
      %s722 = sphi 0, %s722
      %s724 = sphi 0, %s722
      %s725 = sphi 0, %s724
      %s739 = sphi 0, %s725
      %s743 = sphi 0, %s743
      %s745 = sphi 0, %s743
      %s746 = sphi 0, %s745
      %s760 = sphi 0, %s746
      %s764 = sphi 0, %s764
      %s766 = sphi 0, %s764
      %s767 = sphi 0, %s766
      %s781 = sphi 0, %s767
      %s785 = sphi 0, %s785
      %s787 = sphi 0, %s785
      %s788 = sphi 0, %s787
      %s802 = sphi 0, %s788
      %s806 = sphi 0, %s806
      %s808 = sphi 0, %s806
      %s809 = sphi 0, %s808
      %s823 = sphi 0, %s809
      %s829 = sphi 0, %s831
      %s832 = sphi 0, %s829
      %s833 = sphi 0, %s832
      %s849 = sphi 0, %s833
      %s855 = sphi 0, %s857
      %s858 = sphi 0, %s855
      %s859 = sphi 0, %s858
      %s875 = sphi 0, %s859
      %s881 = sphi 0, %s883
      %s884 = sphi 0, %s881
      %s885 = sphi 0, %s884
      %s901 = sphi 0, %s885
      %s907 = sphi 0, %s909
      %s910 = sphi 0, %s907
      %s911 = sphi 0, %s910
      %s927 = sphi 0, %s911
    $region4: #{_gvae_forward_impl.1} parent=1 // loop_header_branch
      %94 = sbr.rel (%p92) target = $region8
    $region5: #{_gvae_forward_impl.1} parent=1 // loop_body
      %s96 = ssub.s32 %s91, 1
      %s97 = ssub.s32 %s91, 2
      %s98 = sadd.s32 %s91, 1
      %s99 = ssub.s32 %s91, %s98
      %p100 = scmp.eq.s32.totalorder %s99, 0
      %s102 = sadd.s32 %s101, 1
      %s103 = scalar_select %p100, %s101, %s102
      %p106 = pneg %p100
      %p107 = scmp.eq.s32.totalorder %s91, 1
      %p108 = por %p106, %p107
      %p109 = scmp.ne.s32.totalorder %s101, %s104
      %p110 = scmp.eq.s32.totalorder %s91, 0
      %p111 = por %p109, %p110
      %p112 = scmp.ne.s32.totalorder %s101, %s104
      %p113 = scmp.eq.s32.totalorder %s96, 1
      %p114 = por %p112, %p113
      %p115 = scmp.ne.s32.totalorder %s104, %s105
      %p116 = scmp.eq.s32.totalorder %s96, 0
      %p117 = por %p115, %p116
      %p118 = scmp.ne.s32.totalorder %s104, %s105
      %p119 = scmp.eq.s32.totalorder %s97, 1
      %p120 = por %p118, %p119
      %p122 = scmp.ne.s32.totalorder %s105, %s121
      %p123 = scmp.eq.s32.totalorder %s97, 0
      %p124 = por %p122, %p123
      %s125 = ssub.s32 %s91, %s98
      %p126 = scmp.eq.s32.totalorder %s125, 0
      %s128 = sadd.s32 %s127, 1
      %s129 = scalar_select %p126, %s127, %s128
      %p132 = pneg %p126
      %p133 = scmp.eq.s32.totalorder %s91, 1
      %p134 = por %p132, %p133
      %p135 = scmp.ne.s32.totalorder %s127, %s130
      %p136 = scmp.eq.s32.totalorder %s91, 0
      %p137 = por %p135, %p136
      %p138 = scmp.ne.s32.totalorder %s127, %s130
      %p139 = scmp.eq.s32.totalorder %s96, 1
      %p140 = por %p138, %p139
      %p141 = scmp.ne.s32.totalorder %s130, %s131
      %p142 = scmp.eq.s32.totalorder %s96, 0
      %p143 = por %p141, %p142
      %p144 = scmp.ne.s32.totalorder %s130, %s131
      %p145 = scmp.eq.s32.totalorder %s97, 1
      %p146 = por %p144, %p145
      %p148 = scmp.ne.s32.totalorder %s131, %s147
      %p149 = scmp.eq.s32.totalorder %s97, 0
      %p150 = por %p148, %p149
      %s151 = ssub.s32 %s91, %s98
      %p152 = scmp.eq.s32.totalorder %s151, 0
      %s154 = sadd.s32 %s153, 1
      %s155 = scalar_select %p152, %s153, %s154
      %p158 = pneg %p152
      %p159 = scmp.eq.s32.totalorder %s91, 1
      %p160 = por %p158, %p159
      %p161 = scmp.ne.s32.totalorder %s153, %s156
      %p162 = scmp.eq.s32.totalorder %s91, 0
      %p163 = por %p161, %p162
      %p164 = scmp.ne.s32.totalorder %s153, %s156
      %p165 = scmp.eq.s32.totalorder %s96, 1
      %p166 = por %p164, %p165
      %p167 = scmp.ne.s32.totalorder %s156, %s157
      %p168 = scmp.eq.s32.totalorder %s96, 0
      %p169 = por %p167, %p168
      %p170 = scmp.ne.s32.totalorder %s156, %s157
      %p171 = scmp.eq.s32.totalorder %s97, 1
      %p172 = por %p170, %p171
      %p174 = scmp.ne.s32.totalorder %s157, %s173
      %p175 = scmp.eq.s32.totalorder %s97, 0
      %p176 = por %p174, %p175
      %s177 = ssub.s32 %s91, %s98
      %p178 = scmp.eq.s32.totalorder %s177, 0
      %s180 = sadd.s32 %s179, 1
      %s181 = scalar_select %p178, %s179, %s180
      %p184 = pneg %p178
      %p185 = scmp.eq.s32.totalorder %s91, 1
      %p186 = por %p184, %p185
      %p187 = scmp.ne.s32.totalorder %s179, %s182
      %p188 = scmp.eq.s32.totalorder %s91, 0
      %p189 = por %p187, %p188
      %p190 = scmp.ne.s32.totalorder %s179, %s182
      %p191 = scmp.eq.s32.totalorder %s96, 1
      %p192 = por %p190, %p191
      %p193 = scmp.ne.s32.totalorder %s182, %s183
      %p194 = scmp.eq.s32.totalorder %s96, 0
      %p195 = por %p193, %p194
      %p196 = scmp.ne.s32.totalorder %s182, %s183
      %p197 = scmp.eq.s32.totalorder %s97, 1
      %p198 = por %p196, %p197
      %p200 = scmp.ne.s32.totalorder %s183, %s199
      %p201 = scmp.eq.s32.totalorder %s97, 0
      %p202 = por %p200, %p201
      %s203 = ssub.s32 %s91, %s98
      %p204 = scmp.eq.s32.totalorder %s203, 0
      %s206 = sadd.s32 %s205, 1
      %s207 = scalar_select %p204, %s205, %s206
      %p210 = pneg %p204
      %p211 = scmp.eq.s32.totalorder %s91, 1
      %p212 = por %p210, %p211
      %p213 = scmp.ne.s32.totalorder %s205, %s208
      %p214 = scmp.eq.s32.totalorder %s91, 0
      %p215 = por %p213, %p214
      %p216 = scmp.ne.s32.totalorder %s205, %s208
      %p217 = scmp.eq.s32.totalorder %s96, 1
      %p218 = por %p216, %p217
      %p219 = scmp.ne.s32.totalorder %s208, %s209
      %p220 = scmp.eq.s32.totalorder %s96, 0
      %p221 = por %p219, %p220
      %p222 = scmp.ne.s32.totalorder %s208, %s209
      %p223 = scmp.eq.s32.totalorder %s97, 1
      %p224 = por %p222, %p223
      %p226 = scmp.ne.s32.totalorder %s209, %s225
      %p227 = scmp.eq.s32.totalorder %s97, 0
      %p228 = por %p226, %p227
      %s229 = ssub.s32 %s91, %s98
      %p230 = scmp.eq.s32.totalorder %s229, 0
      %s232 = sadd.s32 %s231, 1
      %s233 = scalar_select %p230, %s231, %s232
      %p236 = pneg %p230
      %p237 = scmp.eq.s32.totalorder %s91, 1
      %p238 = por %p236, %p237
      %p239 = scmp.ne.s32.totalorder %s231, %s234
      %p240 = scmp.eq.s32.totalorder %s91, 0
      %p241 = por %p239, %p240
      %p242 = scmp.ne.s32.totalorder %s231, %s234
      %p243 = scmp.eq.s32.totalorder %s96, 1
      %p244 = por %p242, %p243
      %p245 = scmp.ne.s32.totalorder %s234, %s235
      %p246 = scmp.eq.s32.totalorder %s96, 0
      %p247 = por %p245, %p246
      %p248 = scmp.ne.s32.totalorder %s234, %s235
      %p249 = scmp.eq.s32.totalorder %s97, 1
      %p250 = por %p248, %p249
      %p252 = scmp.ne.s32.totalorder %s235, %s251
      %p253 = scmp.eq.s32.totalorder %s97, 0
      %p254 = por %p252, %p253
      %s255 = ssub.s32 %s91, %s98
      %p256 = scmp.eq.s32.totalorder %s255, 0
      %s258 = sadd.s32 %s257, 1
      %s259 = scalar_select %p256, %s257, %s258
      %p262 = pneg %p256
      %p263 = scmp.eq.s32.totalorder %s91, 1
      %p264 = por %p262, %p263
      %p265 = scmp.ne.s32.totalorder %s257, %s260
      %p266 = scmp.eq.s32.totalorder %s91, 0
      %p267 = por %p265, %p266
      %p268 = scmp.ne.s32.totalorder %s257, %s260
      %p269 = scmp.eq.s32.totalorder %s96, 1
      %p270 = por %p268, %p269
      %p271 = scmp.ne.s32.totalorder %s260, %s261
      %p272 = scmp.eq.s32.totalorder %s96, 0
      %p273 = por %p271, %p272
      %p274 = scmp.ne.s32.totalorder %s260, %s261
      %p275 = scmp.eq.s32.totalorder %s97, 1
      %p276 = por %p274, %p275
      %p278 = scmp.ne.s32.totalorder %s261, %s277
      %p279 = scmp.eq.s32.totalorder %s97, 0
      %p280 = por %p278, %p279
      %s282 = sadd.s32 %s281, 1
      %p285 = scmp.eq.s32.totalorder %s91, 1
      %p286 = scmp.ne.s32.totalorder %s281, %s283
      %p287 = scmp.eq.s32.totalorder %s91, 0
      %p288 = por %p286, %p287
      %p289 = scmp.ne.s32.totalorder %s281, %s283
      %p290 = scmp.eq.s32.totalorder %s96, 1
      %p291 = por %p289, %p290
      %p292 = scmp.ne.s32.totalorder %s283, %s284
      %p293 = scmp.eq.s32.totalorder %s96, 0
      %p294 = por %p292, %p293
      %p295 = scmp.ne.s32.totalorder %s283, %s284
      %p296 = scmp.eq.s32.totalorder %s97, 1
      %p297 = por %p295, %p296
      %p299 = scmp.ne.s32.totalorder %s284, %s298
      %p300 = scmp.eq.s32.totalorder %s97, 0
      %p301 = por %p299, %p300
      %s303 = sadd.s32 %s302, 1
      %p306 = scmp.eq.s32.totalorder %s91, 1
      %p307 = scmp.ne.s32.totalorder %s302, %s304
      %p308 = scmp.eq.s32.totalorder %s91, 0
      %p309 = por %p307, %p308
      %p310 = scmp.ne.s32.totalorder %s302, %s304
      %p311 = scmp.eq.s32.totalorder %s96, 1
      %p312 = por %p310, %p311
      %p313 = scmp.ne.s32.totalorder %s304, %s305
      %p314 = scmp.eq.s32.totalorder %s96, 0
      %p315 = por %p313, %p314
      %p316 = scmp.ne.s32.totalorder %s304, %s305
      %p317 = scmp.eq.s32.totalorder %s97, 1
      %p318 = por %p316, %p317
      %p320 = scmp.ne.s32.totalorder %s305, %s319
      %p321 = scmp.eq.s32.totalorder %s97, 0
      %p322 = por %p320, %p321
      %s324 = sadd.s32 %s323, 1
      %p327 = scmp.eq.s32.totalorder %s91, 1
      %p328 = scmp.ne.s32.totalorder %s323, %s325
      %p329 = scmp.eq.s32.totalorder %s91, 0
      %p330 = por %p328, %p329
      %p331 = scmp.ne.s32.totalorder %s323, %s325
      %p332 = scmp.eq.s32.totalorder %s96, 1
      %p333 = por %p331, %p332
      %p334 = scmp.ne.s32.totalorder %s325, %s326
      %p335 = scmp.eq.s32.totalorder %s96, 0
      %p336 = por %p334, %p335
      %p337 = scmp.ne.s32.totalorder %s325, %s326
      %p338 = scmp.eq.s32.totalorder %s97, 1
      %p339 = por %p337, %p338
      %p341 = scmp.ne.s32.totalorder %s326, %s340
      %p342 = scmp.eq.s32.totalorder %s97, 0
      %p343 = por %p341, %p342
      %s345 = sadd.s32 %s344, 1
      %p348 = scmp.eq.s32.totalorder %s91, 1
      %p349 = scmp.ne.s32.totalorder %s344, %s346
      %p350 = scmp.eq.s32.totalorder %s91, 0
      %p351 = por %p349, %p350
      %p352 = scmp.ne.s32.totalorder %s344, %s346
      %p353 = scmp.eq.s32.totalorder %s96, 1
      %p354 = por %p352, %p353
      %p355 = scmp.ne.s32.totalorder %s346, %s347
      %p356 = scmp.eq.s32.totalorder %s96, 0
      %p357 = por %p355, %p356
      %p358 = scmp.ne.s32.totalorder %s346, %s347
      %p359 = scmp.eq.s32.totalorder %s97, 1
      %p360 = por %p358, %p359
      %p362 = scmp.ne.s32.totalorder %s347, %s361
      %p363 = scmp.eq.s32.totalorder %s97, 0
      %p364 = por %p362, %p363
      %s366 = sadd.s32 %s365, 1
      %p369 = scmp.eq.s32.totalorder %s91, 1
      %p370 = scmp.ne.s32.totalorder %s365, %s367
      %p371 = scmp.eq.s32.totalorder %s91, 0
      %p372 = por %p370, %p371
      %p373 = scmp.ne.s32.totalorder %s365, %s367
      %p374 = scmp.eq.s32.totalorder %s96, 1
      %p375 = por %p373, %p374
      %p376 = scmp.ne.s32.totalorder %s367, %s368
      %p377 = scmp.eq.s32.totalorder %s96, 0
      %p378 = por %p376, %p377
      %p379 = scmp.ne.s32.totalorder %s367, %s368
      %p380 = scmp.eq.s32.totalorder %s97, 1
      %p381 = por %p379, %p380
      %p383 = scmp.ne.s32.totalorder %s368, %s382
      %p384 = scmp.eq.s32.totalorder %s97, 0
      %p385 = por %p383, %p384
      %s387 = sadd.s32 %s386, 1
      %p390 = scmp.eq.s32.totalorder %s91, 1
      %p391 = scmp.ne.s32.totalorder %s386, %s388
      %p392 = scmp.eq.s32.totalorder %s91, 0
      %p393 = por %p391, %p392
      %p394 = scmp.ne.s32.totalorder %s386, %s388
      %p395 = scmp.eq.s32.totalorder %s96, 1
      %p396 = por %p394, %p395
      %p397 = scmp.ne.s32.totalorder %s388, %s389
      %p398 = scmp.eq.s32.totalorder %s96, 0
      %p399 = por %p397, %p398
      %p400 = scmp.ne.s32.totalorder %s388, %s389
      %p401 = scmp.eq.s32.totalorder %s97, 1
      %p402 = por %p400, %p401
      %p404 = scmp.ne.s32.totalorder %s389, %s403
      %p405 = scmp.eq.s32.totalorder %s97, 0
      %p406 = por %p404, %p405
      %s408 = sadd.s32 %s407, 1
      %p411 = scmp.eq.s32.totalorder %s91, 1
      %p412 = scmp.ne.s32.totalorder %s407, %s409
      %p413 = scmp.eq.s32.totalorder %s91, 0
      %p414 = por %p412, %p413
      %p415 = scmp.ne.s32.totalorder %s407, %s409
      %p416 = scmp.eq.s32.totalorder %s96, 1
      %p417 = por %p415, %p416
      %p418 = scmp.ne.s32.totalorder %s409, %s410
      %p419 = scmp.eq.s32.totalorder %s96, 0
      %p420 = por %p418, %p419
      %p421 = scmp.ne.s32.totalorder %s409, %s410
      %p422 = scmp.eq.s32.totalorder %s97, 1
      %p423 = por %p421, %p422
      %p425 = scmp.ne.s32.totalorder %s410, %s424
      %p426 = scmp.eq.s32.totalorder %s97, 0
      %p427 = por %p425, %p426
      %s429 = sadd.s32 %s428, 1
      %p432 = scmp.eq.s32.totalorder %s91, 1
      %p433 = scmp.ne.s32.totalorder %s428, %s430
      %p434 = scmp.eq.s32.totalorder %s91, 0
      %p435 = por %p433, %p434
      %p436 = scmp.ne.s32.totalorder %s428, %s430
      %p437 = scmp.eq.s32.totalorder %s96, 1
      %p438 = por %p436, %p437
      %p439 = scmp.ne.s32.totalorder %s430, %s431
      %p440 = scmp.eq.s32.totalorder %s96, 0
      %p441 = por %p439, %p440
      %p442 = scmp.ne.s32.totalorder %s430, %s431
      %p443 = scmp.eq.s32.totalorder %s97, 1
      %p444 = por %p442, %p443
      %p446 = scmp.ne.s32.totalorder %s431, %s445
      %p447 = scmp.eq.s32.totalorder %s97, 0
      %p448 = por %p446, %p447
      %s450 = sadd.s32 %s449, 1
      %p453 = scmp.eq.s32.totalorder %s91, 1
      %p454 = scmp.ne.s32.totalorder %s449, %s451
      %p455 = scmp.eq.s32.totalorder %s91, 0
      %p456 = por %p454, %p455
      %p457 = scmp.ne.s32.totalorder %s449, %s451
      %p458 = scmp.eq.s32.totalorder %s96, 1
      %p459 = por %p457, %p458
      %p460 = scmp.ne.s32.totalorder %s451, %s452
      %p461 = scmp.eq.s32.totalorder %s96, 0
      %p462 = por %p460, %p461
      %p463 = scmp.ne.s32.totalorder %s451, %s452
      %p464 = scmp.eq.s32.totalorder %s97, 1
      %p465 = por %p463, %p464
      %p467 = scmp.ne.s32.totalorder %s452, %s466
      %p468 = scmp.eq.s32.totalorder %s97, 0
      %p469 = por %p467, %p468
      %s471 = sadd.s32 %s470, 1
      %p474 = scmp.eq.s32.totalorder %s91, 1
      %p475 = scmp.ne.s32.totalorder %s470, %s472
      %p476 = scmp.eq.s32.totalorder %s91, 0
      %p477 = por %p475, %p476
      %p478 = scmp.ne.s32.totalorder %s470, %s472
      %p479 = scmp.eq.s32.totalorder %s96, 1
      %p480 = por %p478, %p479
      %p481 = scmp.ne.s32.totalorder %s472, %s473
      %p482 = scmp.eq.s32.totalorder %s96, 0
      %p483 = por %p481, %p482
      %p484 = scmp.ne.s32.totalorder %s472, %s473
      %p485 = scmp.eq.s32.totalorder %s97, 1
      %p486 = por %p484, %p485
      %p488 = scmp.ne.s32.totalorder %s473, %s487
      %p489 = scmp.eq.s32.totalorder %s97, 0
      %p490 = por %p488, %p489
      %s492 = sadd.s32 %s491, 1
      %p495 = scmp.eq.s32.totalorder %s91, 1
      %p496 = scmp.ne.s32.totalorder %s491, %s493
      %p497 = scmp.eq.s32.totalorder %s91, 0
      %p498 = por %p496, %p497
      %p499 = scmp.ne.s32.totalorder %s491, %s493
      %p500 = scmp.eq.s32.totalorder %s96, 1
      %p501 = por %p499, %p500
      %p502 = scmp.ne.s32.totalorder %s493, %s494
      %p503 = scmp.eq.s32.totalorder %s96, 0
      %p504 = por %p502, %p503
      %p505 = scmp.ne.s32.totalorder %s493, %s494
      %p506 = scmp.eq.s32.totalorder %s97, 1
      %p507 = por %p505, %p506
      %p509 = scmp.ne.s32.totalorder %s494, %s508
      %p510 = scmp.eq.s32.totalorder %s97, 0
      %p511 = por %p509, %p510
      %s513 = sadd.s32 %s512, 1
      %p516 = scmp.eq.s32.totalorder %s91, 1
      %p517 = scmp.ne.s32.totalorder %s512, %s514
      %p518 = scmp.eq.s32.totalorder %s91, 0
      %p519 = por %p517, %p518
      %p520 = scmp.ne.s32.totalorder %s512, %s514
      %p521 = scmp.eq.s32.totalorder %s96, 1
      %p522 = por %p520, %p521
      %p523 = scmp.ne.s32.totalorder %s514, %s515
      %p524 = scmp.eq.s32.totalorder %s96, 0
      %p525 = por %p523, %p524
      %p526 = scmp.ne.s32.totalorder %s514, %s515
      %p527 = scmp.eq.s32.totalorder %s97, 1
      %p528 = por %p526, %p527
      %p530 = scmp.ne.s32.totalorder %s515, %s529
      %p531 = scmp.eq.s32.totalorder %s97, 0
      %p532 = por %p530, %p531
      %s534 = sadd.s32 %s533, 1
      %p537 = scmp.eq.s32.totalorder %s91, 1
      %p538 = scmp.ne.s32.totalorder %s533, %s535
      %p539 = scmp.eq.s32.totalorder %s91, 0
      %p540 = por %p538, %p539
      %p541 = scmp.ne.s32.totalorder %s533, %s535
      %p542 = scmp.eq.s32.totalorder %s96, 1
      %p543 = por %p541, %p542
      %p544 = scmp.ne.s32.totalorder %s535, %s536
      %p545 = scmp.eq.s32.totalorder %s96, 0
      %p546 = por %p544, %p545
      %p547 = scmp.ne.s32.totalorder %s535, %s536
      %p548 = scmp.eq.s32.totalorder %s97, 1
      %p549 = por %p547, %p548
      %p551 = scmp.ne.s32.totalorder %s536, %s550
      %p552 = scmp.eq.s32.totalorder %s97, 0
      %p553 = por %p551, %p552
      %s555 = sadd.s32 %s554, 1
      %p558 = scmp.eq.s32.totalorder %s91, 1
      %p559 = scmp.ne.s32.totalorder %s554, %s556
      %p560 = scmp.eq.s32.totalorder %s91, 0
      %p561 = por %p559, %p560
      %p562 = scmp.ne.s32.totalorder %s554, %s556
      %p563 = scmp.eq.s32.totalorder %s96, 1
      %p564 = por %p562, %p563
      %p565 = scmp.ne.s32.totalorder %s556, %s557
      %p566 = scmp.eq.s32.totalorder %s96, 0
      %p567 = por %p565, %p566
      %p568 = scmp.ne.s32.totalorder %s556, %s557
      %p569 = scmp.eq.s32.totalorder %s97, 1
      %p570 = por %p568, %p569
      %p572 = scmp.ne.s32.totalorder %s557, %s571
      %p573 = scmp.eq.s32.totalorder %s97, 0
      %p574 = por %p572, %p573
      %s576 = sadd.s32 %s575, 1
      %p579 = scmp.eq.s32.totalorder %s91, 1
      %p580 = scmp.ne.s32.totalorder %s575, %s577
      %p581 = scmp.eq.s32.totalorder %s91, 0
      %p582 = por %p580, %p581
      %p583 = scmp.ne.s32.totalorder %s575, %s577
      %p584 = scmp.eq.s32.totalorder %s96, 1
      %p585 = por %p583, %p584
      %p586 = scmp.ne.s32.totalorder %s577, %s578
      %p587 = scmp.eq.s32.totalorder %s96, 0
      %p588 = por %p586, %p587
      %p589 = scmp.ne.s32.totalorder %s577, %s578
      %p590 = scmp.eq.s32.totalorder %s97, 1
      %p591 = por %p589, %p590
      %p593 = scmp.ne.s32.totalorder %s578, %s592
      %p594 = scmp.eq.s32.totalorder %s97, 0
      %p595 = por %p593, %p594
      %s597 = sadd.s32 %s596, 1
      %p600 = scmp.eq.s32.totalorder %s91, 1
      %p601 = scmp.ne.s32.totalorder %s596, %s598
      %p602 = scmp.eq.s32.totalorder %s91, 0
      %p603 = por %p601, %p602
      %p604 = scmp.ne.s32.totalorder %s596, %s598
      %p605 = scmp.eq.s32.totalorder %s96, 1
      %p606 = por %p604, %p605
      %p607 = scmp.ne.s32.totalorder %s598, %s599
      %p608 = scmp.eq.s32.totalorder %s96, 0
      %p609 = por %p607, %p608
      %p610 = scmp.ne.s32.totalorder %s598, %s599
      %p611 = scmp.eq.s32.totalorder %s97, 1
      %p612 = por %p610, %p611
      %p614 = scmp.ne.s32.totalorder %s599, %s613
      %p615 = scmp.eq.s32.totalorder %s97, 0
      %p616 = por %p614, %p615
      %s618 = sadd.s32 %s617, 1
      %p621 = scmp.eq.s32.totalorder %s91, 1
      %p622 = scmp.ne.s32.totalorder %s617, %s619
      %p623 = scmp.eq.s32.totalorder %s91, 0
      %p624 = por %p622, %p623
      %p625 = scmp.ne.s32.totalorder %s617, %s619
      %p626 = scmp.eq.s32.totalorder %s96, 1
      %p627 = por %p625, %p626
      %p628 = scmp.ne.s32.totalorder %s619, %s620
      %p629 = scmp.eq.s32.totalorder %s96, 0
      %p630 = por %p628, %p629
      %p631 = scmp.ne.s32.totalorder %s619, %s620
      %p632 = scmp.eq.s32.totalorder %s97, 1
      %p633 = por %p631, %p632
      %p635 = scmp.ne.s32.totalorder %s620, %s634
      %p636 = scmp.eq.s32.totalorder %s97, 0
      %p637 = por %p635, %p636
      %s639 = sadd.s32 %s638, 1
      %p642 = scmp.eq.s32.totalorder %s91, 1
      %p643 = scmp.ne.s32.totalorder %s638, %s640
      %p644 = scmp.eq.s32.totalorder %s91, 0
      %p645 = por %p643, %p644
      %p646 = scmp.ne.s32.totalorder %s638, %s640
      %p647 = scmp.eq.s32.totalorder %s96, 1
      %p648 = por %p646, %p647
      %p649 = scmp.ne.s32.totalorder %s640, %s641
      %p650 = scmp.eq.s32.totalorder %s96, 0
      %p651 = por %p649, %p650
      %p652 = scmp.ne.s32.totalorder %s640, %s641
      %p653 = scmp.eq.s32.totalorder %s97, 1
      %p654 = por %p652, %p653
      %p656 = scmp.ne.s32.totalorder %s641, %s655
      %p657 = scmp.eq.s32.totalorder %s97, 0
      %p658 = por %p656, %p657
      %s660 = sadd.s32 %s659, 1
      %p663 = scmp.eq.s32.totalorder %s91, 1
      %p664 = scmp.ne.s32.totalorder %s659, %s661
      %p665 = scmp.eq.s32.totalorder %s91, 0
      %p666 = por %p664, %p665
      %p667 = scmp.ne.s32.totalorder %s659, %s661
      %p668 = scmp.eq.s32.totalorder %s96, 1
      %p669 = por %p667, %p668
      %p670 = scmp.ne.s32.totalorder %s661, %s662
      %p671 = scmp.eq.s32.totalorder %s96, 0
      %p672 = por %p670, %p671
      %p673 = scmp.ne.s32.totalorder %s661, %s662
      %p674 = scmp.eq.s32.totalorder %s97, 1
      %p675 = por %p673, %p674
      %p677 = scmp.ne.s32.totalorder %s662, %s676
      %p678 = scmp.eq.s32.totalorder %s97, 0
      %p679 = por %p677, %p678
      %s681 = sadd.s32 %s680, 1
      %p684 = scmp.eq.s32.totalorder %s91, 1
      %p685 = scmp.ne.s32.totalorder %s680, %s682
      %p686 = scmp.eq.s32.totalorder %s91, 0
      %p687 = por %p685, %p686
      %p688 = scmp.ne.s32.totalorder %s680, %s682
      %p689 = scmp.eq.s32.totalorder %s96, 1
      %p690 = por %p688, %p689
      %p691 = scmp.ne.s32.totalorder %s682, %s683
      %p692 = scmp.eq.s32.totalorder %s96, 0
      %p693 = por %p691, %p692
      %p694 = scmp.ne.s32.totalorder %s682, %s683
      %p695 = scmp.eq.s32.totalorder %s97, 1
      %p696 = por %p694, %p695
      %p698 = scmp.ne.s32.totalorder %s683, %s697
      %p699 = scmp.eq.s32.totalorder %s97, 0
      %p700 = por %p698, %p699
      %s702 = sadd.s32 %s701, 1
      %p705 = scmp.eq.s32.totalorder %s91, 1
      %p706 = scmp.ne.s32.totalorder %s701, %s703
      %p707 = scmp.eq.s32.totalorder %s91, 0
      %p708 = por %p706, %p707
      %p709 = scmp.ne.s32.totalorder %s701, %s703
      %p710 = scmp.eq.s32.totalorder %s96, 1
      %p711 = por %p709, %p710
      %p712 = scmp.ne.s32.totalorder %s703, %s704
      %p713 = scmp.eq.s32.totalorder %s96, 0
      %p714 = por %p712, %p713
      %p715 = scmp.ne.s32.totalorder %s703, %s704
      %p716 = scmp.eq.s32.totalorder %s97, 1
      %p717 = por %p715, %p716
      %p719 = scmp.ne.s32.totalorder %s704, %s718
      %p720 = scmp.eq.s32.totalorder %s97, 0
      %p721 = por %p719, %p720
      %s723 = sadd.s32 %s722, 1
      %p726 = scmp.eq.s32.totalorder %s91, 1
      %p727 = scmp.ne.s32.totalorder %s722, %s724
      %p728 = scmp.eq.s32.totalorder %s91, 0
      %p729 = por %p727, %p728
      %p730 = scmp.ne.s32.totalorder %s722, %s724
      %p731 = scmp.eq.s32.totalorder %s96, 1
      %p732 = por %p730, %p731
      %p733 = scmp.ne.s32.totalorder %s724, %s725
      %p734 = scmp.eq.s32.totalorder %s96, 0
      %p735 = por %p733, %p734
      %p736 = scmp.ne.s32.totalorder %s724, %s725
      %p737 = scmp.eq.s32.totalorder %s97, 1
      %p738 = por %p736, %p737
      %p740 = scmp.ne.s32.totalorder %s725, %s739
      %p741 = scmp.eq.s32.totalorder %s97, 0
      %p742 = por %p740, %p741
      %s744 = sadd.s32 %s743, 1
      %p747 = scmp.eq.s32.totalorder %s91, 1
      %p748 = scmp.ne.s32.totalorder %s743, %s745
      %p749 = scmp.eq.s32.totalorder %s91, 0
      %p750 = por %p748, %p749
      %p751 = scmp.ne.s32.totalorder %s743, %s745
      %p752 = scmp.eq.s32.totalorder %s96, 1
      %p753 = por %p751, %p752
      %p754 = scmp.ne.s32.totalorder %s745, %s746
      %p755 = scmp.eq.s32.totalorder %s96, 0
      %p756 = por %p754, %p755
      %p757 = scmp.ne.s32.totalorder %s745, %s746
      %p758 = scmp.eq.s32.totalorder %s97, 1
      %p759 = por %p757, %p758
      %p761 = scmp.ne.s32.totalorder %s746, %s760
      %p762 = scmp.eq.s32.totalorder %s97, 0
      %p763 = por %p761, %p762
      %s765 = sadd.s32 %s764, 1
      %p768 = scmp.eq.s32.totalorder %s91, 1
      %p769 = scmp.ne.s32.totalorder %s764, %s766
      %p770 = scmp.eq.s32.totalorder %s91, 0
      %p771 = por %p769, %p770
      %p772 = scmp.ne.s32.totalorder %s764, %s766
      %p773 = scmp.eq.s32.totalorder %s96, 1
      %p774 = por %p772, %p773
      %p775 = scmp.ne.s32.totalorder %s766, %s767
      %p776 = scmp.eq.s32.totalorder %s96, 0
      %p777 = por %p775, %p776
      %p778 = scmp.ne.s32.totalorder %s766, %s767
      %p779 = scmp.eq.s32.totalorder %s97, 1
      %p780 = por %p778, %p779
      %p782 = scmp.ne.s32.totalorder %s767, %s781
      %p783 = scmp.eq.s32.totalorder %s97, 0
      %p784 = por %p782, %p783
      %s786 = sadd.s32 %s785, 1
      %p789 = scmp.eq.s32.totalorder %s91, 1
      %p790 = scmp.ne.s32.totalorder %s785, %s787
      %p791 = scmp.eq.s32.totalorder %s91, 0
      %p792 = por %p790, %p791
      %p793 = scmp.ne.s32.totalorder %s785, %s787
      %p794 = scmp.eq.s32.totalorder %s96, 1
      %p795 = por %p793, %p794
      %p796 = scmp.ne.s32.totalorder %s787, %s788
      %p797 = scmp.eq.s32.totalorder %s96, 0
      %p798 = por %p796, %p797
      %p799 = scmp.ne.s32.totalorder %s787, %s788
      %p800 = scmp.eq.s32.totalorder %s97, 1
      %p801 = por %p799, %p800
      %p803 = scmp.ne.s32.totalorder %s788, %s802
      %p804 = scmp.eq.s32.totalorder %s97, 0
      %p805 = por %p803, %p804
      %s807 = sadd.s32 %s806, 1
      %p810 = scmp.eq.s32.totalorder %s91, 1
      %p811 = scmp.ne.s32.totalorder %s806, %s808
      %p812 = scmp.eq.s32.totalorder %s91, 0
      %p813 = por %p811, %p812
      %p814 = scmp.ne.s32.totalorder %s806, %s808
      %p815 = scmp.eq.s32.totalorder %s96, 1
      %p816 = por %p814, %p815
      %p817 = scmp.ne.s32.totalorder %s808, %s809
      %p818 = scmp.eq.s32.totalorder %s96, 0
      %p819 = por %p817, %p818
      %p820 = scmp.ne.s32.totalorder %s808, %s809
      %p821 = scmp.eq.s32.totalorder %s97, 1
      %p822 = por %p820, %p821
      %p824 = scmp.ne.s32.totalorder %s809, %s823
      %p825 = scmp.eq.s32.totalorder %s97, 0
      %p826 = por %p824, %p825
      %s827 = ssub.s32 %s91, %s98
      %p828 = scmp.eq.s32.totalorder %s827, 0
      %s830 = sadd.s32 %s829, 1
      %s831 = scalar_select %p828, %s829, %s830
      %p834 = pneg %p828
      %p835 = scmp.eq.s32.totalorder %s91, 1
      %p836 = por %p834, %p835
      %p837 = scmp.ne.s32.totalorder %s829, %s832
      %p838 = scmp.eq.s32.totalorder %s91, 0
      %p839 = por %p837, %p838
      %p840 = scmp.ne.s32.totalorder %s829, %s832
      %p841 = scmp.eq.s32.totalorder %s96, 1
      %p842 = por %p840, %p841
      %p843 = scmp.ne.s32.totalorder %s832, %s833
      %p844 = scmp.eq.s32.totalorder %s96, 0
      %p845 = por %p843, %p844
      %p846 = scmp.ne.s32.totalorder %s832, %s833
      %p847 = scmp.eq.s32.totalorder %s97, 1
      %p848 = por %p846, %p847
      %p850 = scmp.ne.s32.totalorder %s833, %s849
      %p851 = scmp.eq.s32.totalorder %s97, 0
      %p852 = por %p850, %p851
      %s853 = ssub.s32 %s91, %s98
      %p854 = scmp.eq.s32.totalorder %s853, 0
      %s856 = sadd.s32 %s855, 1
      %s857 = scalar_select %p854, %s855, %s856
      %p860 = pneg %p854
      %p861 = scmp.eq.s32.totalorder %s91, 1
      %p862 = por %p860, %p861
      %p863 = scmp.ne.s32.totalorder %s855, %s858
      %p864 = scmp.eq.s32.totalorder %s91, 0
      %p865 = por %p863, %p864
      %p866 = scmp.ne.s32.totalorder %s855, %s858
      %p867 = scmp.eq.s32.totalorder %s96, 1
      %p868 = por %p866, %p867
      %p869 = scmp.ne.s32.totalorder %s858, %s859
      %p870 = scmp.eq.s32.totalorder %s96, 0
      %p871 = por %p869, %p870
      %p872 = scmp.ne.s32.totalorder %s858, %s859
      %p873 = scmp.eq.s32.totalorder %s97, 1
      %p874 = por %p872, %p873
      %p876 = scmp.ne.s32.totalorder %s859, %s875
      %p877 = scmp.eq.s32.totalorder %s97, 0
      %p878 = por %p876, %p877
      %s879 = ssub.s32 %s91, %s98
      %p880 = scmp.eq.s32.totalorder %s879, 0
      %s882 = sadd.s32 %s881, 1
      %s883 = scalar_select %p880, %s881, %s882
      %p886 = pneg %p880
      %p887 = scmp.eq.s32.totalorder %s91, 1
      %p888 = por %p886, %p887
      %p889 = scmp.ne.s32.totalorder %s881, %s884
      %p890 = scmp.eq.s32.totalorder %s91, 0
      %p891 = por %p889, %p890
      %p892 = scmp.ne.s32.totalorder %s881, %s884
      %p893 = scmp.eq.s32.totalorder %s96, 1
      %p894 = por %p892, %p893
      %p895 = scmp.ne.s32.totalorder %s884, %s885
      %p896 = scmp.eq.s32.totalorder %s96, 0
      %p897 = por %p895, %p896
      %p898 = scmp.ne.s32.totalorder %s884, %s885
      %p899 = scmp.eq.s32.totalorder %s97, 1
      %p900 = por %p898, %p899
      %p902 = scmp.ne.s32.totalorder %s885, %s901
      %p903 = scmp.eq.s32.totalorder %s97, 0
      %p904 = por %p902, %p903
      %s905 = ssub.s32 %s91, %s98
      %p906 = scmp.eq.s32.totalorder %s905, 0
      %s908 = sadd.s32 %s907, 1
      %s909 = scalar_select %p906, %s907, %s908
      %p912 = pneg %p906
      %p913 = scmp.eq.s32.totalorder %s91, 1
      %p914 = por %p912, %p913
      %p915 = scmp.ne.s32.totalorder %s907, %s910
      %p916 = scmp.eq.s32.totalorder %s91, 0
      %p917 = por %p915, %p916
      %p918 = scmp.ne.s32.totalorder %s907, %s910
      %p919 = scmp.eq.s32.totalorder %s96, 1
      %p920 = por %p918, %p919
      %p921 = scmp.ne.s32.totalorder %s910, %s911
      %p922 = scmp.eq.s32.totalorder %s96, 0
      %p923 = por %p921, %p922
      %p924 = scmp.ne.s32.totalorder %s910, %s911
      %p925 = scmp.eq.s32.totalorder %s97, 1
      %p926 = por %p924, %p925
      %p928 = scmp.ne.s32.totalorder %s911, %s927
      %p929 = scmp.eq.s32.totalorder %s97, 0
      %p930 = por %p928, %p929
      %p931 = scmp.le.s32.totalorder 1, %s91
      %p932 = scmp.lt.s32.totalorder %s91, 3
      %p933 = pnand %p931, %p932
      %p934 = pneg %p933
      // Predicated region
      $region9: #{_gvae_forward_impl.1} parent=5 // pred_check
        _
      $region10: #{_gvae_forward_impl.1} parent=5 // pred_check_branch
        %936 = sbr.rel (%p933) target = $region12
      $region11: #{_gvae_forward_impl.1} parent=5 // pred_region
        %s937 = ssub.s32 %s91, 1
        // Predicated region
        $region13: #{_gvae_forward_impl.1} parent=11 // pred_check
          %p938 = pneg %p294
        $region14: #{_gvae_forward_impl.1} parent=11 // pred_check_branch
          %940 = sbr.rel (%p938) target = $region16
        $region15: #{_gvae_forward_impl.1} parent=11 // pred_region
          _
        $region16: #{_gvae_forward_impl.1} parent=11 // pred_fallthru
          _
        // Predicated region
        $region17: #{_gvae_forward_impl.1} parent=11 // pred_check
          %p941 = pneg %p315
        $region18: #{_gvae_forward_impl.1} parent=11 // pred_check_branch
          %943 = sbr.rel (%p941) target = $region20
        $region19: #{_gvae_forward_impl.1} parent=11 // pred_region
          _
        $region20: #{_gvae_forward_impl.1} parent=11 // pred_fallthru
          _
        // Predicated region
        $region21: #{_gvae_forward_impl.1} parent=11 // pred_check
          %p944 = pneg %p336
        $region22: #{_gvae_forward_impl.1} parent=11 // pred_check_branch
          %946 = sbr.rel (%p944) target = $region24
        $region23: #{_gvae_forward_impl.1} parent=11 // pred_region
          _
        $region24: #{_gvae_forward_impl.1} parent=11 // pred_fallthru
          _
        // Predicated region
        $region25: #{_gvae_forward_impl.1} parent=11 // pred_check
          %p947 = pneg %p357
        $region26: #{_gvae_forward_impl.1} parent=11 // pred_check_branch
          %949 = sbr.rel (%p947) target = $region28
        $region27: #{_gvae_forward_impl.1} parent=11 // pred_region
          _
        $region28: #{_gvae_forward_impl.1} parent=11 // pred_fallthru
          _
        // Predicated region
        $region29: #{_gvae_forward_impl.1} parent=11 // pred_check
          %p950 = pneg %p378
        $region30: #{_gvae_forward_impl.1} parent=11 // pred_check_branch
          %952 = sbr.rel (%p950) target = $region32
        $region31: #{_gvae_forward_impl.1} parent=11 // pred_region
          _
        $region32: #{_gvae_forward_impl.1} parent=11 // pred_fallthru
          _
        // Predicated region
        $region33: #{_gvae_forward_impl.1} parent=11 // pred_check
          %p953 = pneg %p399
        $region34: #{_gvae_forward_impl.1} parent=11 // pred_check_branch
          %955 = sbr.rel (%p953) target = $region36
        $region35: #{_gvae_forward_impl.1} parent=11 // pred_region
          _
        $region36: #{_gvae_forward_impl.1} parent=11 // pred_fallthru
          _
        // Predicated region
        $region37: #{_gvae_forward_impl.1} parent=11 // pred_check
          %p956 = pneg %p420
        $region38: #{_gvae_forward_impl.1} parent=11 // pred_check_branch
          %958 = sbr.rel (%p956) target = $region40
        $region39: #{_gvae_forward_impl.1} parent=11 // pred_region
          _
        $region40: #{_gvae_forward_impl.1} parent=11 // pred_fallthru
          _
        // Predicated region
        $region41: #{_gvae_forward_impl.1} parent=11 // pred_check
          %p959 = pneg %p441
        $region42: #{_gvae_forward_impl.1} parent=11 // pred_check_branch
          %961 = sbr.rel (%p959) target = $region44
        $region43: #{_gvae_forward_impl.1} parent=11 // pred_region
          _
        $region44: #{_gvae_forward_impl.1} parent=11 // pred_fallthru
          _
        // Predicated region
        $region45: #{_gvae_forward_impl.1} parent=11 // pred_check
          %p962 = pneg %p462
        $region46: #{_gvae_forward_impl.1} parent=11 // pred_check_branch
          %964 = sbr.rel (%p962) target = $region48
        $region47: #{_gvae_forward_impl.1} parent=11 // pred_region
          _
        $region48: #{_gvae_forward_impl.1} parent=11 // pred_fallthru
          _
        // Predicated region
        $region49: #{_gvae_forward_impl.1} parent=11 // pred_check
          %p965 = pneg %p483
        $region50: #{_gvae_forward_impl.1} parent=11 // pred_check_branch
          %967 = sbr.rel (%p965) target = $region52
        $region51: #{_gvae_forward_impl.1} parent=11 // pred_region
          _
        $region52: #{_gvae_forward_impl.1} parent=11 // pred_fallthru
          _
        // Predicated region
        $region53: #{_gvae_forward_impl.1} parent=11 // pred_check
          %p968 = pneg %p504
        $region54: #{_gvae_forward_impl.1} parent=11 // pred_check_branch
          %970 = sbr.rel (%p968) target = $region56
        $region55: #{_gvae_forward_impl.1} parent=11 // pred_region
          _
        $region56: #{_gvae_forward_impl.1} parent=11 // pred_fallthru
          _
        // Predicated region
        $region57: #{_gvae_forward_impl.1} parent=11 // pred_check
          %p971 = pneg %p525
        $region58: #{_gvae_forward_impl.1} parent=11 // pred_check_branch
          %973 = sbr.rel (%p971) target = $region60
        $region59: #{_gvae_forward_impl.1} parent=11 // pred_region
          _
        $region60: #{_gvae_forward_impl.1} parent=11 // pred_fallthru
          _
        // Predicated region
        $region61: #{_gvae_forward_impl.1} parent=11 // pred_check
          %p974 = pneg %p546
        $region62: #{_gvae_forward_impl.1} parent=11 // pred_check_branch
          %976 = sbr.rel (%p974) target = $region64
        $region63: #{_gvae_forward_impl.1} parent=11 // pred_region
          _
        $region64: #{_gvae_forward_impl.1} parent=11 // pred_fallthru
          _
        // Predicated region
        $region65: #{_gvae_forward_impl.1} parent=11 // pred_check
          %p977 = pneg %p567
        $region66: #{_gvae_forward_impl.1} parent=11 // pred_check_branch
          %979 = sbr.rel (%p977) target = $region68
        $region67: #{_gvae_forward_impl.1} parent=11 // pred_region
          _
        $region68: #{_gvae_forward_impl.1} parent=11 // pred_fallthru
          _
        // Predicated region
        $region69: #{_gvae_forward_impl.1} parent=11 // pred_check
          %p980 = pneg %p588
        $region70: #{_gvae_forward_impl.1} parent=11 // pred_check_branch
          %982 = sbr.rel (%p980) target = $region72
        $region71: #{_gvae_forward_impl.1} parent=11 // pred_region
          _
        $region72: #{_gvae_forward_impl.1} parent=11 // pred_fallthru
          _
        // Predicated region
        $region73: #{_gvae_forward_impl.1} parent=11 // pred_check
          %p983 = pneg %p609
        $region74: #{_gvae_forward_impl.1} parent=11 // pred_check_branch
          %985 = sbr.rel (%p983) target = $region76
        $region75: #{_gvae_forward_impl.1} parent=11 // pred_region
          _
        $region76: #{_gvae_forward_impl.1} parent=11 // pred_fallthru
          _
        // Predicated region
        $region77: #{_gvae_forward_impl.1} parent=11 // pred_check
          %p986 = pneg %p630
        $region78: #{_gvae_forward_impl.1} parent=11 // pred_check_branch
          %988 = sbr.rel (%p986) target = $region80
        $region79: #{_gvae_forward_impl.1} parent=11 // pred_region
          _
        $region80: #{_gvae_forward_impl.1} parent=11 // pred_fallthru
          _
        // Predicated region
        $region81: #{_gvae_forward_impl.1} parent=11 // pred_check
          %p989 = pneg %p651
        $region82: #{_gvae_forward_impl.1} parent=11 // pred_check_branch
          %991 = sbr.rel (%p989) target = $region84
        $region83: #{_gvae_forward_impl.1} parent=11 // pred_region
          _
        $region84: #{_gvae_forward_impl.1} parent=11 // pred_fallthru
          _
        // Predicated region
        $region85: #{_gvae_forward_impl.1} parent=11 // pred_check
          %p992 = pneg %p672
        $region86: #{_gvae_forward_impl.1} parent=11 // pred_check_branch
          %994 = sbr.rel (%p992) target = $region88
        $region87: #{_gvae_forward_impl.1} parent=11 // pred_region
          _
        $region88: #{_gvae_forward_impl.1} parent=11 // pred_fallthru
          _
        // Predicated region
        $region89: #{_gvae_forward_impl.1} parent=11 // pred_check
          %p995 = pneg %p693
        $region90: #{_gvae_forward_impl.1} parent=11 // pred_check_branch
          %997 = sbr.rel (%p995) target = $region92
        $region91: #{_gvae_forward_impl.1} parent=11 // pred_region
          _
        $region92: #{_gvae_forward_impl.1} parent=11 // pred_fallthru
          _
        // Predicated region
        $region93: #{_gvae_forward_impl.1} parent=11 // pred_check
          %p998 = pneg %p714
        $region94: #{_gvae_forward_impl.1} parent=11 // pred_check_branch
          %1000 = sbr.rel (%p998) target = $region96
        $region95: #{_gvae_forward_impl.1} parent=11 // pred_region
          _
        $region96: #{_gvae_forward_impl.1} parent=11 // pred_fallthru
          _
        // Predicated region
        $region97: #{_gvae_forward_impl.1} parent=11 // pred_check
          %p1001 = pneg %p735
        $region98: #{_gvae_forward_impl.1} parent=11 // pred_check_branch
          %1003 = sbr.rel (%p1001) target = $region100
        $region99: #{_gvae_forward_impl.1} parent=11 // pred_region
          _
        $region100: #{_gvae_forward_impl.1} parent=11 // pred_fallthru
          _
        // Predicated region
        $region101: #{_gvae_forward_impl.1} parent=11 // pred_check
          %p1004 = pneg %p756
        $region102: #{_gvae_forward_impl.1} parent=11 // pred_check_branch
          %1006 = sbr.rel (%p1004) target = $region104
        $region103: #{_gvae_forward_impl.1} parent=11 // pred_region
          _
        $region104: #{_gvae_forward_impl.1} parent=11 // pred_fallthru
          _
        // Predicated region
        $region105: #{_gvae_forward_impl.1} parent=11 // pred_check
          %p1007 = pneg %p777
        $region106: #{_gvae_forward_impl.1} parent=11 // pred_check_branch
          %1009 = sbr.rel (%p1007) target = $region108
        $region107: #{_gvae_forward_impl.1} parent=11 // pred_region
          _
        $region108: #{_gvae_forward_impl.1} parent=11 // pred_fallthru
          _
        // Predicated region
        $region109: #{_gvae_forward_impl.1} parent=11 // pred_check
          %p1010 = pneg %p798
        $region110: #{_gvae_forward_impl.1} parent=11 // pred_check_branch
          %1012 = sbr.rel (%p1010) target = $region112
        $region111: #{_gvae_forward_impl.1} parent=11 // pred_region
          _
        $region112: #{_gvae_forward_impl.1} parent=11 // pred_fallthru
          _
        // Predicated region
        $region113: #{_gvae_forward_impl.1} parent=11 // pred_check
          %p1013 = pneg %p819
        $region114: #{_gvae_forward_impl.1} parent=11 // pred_check_branch
          %1015 = sbr.rel (%p1013) target = $region116
        $region115: #{_gvae_forward_impl.1} parent=11 // pred_region
          _
        $region116: #{_gvae_forward_impl.1} parent=11 // pred_fallthru
          _
      $region12: #{_gvae_forward_impl.1} parent=5 // pred_fallthru
        _
      %p1016 = scmp.lt.s32.totalorder %s91, 2
      // Predicated region
      $region117: #{_gvae_forward_impl.1} parent=5 // pred_check
        %p1017 = pneg %p1016
      $region118: #{_gvae_forward_impl.1} parent=5 // pred_check_branch
        %1019 = sbr.rel (%p1017) target = $region120
      $region119: #{_gvae_forward_impl.1} parent=5 // pred_region
        // Predicated region
        $region121: #{_gvae_forward_impl.1} parent=119 // pred_check
          %p1020 = pneg %p111
        $region122: #{_gvae_forward_impl.1} parent=119 // pred_check_branch
          %1022 = sbr.rel (%p1020) target = $region124
        $region123: #{_gvae_forward_impl.1} parent=119 // pred_region
          %p1023 = scmp.lt.s32.totalorder %s91, 1
          %s1024 = scalar_select %p1023, %s91, 1
          %s1025 = smul.addr %s1024, 15
          %s1026 = smul.addr %s1025, 8
          %s1027 = scalar_lea.vmem %s1, %s1026
        $region124: #{_gvae_forward_impl.1} parent=119 // pred_fallthru
          _
        // Predicated region
        $region125: #{_gvae_forward_impl.1} parent=119 // pred_check
          %p1028 = pneg %p137
        $region126: #{_gvae_forward_impl.1} parent=119 // pred_check_branch
          %1030 = sbr.rel (%p1028) target = $region128
        $region127: #{_gvae_forward_impl.1} parent=119 // pred_region
          %p1031 = scmp.lt.s32.totalorder %s91, 1
          %s1032 = scalar_select %p1031, %s91, 1
          %s1033 = smul.addr %s1032, 15
          %s1034 = smul.addr %s1033, 8
          %s1035 = scalar_lea.vmem %s3, %s1034
        $region128: #{_gvae_forward_impl.1} parent=119 // pred_fallthru
          _
        // Predicated region
        $region129: #{_gvae_forward_impl.1} parent=119 // pred_check
          %p1036 = pneg %p163
        $region130: #{_gvae_forward_impl.1} parent=119 // pred_check_branch
          %1038 = sbr.rel (%p1036) target = $region132
        $region131: #{_gvae_forward_impl.1} parent=119 // pred_region
          %p1039 = scmp.lt.s32.totalorder %s91, 1
          %s1040 = scalar_select %p1039, %s91, 1
          %s1041 = smul.addr %s1040, 15
          %s1042 = smul.addr %s1041, 8
          %s1043 = scalar_lea.vmem %s5, %s1042
        $region132: #{_gvae_forward_impl.1} parent=119 // pred_fallthru
          _
        // Predicated region
        $region133: #{_gvae_forward_impl.1} parent=119 // pred_check
          %p1044 = pneg %p189
        $region134: #{_gvae_forward_impl.1} parent=119 // pred_check_branch
          %1046 = sbr.rel (%p1044) target = $region136
        $region135: #{_gvae_forward_impl.1} parent=119 // pred_region
          %p1047 = scmp.lt.s32.totalorder %s91, 1
          %s1048 = scalar_select %p1047, %s91, 1
          %s1049 = smul.addr %s1048, 15
          %s1050 = smul.addr %s1049, 8
          %s1051 = scalar_lea.vmem %s7, %s1050
        $region136: #{_gvae_forward_impl.1} parent=119 // pred_fallthru
          _
        // Predicated region
        $region137: #{_gvae_forward_impl.1} parent=119 // pred_check
          %p1052 = pneg %p215
        $region138: #{_gvae_forward_impl.1} parent=119 // pred_check_branch
          %1054 = sbr.rel (%p1052) target = $region140
        $region139: #{_gvae_forward_impl.1} parent=119 // pred_region
          %p1055 = scmp.lt.s32.totalorder %s91, 1
          %s1056 = scalar_select %p1055, %s91, 1
          %s1057 = smul.addr %s1056, 15
          %s1058 = smul.addr %s1057, 4
          %s1059 = scalar_lea.vmem %s9, %s1058
        $region140: #{_gvae_forward_impl.1} parent=119 // pred_fallthru
          _
        // Predicated region
        $region141: #{_gvae_forward_impl.1} parent=119 // pred_check
          %p1060 = pneg %p241
        $region142: #{_gvae_forward_impl.1} parent=119 // pred_check_branch
          %1062 = sbr.rel (%p1060) target = $region144
        $region143: #{_gvae_forward_impl.1} parent=119 // pred_region
          %p1063 = scmp.lt.s32.totalorder %s91, 1
          %s1064 = scalar_select %p1063, %s91, 1
          %s1065 = smul.addr %s1064, 15
          %s1066 = smul.addr %s1065, 4
          %s1067 = scalar_lea.vmem %s11, %s1066
        $region144: #{_gvae_forward_impl.1} parent=119 // pred_fallthru
          _
        // Predicated region
        $region145: #{_gvae_forward_impl.1} parent=119 // pred_check
          %p1068 = pneg %p267
        $region146: #{_gvae_forward_impl.1} parent=119 // pred_check_branch
          %1070 = sbr.rel (%p1068) target = $region148
        $region147: #{_gvae_forward_impl.1} parent=119 // pred_region
          %p1071 = scmp.lt.s32.totalorder %s91, 1
          %s1072 = scalar_select %p1071, %s91, 1
          %s1073 = smul.addr %s1072, 30
          %s1074 = smul.addr %s1073, 4
          %s1075 = scalar_lea.vmem %s13, %s1074
        $region148: #{_gvae_forward_impl.1} parent=119 // pred_fallthru
          _
      $region120: #{_gvae_forward_impl.1} parent=5 // pred_fallthru
        _
      %p1076 = scmp.le.s32.totalorder 1, %s91
      %p1077 = scmp.lt.s32.totalorder %s91, 3
      %p1078 = pnand %p1076, %p1077
      %p1079 = pneg %p1078
      // Predicated region
      $region149: #{_gvae_forward_impl.1} parent=5 // pred_check
        _
      $region150: #{_gvae_forward_impl.1} parent=5 // pred_check_branch
        %1081 = sbr.rel (%p1078) target = $region152
      $region151: #{_gvae_forward_impl.1} parent=5 // pred_region
        %s1082 = ssub.s32 %s91, 1
        %p1083 = scmp.lt.s32.totalorder %s96, 1
        %s1084 = scalar_select %p1083, %s96, 1
        %s1085 = smul.addr %s1084, 15
        %s1086 = smul.addr %s1085, 8
        %s1087 = scalar_lea.vmem %s1, %s1086
        %p1088 = pneg %p117
        %p1089 = pneg %p114
        %p1090 = scmp.lt.s32.totalorder %s96, 1
        %s1091 = scalar_select %p1090, %s96, 1
        %s1092 = smul.addr %s1091, 15
        %s1093 = smul.addr %s1092, 8
        %s1094 = scalar_lea.vmem %s3, %s1093
        %p1095 = pneg %p143
        %p1096 = pneg %p140
        %p1097 = scmp.lt.s32.totalorder %s96, 1
        %s1098 = scalar_select %p1097, %s96, 1
        %s1099 = smul.addr %s1098, 15
        %s1100 = smul.addr %s1099, 8
        %s1101 = scalar_lea.vmem %s5, %s1100
        %p1102 = pneg %p169
        %p1103 = pneg %p166
        %p1104 = scmp.lt.s32.totalorder %s96, 1
        %s1105 = scalar_select %p1104, %s96, 1
        %s1106 = smul.addr %s1105, 15
        %s1107 = smul.addr %s1106, 8
        %s1108 = scalar_lea.vmem %s7, %s1107
        %p1109 = pneg %p195
        %p1110 = pneg %p192
        %p1111 = scmp.lt.s32.totalorder %s96, 1
        %s1112 = scalar_select %p1111, %s96, 1
        %s1113 = smul.addr %s1112, 15
        %s1114 = smul.addr %s1113, 4
        %s1115 = scalar_lea.vmem %s9, %s1114
        %p1116 = pneg %p221
        %p1117 = pneg %p218
        %p1118 = scmp.lt.s32.totalorder %s96, 1
        %s1119 = scalar_select %p1118, %s96, 1
        %s1120 = smul.addr %s1119, 15
        %s1121 = smul.addr %s1120, 4
        %s1122 = scalar_lea.vmem %s11, %s1121
        %p1123 = pneg %p247
        %p1124 = pneg %p244
        %p1125 = scmp.lt.s32.totalorder %s96, 1
        %s1126 = scalar_select %p1125, %s96, 1
        %s1127 = smul.addr %s1126, 30
        %s1128 = smul.addr %s1127, 4
        %s1129 = scalar_lea.vmem %s13, %s1128
        %p1130 = pneg %p273
        %p1131 = pneg %p270
        %p1132 = pneg %p294
        %p1133 = pneg %p291
        %p1134 = pneg %p315
        %p1135 = pneg %p312
        %p1136 = pneg %p336
        %p1137 = pneg %p333
        %p1138 = pneg %p357
        %p1139 = pneg %p354
        %p1140 = pneg %p378
        %p1141 = pneg %p375
        %p1142 = pneg %p399
        %p1143 = pneg %p396
        %p1144 = pneg %p420
        %p1145 = pneg %p417
        %p1146 = pneg %p441
        %p1147 = pneg %p438
        %p1148 = pneg %p462
        %p1149 = pneg %p459
        %p1150 = pneg %p483
        %p1151 = pneg %p480
        %p1152 = pneg %p504
        %p1153 = pneg %p501
        %p1154 = pneg %p525
        %p1155 = pneg %p522
        %p1156 = pneg %p546
        %p1157 = pneg %p543
        %p1158 = pneg %p567
        %p1159 = pneg %p564
        %p1160 = pneg %p588
        %p1161 = pneg %p585
        %p1162 = pneg %p609
        %p1163 = pneg %p606
        %p1164 = pneg %p630
        %p1165 = pneg %p627
        %p1166 = pneg %p651
        %p1167 = pneg %p648
        %p1168 = pneg %p672
        %p1169 = pneg %p669
        %p1170 = pneg %p693
        %p1171 = pneg %p690
        %p1172 = pneg %p714
        %p1173 = pneg %p711
        %p1174 = pneg %p735
        %p1175 = pneg %p732
        %p1176 = pneg %p756
        %p1177 = pneg %p753
        %p1178 = pneg %p777
        %p1179 = pneg %p774
        %p1180 = pneg %p798
        %p1181 = pneg %p795
        %p1182 = pneg %p819
        %p1183 = pneg %p816
        %p1184 = pneg %p845
        %p1185 = pneg %p842
        %s1186 = sand.u32 %s832, 1
        %s1187 = scalar_lea.sflag [#allocation4], %s1186
        %s1188 = sand.u32 %s832, 1
        %s1189 = scalar_lea.vmem [#allocation3], %s1188
        %p1190 = pneg %p871
        %p1191 = pneg %p868
        %s1192 = sand.u32 %s96, 1
        %s1193 = scalar_lea.sflag [#allocation6], %s1192
        %s1194 = sand.u32 %s858, 1
        %s1195 = scalar_lea.vmem [#allocation5], %s1194
        %p1196 = pneg %p897
        %p1197 = pneg %p894
        %s1198 = sand.u32 %s96, 1
        %s1199 = scalar_lea.sflag [#allocation6], %s1198
        %s1200 = sand.u32 %s884, 1
        %s1201 = scalar_lea.vmem [#allocation7], %s1200
        %p1202 = pneg %p923
        %p1203 = pneg %p920
        %s1204 = sand.u32 %s910, 1
        %s1205 = scalar_lea.sflag [#allocation9], %s1204
        %s1206 = sand.u32 %s910, 1
        %s1207 = scalar_lea.vmem [#allocation8], %s1206
        %p1208 = scmp.lt.s32.totalorder %s96, 1
        %s1209 = scalar_select %p1208, %s96, 1
        %s1210 = smul.addr %s1209, 15
        %s1211 = smul.addr %s1210, 8
        %s1212 = scalar_lea.vmem %s1, %s1211
        %p1213 = scmp.lt.s32.totalorder %s96, 1
        %s1214 = scalar_select %p1213, %s96, 1
        %s1215 = smul.addr %s1214, 15
        %s1216 = smul.addr %s1215, 8
        %s1217 = scalar_lea.vmem %s3, %s1216
        %p1218 = scmp.lt.s32.totalorder %s96, 1
        %s1219 = scalar_select %p1218, %s96, 1
        %s1220 = smul.addr %s1219, 15
        %s1221 = smul.addr %s1220, 8
        %s1222 = scalar_lea.vmem %s5, %s1221
        %p1223 = scmp.lt.s32.totalorder %s96, 1
        %s1224 = scalar_select %p1223, %s96, 1
        %s1225 = smul.addr %s1224, 15
        %s1226 = smul.addr %s1225, 8
        %s1227 = scalar_lea.vmem %s7, %s1226
        %p1228 = scmp.lt.s32.totalorder %s96, 1
        %s1229 = scalar_select %p1228, %s96, 1
        %s1230 = smul.addr %s1229, 15
        %s1231 = smul.addr %s1230, 4
        %s1232 = scalar_lea.vmem %s9, %s1231
        %p1233 = scmp.lt.s32.totalorder %s96, 1
        %s1234 = scalar_select %p1233, %s96, 1
        %s1235 = smul.addr %s1234, 15
        %s1236 = smul.addr %s1235, 4
        %s1237 = scalar_lea.vmem %s11, %s1236
        %p1238 = scmp.lt.s32.totalorder %s96, 1
        %s1239 = scalar_select %p1238, %s96, 1
        %s1240 = smul.addr %s1239, 30
        %s1241 = smul.addr %s1240, 4
        %s1242 = scalar_lea.vmem %s13, %s1241
        %v1243 = vld [vmem:[%s1212] sm:$0xff]
        %v1244 = vld [vmem:[%s1212 + $0x8] sm:$0xff]
        %v1245 = vld [vmem:[%s1212 + $0x10] sm:$0xff]
        %v1246 = vld [vmem:[%s1212 + $0x18] sm:$0xff]
        %v1247 = vld [vmem:[%s1212 + $0x20] sm:$0xff]
        %v1248 = vld [vmem:[%s1212 + $0x28] sm:$0xff]
        %v1249 = vld [vmem:[%s1212 + $0x30] sm:$0xff]
        %v1250 = vld [vmem:[%s1212 + $0x38] sm:$0xff]
        %v1251 = vld [vmem:[%s1212 + $0x40] sm:$0xff]
        %v1252 = vld [vmem:[%s1212 + $0x48] sm:$0xff]
        %v1253 = vld [vmem:[%s1212 + $0x50] sm:$0xff]
        %v1254 = vld [vmem:[%s1212 + $0x58] sm:$0xff]
        %v1255 = vld [vmem:[%s1212 + $0x60] sm:$0xff]
        %v1256 = vld [vmem:[%s1212 + $0x68] sm:$0xff]
        %v1257 = vld [vmem:[%s1212 + $0x70] sm:$0xf]
        %vm1258 = vcmask 949248
        %v1259 = vsel %vm1258, %v1243, 0.0
        %v1260 = vsel %vm1258, %v1244, 0.0
        %v1261 = vadd.f32 %v1259, %v1260
        %v1262 = vsel %vm1258, %v1245, 0.0
        %v1263 = vadd.f32 %v1261, %v1262
        %v1264 = vsel %vm1258, %v1246, 0.0
        %v1265 = vadd.f32 %v1263, %v1264
        %v1266 = vsel %vm1258, %v1247, 0.0
        %v1267 = vadd.f32 %v1265, %v1266
        %v1268 = vsel %vm1258, %v1248, 0.0
        %v1269 = vadd.f32 %v1267, %v1268
        %v1270 = vsel %vm1258, %v1249, 0.0
        %v1271 = vadd.f32 %v1269, %v1270
        %v1272 = vsel %vm1258, %v1250, 0.0
        %v1273 = vadd.f32 %v1271, %v1272
        %v1274 = vsel %vm1258, %v1251, 0.0
        %v1275 = vadd.f32 %v1273, %v1274
        %v1276 = vsel %vm1258, %v1252, 0.0
        %v1277 = vadd.f32 %v1275, %v1276
        %v1278 = vsel %vm1258, %v1253, 0.0
        %v1279 = vadd.f32 %v1277, %v1278
        %v1280 = vsel %vm1258, %v1254, 0.0
        %v1281 = vadd.f32 %v1279, %v1280
        %v1282 = vsel %vm1258, %v1255, 0.0
        %v1283 = vadd.f32 %v1281, %v1282
        %v1284 = vsel %vm1258, %v1256, 0.0
        %v1285 = vadd.f32 %v1283, %v1284
        %vm1286 = vcmask 945152
        %v1287 = vsel %vm1286, %v1257, 0.0
        %v1288 = vadd.f32 %v1285, %v1287
        %v1289 = vrot.slane %v1288, 4
        %v1290 = vadd.f32 %v1288, %v1289
        %v1291 = vrot.slane %v1290, 2
        %v1292 = vadd.f32 %v1290, %v1291
        %v1293 = vrot.slane %v1292, 1
        %v1294 = vadd.f32 %v1292, %v1293
        %v1295 = vld [vmem:[%s1217] sm:$0xff]
        %v1296 = vld [vmem:[%s1217 + $0x8] sm:$0xff]
        %v1297 = vld [vmem:[%s1217 + $0x10] sm:$0xff]
        %v1298 = vld [vmem:[%s1217 + $0x18] sm:$0xff]
        %v1299 = vld [vmem:[%s1217 + $0x20] sm:$0xff]
        %v1300 = vld [vmem:[%s1217 + $0x28] sm:$0xff]
        %v1301 = vld [vmem:[%s1217 + $0x30] sm:$0xff]
        %v1302 = vld [vmem:[%s1217 + $0x38] sm:$0xff]
        %v1303 = vld [vmem:[%s1217 + $0x40] sm:$0xff]
        %v1304 = vld [vmem:[%s1217 + $0x48] sm:$0xff]
        %v1305 = vld [vmem:[%s1217 + $0x50] sm:$0xff]
        %v1306 = vld [vmem:[%s1217 + $0x58] sm:$0xff]
        %v1307 = vld [vmem:[%s1217 + $0x60] sm:$0xff]
        %v1308 = vld [vmem:[%s1217 + $0x68] sm:$0xff]
        %v1309 = vld [vmem:[%s1217 + $0x70] sm:$0xf]
        %v1310 = vsel %vm1258, %v1295, 0.0
        %v1311 = vsel %vm1258, %v1296, 0.0
        %v1312 = vadd.f32 %v1310, %v1311
        %v1313 = vsel %vm1258, %v1297, 0.0
        %v1314 = vadd.f32 %v1312, %v1313
        %v1315 = vsel %vm1258, %v1298, 0.0
        %v1316 = vadd.f32 %v1314, %v1315
        %v1317 = vsel %vm1258, %v1299, 0.0
        %v1318 = vadd.f32 %v1316, %v1317
        %v1319 = vsel %vm1258, %v1300, 0.0
        %v1320 = vadd.f32 %v1318, %v1319
        %v1321 = vsel %vm1258, %v1301, 0.0
        %v1322 = vadd.f32 %v1320, %v1321
        %v1323 = vsel %vm1258, %v1302, 0.0
        %v1324 = vadd.f32 %v1322, %v1323
        %v1325 = vsel %vm1258, %v1303, 0.0
        %v1326 = vadd.f32 %v1324, %v1325
        %v1327 = vsel %vm1258, %v1304, 0.0
        %v1328 = vadd.f32 %v1326, %v1327
        %v1329 = vsel %vm1258, %v1305, 0.0
        %v1330 = vadd.f32 %v1328, %v1329
        %v1331 = vsel %vm1258, %v1306, 0.0
        %v1332 = vadd.f32 %v1330, %v1331
        %v1333 = vsel %vm1258, %v1307, 0.0
        %v1334 = vadd.f32 %v1332, %v1333
        %v1335 = vsel %vm1258, %v1308, 0.0
        %v1336 = vadd.f32 %v1334, %v1335
        %v1337 = vsel %vm1286, %v1309, 0.0
        %v1338 = vadd.f32 %v1336, %v1337
        %v1339 = vrot.slane %v1338, 4
        %v1340 = vadd.f32 %v1338, %v1339
        %v1341 = vrot.slane %v1340, 2
        %v1342 = vadd.f32 %v1340, %v1341
        %v1343 = vrot.slane %v1342, 1
        %v1344 = vadd.f32 %v1342, %v1343
        %v1345 = vrsqrt.pop %v1294
        %v1346 = vrsqrt.pop %v1344
        %v1347 = vld [vmem:[%s15] sm:$0xff]
        %v1348 = vld [vmem:[%s1222] sm:$0xff]
        %v1349 = vld [vmem:[%s1222 + $0x8] sm:$0xff]
        %v1350 = vld [vmem:[%s1222 + $0x10] sm:$0xff]
        %v1351 = vld [vmem:[%s1222 + $0x18] sm:$0xff]
        %v1352 = vld [vmem:[%s1222 + $0x20] sm:$0xff]
        %v1353 = vld [vmem:[%s1222 + $0x28] sm:$0xff]
        %v1354 = vld [vmem:[%s1222 + $0x30] sm:$0xff]
        %v1355 = vld [vmem:[%s1222 + $0x38] sm:$0xff]
        %v1356 = vld [vmem:[%s1222 + $0x40] sm:$0xff]
        %v1357 = vld [vmem:[%s1222 + $0x48] sm:$0xff]
        %v1358 = vld [vmem:[%s1222 + $0x50] sm:$0xff]
        %v1359 = vld [vmem:[%s1222 + $0x58] sm:$0xff]
        %v1360 = vld [vmem:[%s1222 + $0x60] sm:$0xff]
        %v1361 = vld [vmem:[%s1222 + $0x68] sm:$0xff]
        %v1362 = vld [vmem:[%s1222 + $0x70] sm:$0x7]
        %vm1363 = vcmask 941056
        %v1365 = vsel %vm1363, %v1347, 0
        %vm1367 = vcmask 1042432
        %v1369 = vsel %vm1367, %v1362, 0
        %1371 = vmatprep.subr.mxu0 0.0
        %1372 = vmatpush1.msra.mxu0 %v1348
        %1373 = vmatprep.subr.mxu0 0.0
        %1374 = vmatpush1.msra.mxu0 %v1349
        %1375 = vmatprep.subr.mxu0 0.0
        %1376 = vmatpush1.msra.mxu0 %v1350
        %1377 = vmatprep.subr.mxu0 0.0
        %1378 = vmatpush1.msra.mxu0 %v1351
        %1379 = vmatprep.subr.mxu0 0.0
        %1380 = vmatpush1.msra.mxu0 %v1352
        %1381 = vmatprep.subr.mxu0 0.0
        %1382 = vmatpush1.msra.mxu0 %v1353
        %1383 = vmatprep.subr.mxu0 0.0
        %1384 = vmatpush1.msra.mxu0 %v1354
        %1385 = vmatprep.subr.mxu0 0.0
        %1386 = vmatpush1.msra.mxu0 %v1355
        %1387 = vmatprep.subr.mxu0 0.0
        %1388 = vmatpush1.msra.mxu0 %v1356
        %1389 = vmatprep.subr.mxu0 0.0
        %1390 = vmatpush1.msra.mxu0 %v1357
        %1391 = vmatprep.subr.mxu0 0.0
        %1392 = vmatpush1.msra.mxu0 %v1358
        %1393 = vmatprep.subr.mxu0 0.0
        %1394 = vmatpush1.msra.mxu0 %v1359
        %1395 = vmatprep.subr.mxu0 0.0
        %1396 = vmatpush1.msra.mxu0 %v1360
        %1397 = vmatprep.subr.mxu0 0.0
        %1398 = vmatpush1.msra.mxu0 %v1361
        %1399 = vmatprep.subr.mxu0 0.0
        %1400 = vmatpush1.msra.mxu0 %v1369
        %1401 = vmatprep.subr.mxu0 0.0
        %1402 = vmatpush1.msra.mxu0 0.0
        %1403 = vmatprep.subr.mxu0 0.0
        %1404 = vmatpush1.msra.mxu0 0.0
        %1405 = vmatprep.subr.mxu0 0.0
        %1406 = vmatpush1.msra.mxu0 0.0
        %1407 = vmatprep.subr.mxu0 0.0
        %1408 = vmatpush1.msra.mxu0 0.0
        %1409 = vmatprep.subr.mxu0 0.0
        %1410 = vmatpush1.msra.mxu0 0.0
        %1411 = vmatprep.subr.mxu0 0.0
        %1412 = vmatpush1.msra.mxu0 0.0
        %1413 = vmatprep.subr.mxu0 0.0
        %1414 = vmatpush1.msra.mxu0 0.0
        %1415 = vmatprep.subr.mxu0 0.0
        %1416 = vmatpush1.msra.mxu0 0.0
        %1417 = vmatprep.subr.mxu0 0.0
        %1418 = vmatpush1.msra.mxu0 0.0
        %1419 = vmatprep.subr.mxu0 0.0
        %1420 = vmatpush1.msra.mxu0 0.0
        %1421 = vmatprep.subr.mxu0 0.0
        %1422 = vmatpush1.msra.mxu0 0.0
        %1423 = vmatprep.subr.mxu0 0.0
        %1424 = vmatpush1.msra.mxu0 0.0
        %1425 = vmatprep.subr.mxu0 0.0
        %1426 = vmatpush1.msra.mxu0 0.0
        %1427 = vmatprep.subr.mxu0 0.0
        %1428 = vmatpush1.msra.mxu0 0.0
        %1429 = vmatprep.subr.mxu0 0.0
        %1430 = vmatpush1.msra.mxu0 0.0
        %1431 = vmatprep.subr.mxu0 0.0
        %1432 = vmatpush1.msra.mxu0 0.0
        %1433 = vmatprep.subr.mxu0 0.0
        %1434 = vmatpush1.msra.mxu0 0.0
        %1435 = vmatprep.mubr.f32.mxu0 0.0
        %1436 = vmatmul.mubr.f32.gmra.mrb[0].mxu0 %v1365
        %v1437 = vpop.f32.mrb[0].mxu0
        %v1438 = vadd.f32 0.0, %v1437
        %v1439 = vpop.f32.mrb[0].mxu0
        %1440 = vdwg.mxu0
        %v1441 = vmul.f32 %v1438, %v1345
        %v1443 = vsel %vm1258, %v1441, 0
        %vm1445 = vcmask 1043456
        %v1447 = vsel %vm1445, %v1257, 0
        %1449 = vmatprep.subr.mxu0 0.0
        %1450 = vmatpush1.msra.mxu0 %v1243
        %1451 = vmatprep.subr.mxu0 0.0
        %1452 = vmatpush1.msra.mxu0 %v1244
        %1453 = vmatprep.subr.mxu0 0.0
        %1454 = vmatpush1.msra.mxu0 %v1245
        %1455 = vmatprep.subr.mxu0 0.0
        %1456 = vmatpush1.msra.mxu0 %v1246
        %1457 = vmatprep.subr.mxu0 0.0
        %1458 = vmatpush1.msra.mxu0 %v1247
        %1459 = vmatprep.subr.mxu0 0.0
        %1460 = vmatpush1.msra.mxu0 %v1248
        %1461 = vmatprep.subr.mxu0 0.0
        %1462 = vmatpush1.msra.mxu0 %v1249
        %1463 = vmatprep.subr.mxu0 0.0
        %1464 = vmatpush1.msra.mxu0 %v1250
        %1465 = vmatprep.subr.mxu0 0.0
        %1466 = vmatpush1.msra.mxu0 %v1251
        %1467 = vmatprep.subr.mxu0 0.0
        %1468 = vmatpush1.msra.mxu0 %v1252
        %1469 = vmatprep.subr.mxu0 0.0
        %1470 = vmatpush1.msra.mxu0 %v1253
        %1471 = vmatprep.subr.mxu0 0.0
        %1472 = vmatpush1.msra.mxu0 %v1254
        %1473 = vmatprep.subr.mxu0 0.0
        %1474 = vmatpush1.msra.mxu0 %v1255
        %1475 = vmatprep.subr.mxu0 0.0
        %1476 = vmatpush1.msra.mxu0 %v1256
        %1477 = vmatprep.subr.mxu0 0.0
        %1478 = vmatpush1.msra.mxu0 %v1447
        %1479 = vmatprep.subr.mxu0 0.0
        %1480 = vmatpush1.msra.mxu0 0.0
        %1481 = vmatprep.subr.mxu0 0.0
        %1482 = vmatpush1.msra.mxu0 0.0
        %1483 = vmatprep.subr.mxu0 0.0
        %1484 = vmatpush1.msra.mxu0 0.0
        %1485 = vmatprep.subr.mxu0 0.0
        %1486 = vmatpush1.msra.mxu0 0.0
        %1487 = vmatprep.subr.mxu0 0.0
        %1488 = vmatpush1.msra.mxu0 0.0
        %1489 = vmatprep.subr.mxu0 0.0
        %1490 = vmatpush1.msra.mxu0 0.0
        %1491 = vmatprep.subr.mxu0 0.0
        %1492 = vmatpush1.msra.mxu0 0.0
        %1493 = vmatprep.subr.mxu0 0.0
        %1494 = vmatpush1.msra.mxu0 0.0
        %1495 = vmatprep.subr.mxu0 0.0
        %1496 = vmatpush1.msra.mxu0 0.0
        %1497 = vmatprep.subr.mxu0 0.0
        %1498 = vmatpush1.msra.mxu0 0.0
        %1499 = vmatprep.subr.mxu0 0.0
        %1500 = vmatpush1.msra.mxu0 0.0
        %1501 = vmatprep.subr.mxu0 0.0
        %1502 = vmatpush1.msra.mxu0 0.0
        %1503 = vmatprep.subr.mxu0 0.0
        %1504 = vmatpush1.msra.mxu0 0.0
        %1505 = vmatprep.subr.mxu0 0.0
        %1506 = vmatpush1.msra.mxu0 0.0
        %1507 = vmatprep.subr.mxu0 0.0
        %1508 = vmatpush1.msra.mxu0 0.0
        %1509 = vmatprep.subr.mxu0 0.0
        %1510 = vmatpush1.msra.mxu0 0.0
        %1511 = vmatprep.subr.mxu0 0.0
        %1512 = vmatpush1.msra.mxu0 0.0
        %1513 = vmatprep.mubr.f32.mxu0 0.0
        %1514 = vmatmul.mubr.f32.gmra.mrb[0].mxu0 %v1443
        %v1515 = vpop.f32.mrb[0].mxu0
        %v1516 = vadd.f32 0.0, %v1515
        %v1517 = vpop.f32.mrb[0].mxu0
        %1518 = vdwg.mxu0
        %v1519 = vmul.f32 %v1516, %v1345
        %v1520 = vld [vmem:[%s17] sm:$0xff]
        %1522 = vset.pattern.permute.xlu0 0
        %1523 = vperm.xlu0 %1522, %v1520
        %v1524 = vpop.permute.xlu0 %1523
        %v1526 = vadd.f32 %v1519, %v1524
        %v1527 = vmax.f32 %v1526, 0.0
        %v1528 = vld [vmem:[%s19] sm:$0xff]
        %v1529 = vld [vmem:[%s1227] sm:$0xff]
        %v1530 = vld [vmem:[%s1227 + $0x8] sm:$0xff]
        %v1531 = vld [vmem:[%s1227 + $0x10] sm:$0xff]
        %v1532 = vld [vmem:[%s1227 + $0x18] sm:$0xff]
        %v1533 = vld [vmem:[%s1227 + $0x20] sm:$0xff]
        %v1534 = vld [vmem:[%s1227 + $0x28] sm:$0xff]
        %v1535 = vld [vmem:[%s1227 + $0x30] sm:$0xff]
        %v1536 = vld [vmem:[%s1227 + $0x38] sm:$0xff]
        %v1537 = vld [vmem:[%s1227 + $0x40] sm:$0xff]
        %v1538 = vld [vmem:[%s1227 + $0x48] sm:$0xff]
        %v1539 = vld [vmem:[%s1227 + $0x50] sm:$0xff]
        %v1540 = vld [vmem:[%s1227 + $0x58] sm:$0xff]
        %v1541 = vld [vmem:[%s1227 + $0x60] sm:$0xff]
        %v1542 = vld [vmem:[%s1227 + $0x68] sm:$0xff]
        %v1543 = vld [vmem:[%s1227 + $0x70] sm:$0x7]
        %v1545 = vsel %vm1363, %v1528, 0
        %v1548 = vsel %vm1367, %v1543, 0
        %1550 = vmatprep.subr.mxu0 0.0
        %1551 = vmatpush1.msra.mxu0 %v1529
        %1552 = vmatprep.subr.mxu0 0.0
        %1553 = vmatpush1.msra.mxu0 %v1530
        %1554 = vmatprep.subr.mxu0 0.0
        %1555 = vmatpush1.msra.mxu0 %v1531
        %1556 = vmatprep.subr.mxu0 0.0
        %1557 = vmatpush1.msra.mxu0 %v1532
        %1558 = vmatprep.subr.mxu0 0.0
        %1559 = vmatpush1.msra.mxu0 %v1533
        %1560 = vmatprep.subr.mxu0 0.0
        %1561 = vmatpush1.msra.mxu0 %v1534
        %1562 = vmatprep.subr.mxu0 0.0
        %1563 = vmatpush1.msra.mxu0 %v1535
        %1564 = vmatprep.subr.mxu0 0.0
        %1565 = vmatpush1.msra.mxu0 %v1536
        %1566 = vmatprep.subr.mxu0 0.0
        %1567 = vmatpush1.msra.mxu0 %v1537
        %1568 = vmatprep.subr.mxu0 0.0
        %1569 = vmatpush1.msra.mxu0 %v1538
        %1570 = vmatprep.subr.mxu0 0.0
        %1571 = vmatpush1.msra.mxu0 %v1539
        %1572 = vmatprep.subr.mxu0 0.0
        %1573 = vmatpush1.msra.mxu0 %v1540
        %1574 = vmatprep.subr.mxu0 0.0
        %1575 = vmatpush1.msra.mxu0 %v1541
        %1576 = vmatprep.subr.mxu0 0.0
        %1577 = vmatpush1.msra.mxu0 %v1542
        %1578 = vmatprep.subr.mxu0 0.0
        %1579 = vmatpush1.msra.mxu0 %v1548
        %1580 = vmatprep.subr.mxu0 0.0
        %1581 = vmatpush1.msra.mxu0 0.0
        %1582 = vmatprep.subr.mxu0 0.0
        %1583 = vmatpush1.msra.mxu0 0.0
        %1584 = vmatprep.subr.mxu0 0.0
        %1585 = vmatpush1.msra.mxu0 0.0
        %1586 = vmatprep.subr.mxu0 0.0
        %1587 = vmatpush1.msra.mxu0 0.0
        %1588 = vmatprep.subr.mxu0 0.0
        %1589 = vmatpush1.msra.mxu0 0.0
        %1590 = vmatprep.subr.mxu0 0.0
        %1591 = vmatpush1.msra.mxu0 0.0
        %1592 = vmatprep.subr.mxu0 0.0
        %1593 = vmatpush1.msra.mxu0 0.0
        %1594 = vmatprep.subr.mxu0 0.0
        %1595 = vmatpush1.msra.mxu0 0.0
        %1596 = vmatprep.subr.mxu0 0.0
        %1597 = vmatpush1.msra.mxu0 0.0
        %1598 = vmatprep.subr.mxu0 0.0
        %1599 = vmatpush1.msra.mxu0 0.0
        %1600 = vmatprep.subr.mxu0 0.0
        %1601 = vmatpush1.msra.mxu0 0.0
        %1602 = vmatprep.subr.mxu0 0.0
        %1603 = vmatpush1.msra.mxu0 0.0
        %1604 = vmatprep.subr.mxu0 0.0
        %1605 = vmatpush1.msra.mxu0 0.0
        %1606 = vmatprep.subr.mxu0 0.0
        %1607 = vmatpush1.msra.mxu0 0.0
        %1608 = vmatprep.subr.mxu0 0.0
        %1609 = vmatpush1.msra.mxu0 0.0
        %1610 = vmatprep.subr.mxu0 0.0
        %1611 = vmatpush1.msra.mxu0 0.0
        %1612 = vmatprep.subr.mxu0 0.0
        %1613 = vmatpush1.msra.mxu0 0.0
        %1614 = vmatprep.mubr.f32.mxu0 0.0
        %1615 = vmatmul.mubr.f32.gmra.mrb[0].mxu0 %v1545
        %v1616 = vpop.f32.mrb[0].mxu0
        %v1617 = vadd.f32 0.0, %v1616
        %v1618 = vpop.f32.mrb[0].mxu0
        %1619 = vdwg.mxu0
        %v1620 = vmul.f32 %v1617, %v1346
        %v1622 = vsel %vm1258, %v1620, 0
        %v1625 = vsel %vm1445, %v1309, 0
        %1627 = vmatprep.subr.mxu0 0.0
        %1628 = vmatpush1.msra.mxu0 %v1295
        %1629 = vmatprep.subr.mxu0 0.0
        %1630 = vmatpush1.msra.mxu0 %v1296
        %1631 = vmatprep.subr.mxu0 0.0
        %1632 = vmatpush1.msra.mxu0 %v1297
        %1633 = vmatprep.subr.mxu0 0.0
        %1634 = vmatpush1.msra.mxu0 %v1298
        %1635 = vmatprep.subr.mxu0 0.0
        %1636 = vmatpush1.msra.mxu0 %v1299
        %1637 = vmatprep.subr.mxu0 0.0
        %1638 = vmatpush1.msra.mxu0 %v1300
        %1639 = vmatprep.subr.mxu0 0.0
        %1640 = vmatpush1.msra.mxu0 %v1301
        %1641 = vmatprep.subr.mxu0 0.0
        %1642 = vmatpush1.msra.mxu0 %v1302
        %1643 = vmatprep.subr.mxu0 0.0
        %1644 = vmatpush1.msra.mxu0 %v1303
        %1645 = vmatprep.subr.mxu0 0.0
        %1646 = vmatpush1.msra.mxu0 %v1304
        %1647 = vmatprep.subr.mxu0 0.0
        %1648 = vmatpush1.msra.mxu0 %v1305
        %1649 = vmatprep.subr.mxu0 0.0
        %1650 = vmatpush1.msra.mxu0 %v1306
        %1651 = vmatprep.subr.mxu0 0.0
        %1652 = vmatpush1.msra.mxu0 %v1307
        %1653 = vmatprep.subr.mxu0 0.0
        %1654 = vmatpush1.msra.mxu0 %v1308
        %1655 = vmatprep.subr.mxu0 0.0
        %1656 = vmatpush1.msra.mxu0 %v1625
        %1657 = vmatprep.subr.mxu0 0.0
        %1658 = vmatpush1.msra.mxu0 0.0
        %1659 = vmatprep.subr.mxu0 0.0
        %1660 = vmatpush1.msra.mxu0 0.0
        %1661 = vmatprep.subr.mxu0 0.0
        %1662 = vmatpush1.msra.mxu0 0.0
        %1663 = vmatprep.subr.mxu0 0.0
        %1664 = vmatpush1.msra.mxu0 0.0
        %1665 = vmatprep.subr.mxu0 0.0
        %1666 = vmatpush1.msra.mxu0 0.0
        %1667 = vmatprep.subr.mxu0 0.0
        %1668 = vmatpush1.msra.mxu0 0.0
        %1669 = vmatprep.subr.mxu0 0.0
        %1670 = vmatpush1.msra.mxu0 0.0
        %1671 = vmatprep.subr.mxu0 0.0
        %1672 = vmatpush1.msra.mxu0 0.0
        %1673 = vmatprep.subr.mxu0 0.0
        %1674 = vmatpush1.msra.mxu0 0.0
        %1675 = vmatprep.subr.mxu0 0.0
        %1676 = vmatpush1.msra.mxu0 0.0
        %1677 = vmatprep.subr.mxu0 0.0
        %1678 = vmatpush1.msra.mxu0 0.0
        %1679 = vmatprep.subr.mxu0 0.0
        %1680 = vmatpush1.msra.mxu0 0.0
        %1681 = vmatprep.subr.mxu0 0.0
        %1682 = vmatpush1.msra.mxu0 0.0
        %1683 = vmatprep.subr.mxu0 0.0
        %1684 = vmatpush1.msra.mxu0 0.0
        %1685 = vmatprep.subr.mxu0 0.0
        %1686 = vmatpush1.msra.mxu0 0.0
        %1687 = vmatprep.subr.mxu0 0.0
        %1688 = vmatpush1.msra.mxu0 0.0
        %1689 = vmatprep.subr.mxu0 0.0
        %1690 = vmatpush1.msra.mxu0 0.0
        %1691 = vmatprep.mubr.f32.mxu0 0.0
        %1692 = vmatmul.mubr.f32.gmra.mrb[0].mxu0 %v1622
        %v1693 = vpop.f32.mrb[0].mxu0
        %v1694 = vadd.f32 0.0, %v1693
        %v1695 = vpop.f32.mrb[0].mxu0
        %1696 = vdwg.mxu0
        %v1697 = vmul.f32 %v1694, %v1346
        %v1698 = vld [vmem:[%s21] sm:$0xff]
        %1700 = vset.pattern.permute.xlu0 0
        %1701 = vperm.xlu0 %1700, %v1698
        %v1702 = vpop.permute.xlu0 %1701
        %v1704 = vadd.f32 %v1697, %v1702
        %v1705 = vmax.f32 %v1704, 0.0
        %v1706 = vld [vmem:[%s27] sm:$0xff]
        %v1707 = vld [vmem:[%s27 + $0x8] sm:$0xff]
        %v1708 = vld [vmem:[%s27 + $0x10] sm:$0xff]
        %v1709 = vld [vmem:[%s27 + $0x18] sm:$0xff]
        %v1710 = vld [vmem:[%s27 + $0x20] sm:$0xff]
        %v1711 = vld [vmem:[%s27 + $0x28] sm:$0xff]
        %v1712 = vld [vmem:[%s27 + $0x30] sm:$0xff]
        %v1713 = vld [vmem:[%s27 + $0x38] sm:$0xff]
        %v1714 = vld [vmem:[%s27 + $0x40] sm:$0xff]
        %v1715 = vld [vmem:[%s27 + $0x48] sm:$0xff]
        %v1716 = vld [vmem:[%s27 + $0x50] sm:$0xff]
        %v1717 = vld [vmem:[%s27 + $0x58] sm:$0xff]
        %v1718 = vld [vmem:[%s27 + $0x60] sm:$0xff]
        %v1719 = vld [vmem:[%s27 + $0x68] sm:$0xff]
        %v1720 = vld [vmem:[%s27 + $0x70] sm:$0xff]
        %v1721 = vld [vmem:[%s27 + $0x78] sm:$0xff]
        %v1722 = vld [vmem:[%s27 + $0x80] sm:$0xff]
        %v1723 = vld [vmem:[%s27 + $0x88] sm:$0xff]
        %v1724 = vld [vmem:[%s27 + $0x90] sm:$0xff]
        %v1725 = vld [vmem:[%s27 + $0x98] sm:$0xff]
        %v1726 = vld [vmem:[%s27 + $0xa0] sm:$0xff]
        %v1727 = vld [vmem:[%s27 + $0xa8] sm:$0xff]
        %v1728 = vld [vmem:[%s27 + $0xb0] sm:$0xff]
        %v1729 = vld [vmem:[%s27 + $0xb8] sm:$0xff]
        %v1730 = vld [vmem:[%s27 + $0xc0] sm:$0xff]
        %v1731 = vld [vmem:[%s27 + $0xc8] sm:$0xff]
        %v1732 = vld [vmem:[%s27 + $0xd0] sm:$0xff]
        %v1733 = vld [vmem:[%s27 + $0xd8] sm:$0xff]
        %v1734 = vld [vmem:[%s27 + $0xe0] sm:$0xf]
        %v1735 = vld [vmem:[%s27 + $0xe8] sm:$0xf]
        %v1737 = vsel %vm1258, %v1527, 0
        %v1740 = vsel %vm1445, %v1734, 0
        %v1743 = vsel %vm1445, %v1735, 0
        %1745 = vmatprep.subr.mxu0 %v1707
        %1746 = vmatpush1.msra.mxu0 %v1706
        %1747 = vmatprep.subr.mxu0 %v1709
        %1748 = vmatpush1.msra.mxu0 %v1708
        %1749 = vmatprep.subr.mxu0 %v1711
        %1750 = vmatpush1.msra.mxu0 %v1710
        %1751 = vmatprep.subr.mxu0 %v1713
        %1752 = vmatpush1.msra.mxu0 %v1712
        %1753 = vmatprep.subr.mxu0 %v1715
        %1754 = vmatpush1.msra.mxu0 %v1714
        %1755 = vmatprep.subr.mxu0 %v1717
        %1756 = vmatpush1.msra.mxu0 %v1716
        %1757 = vmatprep.subr.mxu0 %v1719
        %1758 = vmatpush1.msra.mxu0 %v1718
        %1759 = vmatprep.subr.mxu0 %v1721
        %1760 = vmatpush1.msra.mxu0 %v1720
        %1761 = vmatprep.subr.mxu0 %v1723
        %1762 = vmatpush1.msra.mxu0 %v1722
        %1763 = vmatprep.subr.mxu0 %v1725
        %1764 = vmatpush1.msra.mxu0 %v1724
        %1765 = vmatprep.subr.mxu0 %v1727
        %1766 = vmatpush1.msra.mxu0 %v1726
        %1767 = vmatprep.subr.mxu0 %v1729
        %1768 = vmatpush1.msra.mxu0 %v1728
        %1769 = vmatprep.subr.mxu0 %v1731
        %1770 = vmatpush1.msra.mxu0 %v1730
        %1771 = vmatprep.subr.mxu0 %v1733
        %1772 = vmatpush1.msra.mxu0 %v1732
        %1773 = vmatprep.subr.mxu0 %v1743
        %1774 = vmatpush1.msra.mxu0 %v1740
        %1775 = vmatprep.subr.mxu0 0.0
        %1776 = vmatpush1.msra.mxu0 0.0
        %1777 = vmatprep.subr.mxu0 0.0
        %1778 = vmatpush1.msra.mxu0 0.0
        %1779 = vmatprep.subr.mxu0 0.0
        %1780 = vmatpush1.msra.mxu0 0.0
        %1781 = vmatprep.subr.mxu0 0.0
        %1782 = vmatpush1.msra.mxu0 0.0
        %1783 = vmatprep.subr.mxu0 0.0
        %1784 = vmatpush1.msra.mxu0 0.0
        %1785 = vmatprep.subr.mxu0 0.0
        %1786 = vmatpush1.msra.mxu0 0.0
        %1787 = vmatprep.subr.mxu0 0.0
        %1788 = vmatpush1.msra.mxu0 0.0
        %1789 = vmatprep.subr.mxu0 0.0
        %1790 = vmatpush1.msra.mxu0 0.0
        %1791 = vmatprep.subr.mxu0 0.0
        %1792 = vmatpush1.msra.mxu0 0.0
        %1793 = vmatprep.subr.mxu0 0.0
        %1794 = vmatpush1.msra.mxu0 0.0
        %1795 = vmatprep.subr.mxu0 0.0
        %1796 = vmatpush1.msra.mxu0 0.0
        %1797 = vmatprep.subr.mxu0 0.0
        %1798 = vmatpush1.msra.mxu0 0.0
        %1799 = vmatprep.subr.mxu0 0.0
        %1800 = vmatpush1.msra.mxu0 0.0
        %1801 = vmatprep.subr.mxu0 0.0
        %1802 = vmatpush1.msra.mxu0 0.0
        %1803 = vmatprep.subr.mxu0 0.0
        %1804 = vmatpush1.msra.mxu0 0.0
        %1805 = vmatprep.subr.mxu0 0.0
        %1806 = vmatpush1.msra.mxu0 0.0
        %1807 = vmatprep.subr.mxu0 0.0
        %1808 = vmatpush1.msra.mxu0 0.0
        %1809 = vmatprep.mubr.f32.mxu0 0.0
        %1810 = vmatmul.mubr.f32.gmra.mrb[0].mxu0 %v1737
        %v1811 = vpop.f32.mrb[0].mxu0
        %v1812 = vadd.f32 0.0, %v1811
        %v1813 = vpop.f32.mrb[0].mxu0
        %v1814 = vadd.f32 0.0, %v1813
        %1815 = vdwg.mxu0
        %v1816 = vld [vmem:[%s29] sm:$0x1]
        %v1817 = vadd.f32 %v1816, %v1812
        %v1820 = vunpack.c.l.s4 1966171168
        %v1821 = vunpack.c.0.s8 %v1820
        %v1822 = vlaneseq
        %v1823 = vshrl.u32 %v1822, 7
        %v1824 = vsub.s32 %v1821, %v1823
        %v1825 = vrot.slane %v1812, %v1824
        %v1826 = vcombine.high %v1825, %v1825
        %v1828 = vunpack.c.l.s4 1966171168
        %v1829 = vunpack.c.0.s8 %v1828
        %v1830 = vlaneseq
        %v1831 = vshrl.u32 %v1830, 7
        %v1832 = vsub.s32 %v1829, %v1831
        %v1833 = vrot.slane %v1825, %v1832
        %v1835 = vunpack.c.l.s4 1966171168
        %v1836 = vunpack.c.0.s8 %v1835
        %v1837 = vlaneseq
        %v1838 = vshrl.u32 %v1837, 7
        %v1839 = vsub.s32 %v1836, %v1838
        %v1840 = vrot.slane %v1826, %v1839
        %1841 = vrot.lane.b32.xlu0 %v1840, 96
        %v1842 = vpop.permute.xlu0 %1841
        %v1844 = vadd.f32 %v1817, %v1842
        %v1845 = vcombine.high %v1833, %v1833
        %1846 = vrot.lane.b32.xlu0 %v1845, 64
        %v1847 = vpop.permute.xlu0 %1846
        %v1849 = vadd.f32 %v1844, %v1847
        %v1850 = vcombine.high %v1840, %v1840
        %1851 = vrot.lane.b32.xlu0 %v1850, 32
        %v1852 = vpop.permute.xlu0 %1851
        %v1854 = vadd.f32 %v1849, %v1852
        %v1856 = vcombine.high %v1814, %v1814
        %v1858 = vunpack.c.l.s4 1966171168
        %v1859 = vunpack.c.0.s8 %v1858
        %v1860 = vlaneseq
        %v1861 = vshrl.u32 %v1860, 7
        %v1862 = vsub.s32 %v1859, %v1861
        %v1863 = vrot.slane %v1856, %v1862
        %v1865 = vunpack.c.l.s4 1966171168
        %v1866 = vunpack.c.0.s8 %v1865
        %v1867 = vlaneseq
        %v1868 = vshrl.u32 %v1867, 7
        %v1869 = vsub.s32 %v1866, %v1868
        %v1870 = vrot.slane %v1863, %v1869
        %v1872 = vadd.f32 %v1854, %v1870
        %v1873 = vcombine.high %v1863, %v1863
        %v1875 = vunpack.c.l.s4 1966171168
        %v1876 = vunpack.c.0.s8 %v1875
        %v1877 = vlaneseq
        %v1878 = vshrl.u32 %v1877, 7
        %v1879 = vsub.s32 %v1876, %v1878
        %v1880 = vrot.slane %v1873, %v1879
        %1881 = vrot.lane.b32.xlu0 %v1880, 96
        %v1882 = vpop.permute.xlu0 %1881
        %v1884 = vadd.f32 %v1872, %v1882
        %v1885 = vcombine.high %v1870, %v1870
        %1886 = vrot.lane.b32.xlu0 %v1885, 64
        %v1887 = vpop.permute.xlu0 %1886
        %v1889 = vadd.f32 %v1884, %v1887
        %v1890 = vcombine.high %v1880, %v1880
        %1891 = vrot.lane.b32.xlu0 %v1890, 32
        %v1892 = vpop.permute.xlu0 %1891
        %v1894 = vadd.f32 %v1889, %v1892
        %v1895 = vmax.f32 %v1894, 0.0
        %v1896 = vld [vmem:[%s31] sm:$0xff]
        %v1897 = vld [vmem:[%s31 + $0x8] sm:$0xff]
        %v1898 = vld [vmem:[%s31 + $0x10] sm:$0xff]
        %v1899 = vld [vmem:[%s31 + $0x18] sm:$0xff]
        %v1900 = vld [vmem:[%s33] sm:$0x1]
        %vm1901 = vcmask 261120
        %v1903 = vsel %vm1901, %v1895, 0
        %1905 = vmatprep.subr.mxu0 0.0
        %1906 = vmatpush1.msra.mxu0 %v1896
        %1907 = vmatprep.subr.mxu0 0.0
        %1908 = vmatpush1.msra.mxu0 %v1897
        %1909 = vmatprep.subr.mxu0 0.0
        %1910 = vmatpush1.msra.mxu0 %v1898
        %1911 = vmatprep.subr.mxu0 0.0
        %1912 = vmatpush1.msra.mxu0 %v1899
        %1913 = vmatprep.subr.mxu0 0.0
        %1914 = vmatpush1.msra.mxu0 0.0
        %1915 = vmatprep.subr.mxu0 0.0
        %1916 = vmatpush1.msra.mxu0 0.0
        %1917 = vmatprep.subr.mxu0 0.0
        %1918 = vmatpush1.msra.mxu0 0.0
        %1919 = vmatprep.subr.mxu0 0.0
        %1920 = vmatpush1.msra.mxu0 0.0
        %1921 = vmatprep.subr.mxu0 0.0
        %1922 = vmatpush1.msra.mxu0 0.0
        %1923 = vmatprep.subr.mxu0 0.0
        %1924 = vmatpush1.msra.mxu0 0.0
        %1925 = vmatprep.subr.mxu0 0.0
        %1926 = vmatpush1.msra.mxu0 0.0
        %1927 = vmatprep.subr.mxu0 0.0
        %1928 = vmatpush1.msra.mxu0 0.0
        %1929 = vmatprep.subr.mxu0 0.0
        %1930 = vmatpush1.msra.mxu0 0.0
        %1931 = vmatprep.subr.mxu0 0.0
        %1932 = vmatpush1.msra.mxu0 0.0
        %1933 = vmatprep.subr.mxu0 0.0
        %1934 = vmatpush1.msra.mxu0 0.0
        %1935 = vmatprep.subr.mxu0 0.0
        %1936 = vmatpush1.msra.mxu0 0.0
        %1937 = vmatprep.subr.mxu0 0.0
        %1938 = vmatpush1.msra.mxu0 0.0
        %1939 = vmatprep.subr.mxu0 0.0
        %1940 = vmatpush1.msra.mxu0 0.0
        %1941 = vmatprep.subr.mxu0 0.0
        %1942 = vmatpush1.msra.mxu0 0.0
        %1943 = vmatprep.subr.mxu0 0.0
        %1944 = vmatpush1.msra.mxu0 0.0
        %1945 = vmatprep.subr.mxu0 0.0
        %1946 = vmatpush1.msra.mxu0 0.0
        %1947 = vmatprep.subr.mxu0 0.0
        %1948 = vmatpush1.msra.mxu0 0.0
        %1949 = vmatprep.subr.mxu0 0.0
        %1950 = vmatpush1.msra.mxu0 0.0
        %1951 = vmatprep.subr.mxu0 0.0
        %1952 = vmatpush1.msra.mxu0 0.0
        %1953 = vmatprep.subr.mxu0 0.0
        %1954 = vmatpush1.msra.mxu0 0.0
        %1955 = vmatprep.subr.mxu0 0.0
        %1956 = vmatpush1.msra.mxu0 0.0
        %1957 = vmatprep.subr.mxu0 0.0
        %1958 = vmatpush1.msra.mxu0 0.0
        %1959 = vmatprep.subr.mxu0 0.0
        %1960 = vmatpush1.msra.mxu0 0.0
        %1961 = vmatprep.subr.mxu0 0.0
        %1962 = vmatpush1.msra.mxu0 0.0
        %1963 = vmatprep.subr.mxu0 0.0
        %1964 = vmatpush1.msra.mxu0 0.0
        %1965 = vmatprep.subr.mxu0 0.0
        %1966 = vmatpush1.msra.mxu0 0.0
        %1967 = vmatprep.subr.mxu0 0.0
        %1968 = vmatpush1.msra.mxu0 0.0
        %1969 = vmatprep.mubr.f32.mxu0 0.0
        %1970 = vmatmul.mubr.f32.gmra.mrb[0].mxu0 %v1903
        %v1971 = vpop.f32.mrb[0].mxu0
        %v1972 = vadd.f32 %v1900, %v1971
        %v1973 = vpop.f32.mrb[0].mxu0
        %1974 = vdwg.mxu0
        %vm1975 = vcmask 8192
        %v1976 = vsel %vm1975, %v1972, -inf
        %1977 = vmax.xlane.f32.xlu0 %v1976
        %v1978 = vpop.xlane.xlu0 %1977
        %v1979 = vsub.f32 %v1972, %v1978
        %v1980 = vmul.f32 %v1979, 1.442695
        %v1981 = vpow.pop %v1980
        %v1982 = vsel %vm1975, %v1981, 0.0
        %1983 = vadd.xlane.f32.xlu0 %v1982
        %v1984 = vpop.xlane.xlu0 %1983
        %v1985 = vrcp.pop %v1984
        %v1986 = vmul.f32 %v1981, %v1985
        %1987 = vst.msk [vmem:[%s1195] sm:$0x1] %vm1975, %v1986
        %v1988 = vld [vmem:[%s35] sm:$0xff]
        %v1989 = vld [vmem:[%s35 + $0x8] sm:$0xff]
        %v1990 = vld [vmem:[%s35 + $0x10] sm:$0xff]
        %v1991 = vld [vmem:[%s35 + $0x18] sm:$0xff]
        %v1992 = vld [vmem:[%s35 + $0x20] sm:$0xff]
        %v1993 = vld [vmem:[%s35 + $0x28] sm:$0xff]
        %v1994 = vld [vmem:[%s35 + $0x30] sm:$0xff]
        %v1995 = vld [vmem:[%s35 + $0x38] sm:$0xff]
        %v1996 = vld [vmem:[%s35 + $0x40] sm:$0xff]
        %v1997 = vld [vmem:[%s35 + $0x48] sm:$0xff]
        %v1998 = vld [vmem:[%s35 + $0x50] sm:$0xff]
        %v1999 = vld [vmem:[%s35 + $0x58] sm:$0xff]
        %v2000 = vld [vmem:[%s35 + $0x60] sm:$0xff]
        %v2001 = vld [vmem:[%s35 + $0x68] sm:$0xff]
        %v2002 = vld [vmem:[%s35 + $0x70] sm:$0xff]
        %v2003 = vld [vmem:[%s35 + $0x78] sm:$0xff]
        %v2004 = vld [vmem:[%s35 + $0x80] sm:$0xff]
        %v2005 = vld [vmem:[%s35 + $0x88] sm:$0xff]
        %v2006 = vld [vmem:[%s35 + $0x90] sm:$0xff]
        %v2007 = vld [vmem:[%s35 + $0x98] sm:$0xff]
        %v2008 = vld [vmem:[%s35 + $0xa0] sm:$0xff]
        %v2009 = vld [vmem:[%s35 + $0xa8] sm:$0xff]
        %v2010 = vld [vmem:[%s35 + $0xb0] sm:$0xff]
        %v2011 = vld [vmem:[%s35 + $0xb8] sm:$0xff]
        %v2012 = vld [vmem:[%s35 + $0xc0] sm:$0xff]
        %v2013 = vld [vmem:[%s35 + $0xc8] sm:$0xff]
        %v2014 = vld [vmem:[%s35 + $0xd0] sm:$0xff]
        %v2015 = vld [vmem:[%s35 + $0xd8] sm:$0xff]
        %v2016 = vld [vmem:[%s35 + $0xe0] sm:$0xf]
        %v2017 = vld [vmem:[%s35 + $0xe8] sm:$0xf]
        %v2019 = vsel %vm1258, %v1705, 0
        %v2022 = vsel %vm1445, %v2016, 0
        %v2025 = vsel %vm1445, %v2017, 0
        %2027 = vmatprep.subr.mxu0 %v1989
        %2028 = vmatpush1.msra.mxu0 %v1988
        %2029 = vmatprep.subr.mxu0 %v1991
        %2030 = vmatpush1.msra.mxu0 %v1990
        %2031 = vmatprep.subr.mxu0 %v1993
        %2032 = vmatpush1.msra.mxu0 %v1992
        %2033 = vmatprep.subr.mxu0 %v1995
        %2034 = vmatpush1.msra.mxu0 %v1994
        %2035 = vmatprep.subr.mxu0 %v1997
        %2036 = vmatpush1.msra.mxu0 %v1996
        %2037 = vmatprep.subr.mxu0 %v1999
        %2038 = vmatpush1.msra.mxu0 %v1998
        %2039 = vmatprep.subr.mxu0 %v2001
        %2040 = vmatpush1.msra.mxu0 %v2000
        %2041 = vmatprep.subr.mxu0 %v2003
        %2042 = vmatpush1.msra.mxu0 %v2002
        %2043 = vmatprep.subr.mxu0 %v2005
        %2044 = vmatpush1.msra.mxu0 %v2004
        %2045 = vmatprep.subr.mxu0 %v2007
        %2046 = vmatpush1.msra.mxu0 %v2006
        %2047 = vmatprep.subr.mxu0 %v2009
        %2048 = vmatpush1.msra.mxu0 %v2008
        %2049 = vmatprep.subr.mxu0 %v2011
        %2050 = vmatpush1.msra.mxu0 %v2010
        %2051 = vmatprep.subr.mxu0 %v2013
        %2052 = vmatpush1.msra.mxu0 %v2012
        %2053 = vmatprep.subr.mxu0 %v2015
        %2054 = vmatpush1.msra.mxu0 %v2014
        %2055 = vmatprep.subr.mxu0 %v2025
        %2056 = vmatpush1.msra.mxu0 %v2022
        %2057 = vmatprep.subr.mxu0 0.0
        %2058 = vmatpush1.msra.mxu0 0.0
        %2059 = vmatprep.subr.mxu0 0.0
        %2060 = vmatpush1.msra.mxu0 0.0
        %2061 = vmatprep.subr.mxu0 0.0
        %2062 = vmatpush1.msra.mxu0 0.0
        %2063 = vmatprep.subr.mxu0 0.0
        %2064 = vmatpush1.msra.mxu0 0.0
        %2065 = vmatprep.subr.mxu0 0.0
        %2066 = vmatpush1.msra.mxu0 0.0
        %2067 = vmatprep.subr.mxu0 0.0
        %2068 = vmatpush1.msra.mxu0 0.0
        %2069 = vmatprep.subr.mxu0 0.0
        %2070 = vmatpush1.msra.mxu0 0.0
        %2071 = vmatprep.subr.mxu0 0.0
        %2072 = vmatpush1.msra.mxu0 0.0
        %2073 = vmatprep.subr.mxu0 0.0
        %2074 = vmatpush1.msra.mxu0 0.0
        %2075 = vmatprep.subr.mxu0 0.0
        %2076 = vmatpush1.msra.mxu0 0.0
        %2077 = vmatprep.subr.mxu0 0.0
        %2078 = vmatpush1.msra.mxu0 0.0
        %2079 = vmatprep.subr.mxu0 0.0
        %2080 = vmatpush1.msra.mxu0 0.0
        %2081 = vmatprep.subr.mxu0 0.0
        %2082 = vmatpush1.msra.mxu0 0.0
        %2083 = vmatprep.subr.mxu0 0.0
        %2084 = vmatpush1.msra.mxu0 0.0
        %2085 = vmatprep.subr.mxu0 0.0
        %2086 = vmatpush1.msra.mxu0 0.0
        %2087 = vmatprep.subr.mxu0 0.0
        %2088 = vmatpush1.msra.mxu0 0.0
        %2089 = vmatprep.subr.mxu0 0.0
        %2090 = vmatpush1.msra.mxu0 0.0
        %2091 = vmatprep.mubr.f32.mxu0 0.0
        %2092 = vmatmul.mubr.f32.gmra.mrb[0].mxu0 %v2019
        %v2093 = vpop.f32.mrb[0].mxu0
        %v2094 = vadd.f32 0.0, %v2093
        %v2095 = vpop.f32.mrb[0].mxu0
        %v2096 = vadd.f32 0.0, %v2095
        %2097 = vdwg.mxu0
        %v2098 = vld [vmem:[%s37] sm:$0x1]
        %v2099 = vadd.f32 %v2098, %v2094
        %v2102 = vunpack.c.l.s4 1966171168
        %v2103 = vunpack.c.0.s8 %v2102
        %v2104 = vlaneseq
        %v2105 = vshrl.u32 %v2104, 7
        %v2106 = vsub.s32 %v2103, %v2105
        %v2107 = vrot.slane %v2094, %v2106
        %v2108 = vcombine.high %v2107, %v2107
        %v2110 = vunpack.c.l.s4 1966171168
        %v2111 = vunpack.c.0.s8 %v2110
        %v2112 = vlaneseq
        %v2113 = vshrl.u32 %v2112, 7
        %v2114 = vsub.s32 %v2111, %v2113
        %v2115 = vrot.slane %v2107, %v2114
        %v2117 = vunpack.c.l.s4 1966171168
        %v2118 = vunpack.c.0.s8 %v2117
        %v2119 = vlaneseq
        %v2120 = vshrl.u32 %v2119, 7
        %v2121 = vsub.s32 %v2118, %v2120
        %v2122 = vrot.slane %v2108, %v2121
        %2123 = vrot.lane.b32.xlu0 %v2122, 96
        %v2124 = vpop.permute.xlu0 %2123
        %v2126 = vadd.f32 %v2099, %v2124
        %v2127 = vcombine.high %v2115, %v2115
        %2128 = vrot.lane.b32.xlu0 %v2127, 64
        %v2129 = vpop.permute.xlu0 %2128
        %v2131 = vadd.f32 %v2126, %v2129
        %v2132 = vcombine.high %v2122, %v2122
        %2133 = vrot.lane.b32.xlu0 %v2132, 32
        %v2134 = vpop.permute.xlu0 %2133
        %v2136 = vadd.f32 %v2131, %v2134
        %v2138 = vcombine.high %v2096, %v2096
        %v2140 = vunpack.c.l.s4 1966171168
        %v2141 = vunpack.c.0.s8 %v2140
        %v2142 = vlaneseq
        %v2143 = vshrl.u32 %v2142, 7
        %v2144 = vsub.s32 %v2141, %v2143
        %v2145 = vrot.slane %v2138, %v2144
        %v2147 = vunpack.c.l.s4 1966171168
        %v2148 = vunpack.c.0.s8 %v2147
        %v2149 = vlaneseq
        %v2150 = vshrl.u32 %v2149, 7
        %v2151 = vsub.s32 %v2148, %v2150
        %v2152 = vrot.slane %v2145, %v2151
        %v2154 = vadd.f32 %v2136, %v2152
        %v2155 = vcombine.high %v2145, %v2145
        %v2157 = vunpack.c.l.s4 1966171168
        %v2158 = vunpack.c.0.s8 %v2157
        %v2159 = vlaneseq
        %v2160 = vshrl.u32 %v2159, 7
        %v2161 = vsub.s32 %v2158, %v2160
        %v2162 = vrot.slane %v2155, %v2161
        %2163 = vrot.lane.b32.xlu0 %v2162, 96
        %v2164 = vpop.permute.xlu0 %2163
        %v2166 = vadd.f32 %v2154, %v2164
        %v2167 = vcombine.high %v2152, %v2152
        %2168 = vrot.lane.b32.xlu0 %v2167, 64
        %v2169 = vpop.permute.xlu0 %2168
        %v2171 = vadd.f32 %v2166, %v2169
        %v2172 = vcombine.high %v2162, %v2162
        %2173 = vrot.lane.b32.xlu0 %v2172, 32
        %v2174 = vpop.permute.xlu0 %2173
        %v2176 = vadd.f32 %v2171, %v2174
        %v2177 = vmax.f32 %v2176, 0.0
        %v2178 = vld [vmem:[%s39] sm:$0xff]
        %v2179 = vld [vmem:[%s39 + $0x8] sm:$0xff]
        %v2180 = vld [vmem:[%s39 + $0x10] sm:$0xff]
        %v2181 = vld [vmem:[%s39 + $0x18] sm:$0xff]
        %v2182 = vld [vmem:[%s41] sm:$0x1]
        %v2184 = vsel %vm1901, %v2177, 0
        %2186 = vmatprep.subr.mxu0 0.0
        %2187 = vmatpush1.msra.mxu0 %v2178
        %2188 = vmatprep.subr.mxu0 0.0
        %2189 = vmatpush1.msra.mxu0 %v2179
        %2190 = vmatprep.subr.mxu0 0.0
        %2191 = vmatpush1.msra.mxu0 %v2180
        %2192 = vmatprep.subr.mxu0 0.0
        %2193 = vmatpush1.msra.mxu0 %v2181
        %2194 = vmatprep.subr.mxu0 0.0
        %2195 = vmatpush1.msra.mxu0 0.0
        %2196 = vmatprep.subr.mxu0 0.0
        %2197 = vmatpush1.msra.mxu0 0.0
        %2198 = vmatprep.subr.mxu0 0.0
        %2199 = vmatpush1.msra.mxu0 0.0
        %2200 = vmatprep.subr.mxu0 0.0
        %2201 = vmatpush1.msra.mxu0 0.0
        %2202 = vmatprep.subr.mxu0 0.0
        %2203 = vmatpush1.msra.mxu0 0.0
        %2204 = vmatprep.subr.mxu0 0.0
        %2205 = vmatpush1.msra.mxu0 0.0
        %2206 = vmatprep.subr.mxu0 0.0
        %2207 = vmatpush1.msra.mxu0 0.0
        %2208 = vmatprep.subr.mxu0 0.0
        %2209 = vmatpush1.msra.mxu0 0.0
        %2210 = vmatprep.subr.mxu0 0.0
        %2211 = vmatpush1.msra.mxu0 0.0
        %2212 = vmatprep.subr.mxu0 0.0
        %2213 = vmatpush1.msra.mxu0 0.0
        %2214 = vmatprep.subr.mxu0 0.0
        %2215 = vmatpush1.msra.mxu0 0.0
        %2216 = vmatprep.subr.mxu0 0.0
        %2217 = vmatpush1.msra.mxu0 0.0
        %2218 = vmatprep.subr.mxu0 0.0
        %2219 = vmatpush1.msra.mxu0 0.0
        %2220 = vmatprep.subr.mxu0 0.0
        %2221 = vmatpush1.msra.mxu0 0.0
        %2222 = vmatprep.subr.mxu0 0.0
        %2223 = vmatpush1.msra.mxu0 0.0
        %2224 = vmatprep.subr.mxu0 0.0
        %2225 = vmatpush1.msra.mxu0 0.0
        %2226 = vmatprep.subr.mxu0 0.0
        %2227 = vmatpush1.msra.mxu0 0.0
        %2228 = vmatprep.subr.mxu0 0.0
        %2229 = vmatpush1.msra.mxu0 0.0
        %2230 = vmatprep.subr.mxu0 0.0
        %2231 = vmatpush1.msra.mxu0 0.0
        %2232 = vmatprep.subr.mxu0 0.0
        %2233 = vmatpush1.msra.mxu0 0.0
        %2234 = vmatprep.subr.mxu0 0.0
        %2235 = vmatpush1.msra.mxu0 0.0
        %2236 = vmatprep.subr.mxu0 0.0
        %2237 = vmatpush1.msra.mxu0 0.0
        %2238 = vmatprep.subr.mxu0 0.0
        %2239 = vmatpush1.msra.mxu0 0.0
        %2240 = vmatprep.subr.mxu0 0.0
        %2241 = vmatpush1.msra.mxu0 0.0
        %2242 = vmatprep.subr.mxu0 0.0
        %2243 = vmatpush1.msra.mxu0 0.0
        %2244 = vmatprep.subr.mxu0 0.0
        %2245 = vmatpush1.msra.mxu0 0.0
        %2246 = vmatprep.subr.mxu0 0.0
        %2247 = vmatpush1.msra.mxu0 0.0
        %2248 = vmatprep.subr.mxu0 0.0
        %2249 = vmatpush1.msra.mxu0 0.0
        %2250 = vmatprep.mubr.f32.mxu0 0.0
        %2251 = vmatmul.mubr.f32.gmra.mrb[0].mxu0 %v2184
        %v2252 = vpop.f32.mrb[0].mxu0
        %v2253 = vadd.f32 %v2182, %v2252
        %v2254 = vpop.f32.mrb[0].mxu0
        %2255 = vdwg.mxu0
        %v2256 = vsel %vm1975, %v2253, -inf
        %2257 = vmax.xlane.f32.xlu0 %v2256
        %v2258 = vpop.xlane.xlu0 %2257
        %v2259 = vsub.f32 %v2253, %v2258
        %v2260 = vmul.f32 %v2259, 1.442695
        %v2261 = vpow.pop %v2260
        %v2262 = vsel %vm1975, %v2261, 0.0
        %2263 = vadd.xlane.f32.xlu0 %v2262
        %v2264 = vpop.xlane.xlu0 %2263
        %v2265 = vrcp.pop %v2264
        %v2266 = vmul.f32 %v2261, %v2265
        %2267 = vst.msk [vmem:[%s1201] sm:$0x1] %vm1975, %v2266
        %v2268 = vld [vmem:[%s43] sm:$0xff]
        %2270 = vset.pattern.permute.xlu0 0
        %2271 = vperm.xlu0 %2270, %v2268
        %v2272 = vpop.permute.xlu0 %2271
        %v2274 = vmul.f32 %v1527, %v2272
        %v2275 = vld [vmem:[%s45] sm:$0xff]
        %2277 = vset.pattern.permute.xlu0 0
        %2278 = vperm.xlu0 %2277, %v2275
        %v2279 = vpop.permute.xlu0 %2278
        %v2281 = vmul.f32 %v1705, %v2279
        %v2282 = vadd.f32 %v2274, %v2281
        %v2283 = vsel %vm1258, %v2282, 0.0
        %v2284 = vrot.slane %v2283, 4
        %v2285 = vadd.f32 %v2283, %v2284
        %v2286 = vrot.slane %v2285, 2
        %v2287 = vadd.f32 %v2285, %v2286
        %v2288 = vrot.slane %v2287, 1
        %v2289 = vadd.f32 %v2287, %v2288
        %v2290 = vld [vmem:[#allocation2] sm:$0x1]
        %2292 = vset.pattern.permute.xlu0 0
        %2293 = vperm.xlu0 %2292, %v2290
        %v2294 = vpop.permute.xlu0 %2293
        %v2296 = vlaneseq
        %v2297 = vshrl.u32 %v2296, 7
        %v2298 = vsub.s32 0, %v2297
        %v2299 = vrot.slane %v2294, %v2298
        %v2300 = vadd.f32 %v2289, %v2299
        %v2301 = vld [vmem:[%s49] sm:$0xff]
        %v2302 = vld [vmem:[%s49 + $0x8] sm:$0xff]
        %v2303 = vld [vmem:[%s49 + $0x10] sm:$0xff]
        %v2304 = vld [vmem:[%s49 + $0x18] sm:$0xff]
        %v2305 = vld [vmem:[%s49 + $0x20] sm:$0xff]
        %v2306 = vld [vmem:[%s49 + $0x28] sm:$0xff]
        %v2307 = vld [vmem:[%s49 + $0x30] sm:$0xff]
        %v2308 = vld [vmem:[%s49 + $0x38] sm:$0xff]
        %v2309 = vld [vmem:[%s49 + $0x40] sm:$0xff]
        %v2310 = vld [vmem:[%s49 + $0x48] sm:$0xff]
        %v2311 = vld [vmem:[%s49 + $0x50] sm:$0xff]
        %v2312 = vld [vmem:[%s49 + $0x58] sm:$0xff]
        %v2313 = vld [vmem:[%s49 + $0x60] sm:$0xff]
        %v2314 = vld [vmem:[%s49 + $0x68] sm:$0xff]
        %v2315 = vld [vmem:[%s49 + $0x70] sm:$0xf]
        %v2316 = vld [vmem:[%s51] sm:$0x1]
        %v2318 = vsel %vm1258, %v2300, 0
        %v2321 = vsel %vm1445, %v2315, 0
        %2323 = vmatprep.subr.mxu0 0.0
        %2324 = vmatpush1.msra.mxu0 %v2301
        %2325 = vmatprep.subr.mxu0 0.0
        %2326 = vmatpush1.msra.mxu0 %v2302
        %2327 = vmatprep.subr.mxu0 0.0
        %2328 = vmatpush1.msra.mxu0 %v2303
        %2329 = vmatprep.subr.mxu0 0.0
        %2330 = vmatpush1.msra.mxu0 %v2304
        %2331 = vmatprep.subr.mxu0 0.0
        %2332 = vmatpush1.msra.mxu0 %v2305
        %2333 = vmatprep.subr.mxu0 0.0
        %2334 = vmatpush1.msra.mxu0 %v2306
        %2335 = vmatprep.subr.mxu0 0.0
        %2336 = vmatpush1.msra.mxu0 %v2307
        %2337 = vmatprep.subr.mxu0 0.0
        %2338 = vmatpush1.msra.mxu0 %v2308
        %2339 = vmatprep.subr.mxu0 0.0
        %2340 = vmatpush1.msra.mxu0 %v2309
        %2341 = vmatprep.subr.mxu0 0.0
        %2342 = vmatpush1.msra.mxu0 %v2310
        %2343 = vmatprep.subr.mxu0 0.0
        %2344 = vmatpush1.msra.mxu0 %v2311
        %2345 = vmatprep.subr.mxu0 0.0
        %2346 = vmatpush1.msra.mxu0 %v2312
        %2347 = vmatprep.subr.mxu0 0.0
        %2348 = vmatpush1.msra.mxu0 %v2313
        %2349 = vmatprep.subr.mxu0 0.0
        %2350 = vmatpush1.msra.mxu0 %v2314
        %2351 = vmatprep.subr.mxu0 0.0
        %2352 = vmatpush1.msra.mxu0 %v2321
        %2353 = vmatprep.subr.mxu0 0.0
        %2354 = vmatpush1.msra.mxu0 0.0
        %2355 = vmatprep.subr.mxu0 0.0
        %2356 = vmatpush1.msra.mxu0 0.0
        %2357 = vmatprep.subr.mxu0 0.0
        %2358 = vmatpush1.msra.mxu0 0.0
        %2359 = vmatprep.subr.mxu0 0.0
        %2360 = vmatpush1.msra.mxu0 0.0
        %2361 = vmatprep.subr.mxu0 0.0
        %2362 = vmatpush1.msra.mxu0 0.0
        %2363 = vmatprep.subr.mxu0 0.0
        %2364 = vmatpush1.msra.mxu0 0.0
        %2365 = vmatprep.subr.mxu0 0.0
        %2366 = vmatpush1.msra.mxu0 0.0
        %2367 = vmatprep.subr.mxu0 0.0
        %2368 = vmatpush1.msra.mxu0 0.0
        %2369 = vmatprep.subr.mxu0 0.0
        %2370 = vmatpush1.msra.mxu0 0.0
        %2371 = vmatprep.subr.mxu0 0.0
        %2372 = vmatpush1.msra.mxu0 0.0
        %2373 = vmatprep.subr.mxu0 0.0
        %2374 = vmatpush1.msra.mxu0 0.0
        %2375 = vmatprep.subr.mxu0 0.0
        %2376 = vmatpush1.msra.mxu0 0.0
        %2377 = vmatprep.subr.mxu0 0.0
        %2378 = vmatpush1.msra.mxu0 0.0
        %2379 = vmatprep.subr.mxu0 0.0
        %2380 = vmatpush1.msra.mxu0 0.0
        %2381 = vmatprep.subr.mxu0 0.0
        %2382 = vmatpush1.msra.mxu0 0.0
        %2383 = vmatprep.subr.mxu0 0.0
        %2384 = vmatpush1.msra.mxu0 0.0
        %2385 = vmatprep.subr.mxu0 0.0
        %2386 = vmatpush1.msra.mxu0 0.0
        %2387 = vmatprep.mubr.f32.mxu0 0.0
        %2388 = vmatmul.mubr.f32.gmra.mrb[0].mxu0 %v2318
        %v2389 = vpop.f32.mrb[0].mxu0
        %v2390 = vadd.f32 %v2316, %v2389
        %v2391 = vpop.f32.mrb[0].mxu0
        %2392 = vdwg.mxu0
        %v2393 = vmax.f32 %v2390, 0.0
        %v2394 = vld [vmem:[%s53] sm:$0xff]
        %v2395 = vld [vmem:[%s53 + $0x8] sm:$0xff]
        %v2396 = vld [vmem:[%s55] sm:$0x1]
        %vm2397 = vcmask 130048
        %v2399 = vsel %vm2397, %v2393, 0
        %2401 = vmatprep.subr.mxu0 0.0
        %2402 = vmatpush1.msra.mxu0 %v2394
        %2403 = vmatprep.subr.mxu0 0.0
        %2404 = vmatpush1.msra.mxu0 %v2395
        %2405 = vmatprep.subr.mxu0 0.0
        %2406 = vmatpush1.msra.mxu0 0.0
        %2407 = vmatprep.subr.mxu0 0.0
        %2408 = vmatpush1.msra.mxu0 0.0
        %2409 = vmatprep.subr.mxu0 0.0
        %2410 = vmatpush1.msra.mxu0 0.0
        %2411 = vmatprep.subr.mxu0 0.0
        %2412 = vmatpush1.msra.mxu0 0.0
        %2413 = vmatprep.subr.mxu0 0.0
        %2414 = vmatpush1.msra.mxu0 0.0
        %2415 = vmatprep.subr.mxu0 0.0
        %2416 = vmatpush1.msra.mxu0 0.0
        %2417 = vmatprep.subr.mxu0 0.0
        %2418 = vmatpush1.msra.mxu0 0.0
        %2419 = vmatprep.subr.mxu0 0.0
        %2420 = vmatpush1.msra.mxu0 0.0
        %2421 = vmatprep.subr.mxu0 0.0
        %2422 = vmatpush1.msra.mxu0 0.0
        %2423 = vmatprep.subr.mxu0 0.0
        %2424 = vmatpush1.msra.mxu0 0.0
        %2425 = vmatprep.subr.mxu0 0.0
        %2426 = vmatpush1.msra.mxu0 0.0
        %2427 = vmatprep.subr.mxu0 0.0
        %2428 = vmatpush1.msra.mxu0 0.0
        %2429 = vmatprep.subr.mxu0 0.0
        %2430 = vmatpush1.msra.mxu0 0.0
        %2431 = vmatprep.subr.mxu0 0.0
        %2432 = vmatpush1.msra.mxu0 0.0
        %2433 = vmatprep.subr.mxu0 0.0
        %2434 = vmatpush1.msra.mxu0 0.0
        %2435 = vmatprep.subr.mxu0 0.0
        %2436 = vmatpush1.msra.mxu0 0.0
        %2437 = vmatprep.subr.mxu0 0.0
        %2438 = vmatpush1.msra.mxu0 0.0
        %2439 = vmatprep.subr.mxu0 0.0
        %2440 = vmatpush1.msra.mxu0 0.0
        %2441 = vmatprep.subr.mxu0 0.0
        %2442 = vmatpush1.msra.mxu0 0.0
        %2443 = vmatprep.subr.mxu0 0.0
        %2444 = vmatpush1.msra.mxu0 0.0
        %2445 = vmatprep.subr.mxu0 0.0
        %2446 = vmatpush1.msra.mxu0 0.0
        %2447 = vmatprep.subr.mxu0 0.0
        %2448 = vmatpush1.msra.mxu0 0.0
        %2449 = vmatprep.subr.mxu0 0.0
        %2450 = vmatpush1.msra.mxu0 0.0
        %2451 = vmatprep.subr.mxu0 0.0
        %2452 = vmatpush1.msra.mxu0 0.0
        %2453 = vmatprep.subr.mxu0 0.0
        %2454 = vmatpush1.msra.mxu0 0.0
        %2455 = vmatprep.subr.mxu0 0.0
        %2456 = vmatpush1.msra.mxu0 0.0
        %2457 = vmatprep.subr.mxu0 0.0
        %2458 = vmatpush1.msra.mxu0 0.0
        %2459 = vmatprep.subr.mxu0 0.0
        %2460 = vmatpush1.msra.mxu0 0.0
        %2461 = vmatprep.subr.mxu0 0.0
        %2462 = vmatpush1.msra.mxu0 0.0
        %2463 = vmatprep.subr.mxu0 0.0
        %2464 = vmatpush1.msra.mxu0 0.0
        %2465 = vmatprep.mubr.f32.mxu0 0.0
        %2466 = vmatmul.mubr.f32.gmra.mrb[0].mxu0 %v2399
        %v2467 = vpop.f32.mrb[0].mxu0
        %v2468 = vadd.f32 %v2396, %v2467
        %v2469 = vpop.f32.mrb[0].mxu0
        %2470 = vdwg.mxu0
        %v2471 = vmax.f32 %v2468, 0.0
        %vm2472 = vcmask 942080
        %2473 = vst.msk [vmem:[%s1207] sm:$0x1] %vm2472, %v2471
        %v2474 = vld [vmem:[%s1242] sm:$0xff]
        %v2475 = vld [vmem:[%s1242 + $0x8] sm:$0xff]
        %v2476 = vld [vmem:[%s1242 + $0x10] sm:$0xff]
        %v2477 = vld [vmem:[%s1242 + $0x18] sm:$0xff]
        %v2478 = vld [vmem:[%s1242 + $0x20] sm:$0xff]
        %v2479 = vld [vmem:[%s1242 + $0x28] sm:$0xff]
        %v2480 = vld [vmem:[%s1242 + $0x30] sm:$0xff]
        %v2481 = vld [vmem:[%s1242 + $0x38] sm:$0xff]
        %v2482 = vld [vmem:[%s1242 + $0x40] sm:$0xff]
        %v2483 = vld [vmem:[%s1242 + $0x48] sm:$0xff]
        %v2484 = vld [vmem:[%s1242 + $0x50] sm:$0xff]
        %v2485 = vld [vmem:[%s1242 + $0x58] sm:$0xff]
        %v2486 = vld [vmem:[%s1242 + $0x60] sm:$0xff]
        %v2487 = vld [vmem:[%s1242 + $0x68] sm:$0xff]
        %v2488 = vld [vmem:[%s1242 + $0x70] sm:$0x33]
        %v2489 = vunpack.c.l.bf16 %v2474
        %v2490 = vunpack.c.h.bf16 %v2474
        %v2491 = vunpack.c.l.bf16 %v2475
        %v2492 = vunpack.c.h.bf16 %v2475
        %v2493 = vunpack.c.l.bf16 %v2476
        %v2494 = vunpack.c.h.bf16 %v2476
        %v2495 = vunpack.c.l.bf16 %v2477
        %v2496 = vunpack.c.h.bf16 %v2477
        %v2497 = vunpack.c.l.bf16 %v2478
        %v2498 = vunpack.c.h.bf16 %v2478
        %v2499 = vunpack.c.l.bf16 %v2479
        %v2500 = vunpack.c.h.bf16 %v2479
        %v2501 = vunpack.c.l.bf16 %v2480
        %v2502 = vunpack.c.h.bf16 %v2480
        %v2503 = vunpack.c.l.bf16 %v2481
        %v2504 = vunpack.c.h.bf16 %v2481
        %v2505 = vunpack.c.l.bf16 %v2482
        %v2506 = vunpack.c.h.bf16 %v2482
        %v2507 = vunpack.c.l.bf16 %v2483
        %v2508 = vunpack.c.h.bf16 %v2483
        %v2509 = vunpack.c.l.bf16 %v2484
        %v2510 = vunpack.c.h.bf16 %v2484
        %v2511 = vunpack.c.l.bf16 %v2485
        %v2512 = vunpack.c.h.bf16 %v2485
        %v2513 = vunpack.c.l.bf16 %v2486
        %v2514 = vunpack.c.h.bf16 %v2486
        %v2515 = vunpack.c.l.bf16 %v2487
        %v2516 = vunpack.c.h.bf16 %v2487
        %v2517 = vunpack.c.l.bf16 %v2488
        %v2518 = vunpack.c.h.bf16 %v2488
        %v2520 = vsel %vm1258, %v2471, 0
        %v2523 = vsel %vm1445, %v2517, 0
        %v2526 = vsel %vm1445, %v2518, 0
        %2528 = vmatprep.subr.mxu0 %v2490
        %2529 = vmatpush1.msra.mxu0 %v2489
        %2530 = vmatprep.subr.mxu0 %v2492
        %2531 = vmatpush1.msra.mxu0 %v2491
        %2532 = vmatprep.subr.mxu0 %v2494
        %2533 = vmatpush1.msra.mxu0 %v2493
        %2534 = vmatprep.subr.mxu0 %v2496
        %2535 = vmatpush1.msra.mxu0 %v2495
        %2536 = vmatprep.subr.mxu0 %v2498
        %2537 = vmatpush1.msra.mxu0 %v2497
        %2538 = vmatprep.subr.mxu0 %v2500
        %2539 = vmatpush1.msra.mxu0 %v2499
        %2540 = vmatprep.subr.mxu0 %v2502
        %2541 = vmatpush1.msra.mxu0 %v2501
        %2542 = vmatprep.subr.mxu0 %v2504
        %2543 = vmatpush1.msra.mxu0 %v2503
        %2544 = vmatprep.subr.mxu0 %v2506
        %2545 = vmatpush1.msra.mxu0 %v2505
        %2546 = vmatprep.subr.mxu0 %v2508
        %2547 = vmatpush1.msra.mxu0 %v2507
        %2548 = vmatprep.subr.mxu0 %v2510
        %2549 = vmatpush1.msra.mxu0 %v2509
        %2550 = vmatprep.subr.mxu0 %v2512
        %2551 = vmatpush1.msra.mxu0 %v2511
        %2552 = vmatprep.subr.mxu0 %v2514
        %2553 = vmatpush1.msra.mxu0 %v2513
        %2554 = vmatprep.subr.mxu0 %v2516
        %2555 = vmatpush1.msra.mxu0 %v2515
        %2556 = vmatprep.subr.mxu0 %v2526
        %2557 = vmatpush1.msra.mxu0 %v2523
        %2558 = vmatprep.subr.mxu0 0.0
        %2559 = vmatpush1.msra.mxu0 0.0
        %2560 = vmatprep.subr.mxu0 0.0
        %2561 = vmatpush1.msra.mxu0 0.0
        %2562 = vmatprep.subr.mxu0 0.0
        %2563 = vmatpush1.msra.mxu0 0.0
        %2564 = vmatprep.subr.mxu0 0.0
        %2565 = vmatpush1.msra.mxu0 0.0
        %2566 = vmatprep.subr.mxu0 0.0
        %2567 = vmatpush1.msra.mxu0 0.0
        %2568 = vmatprep.subr.mxu0 0.0
        %2569 = vmatpush1.msra.mxu0 0.0
        %2570 = vmatprep.subr.mxu0 0.0
        %2571 = vmatpush1.msra.mxu0 0.0
        %2572 = vmatprep.subr.mxu0 0.0
        %2573 = vmatpush1.msra.mxu0 0.0
        %2574 = vmatprep.subr.mxu0 0.0
        %2575 = vmatpush1.msra.mxu0 0.0
        %2576 = vmatprep.subr.mxu0 0.0
        %2577 = vmatpush1.msra.mxu0 0.0
        %2578 = vmatprep.subr.mxu0 0.0
        %2579 = vmatpush1.msra.mxu0 0.0
        %2580 = vmatprep.subr.mxu0 0.0
        %2581 = vmatpush1.msra.mxu0 0.0
        %2582 = vmatprep.subr.mxu0 0.0
        %2583 = vmatpush1.msra.mxu0 0.0
        %2584 = vmatprep.subr.mxu0 0.0
        %2585 = vmatpush1.msra.mxu0 0.0
        %2586 = vmatprep.subr.mxu0 0.0
        %2587 = vmatpush1.msra.mxu0 0.0
        %2588 = vmatprep.subr.mxu0 0.0
        %2589 = vmatpush1.msra.mxu0 0.0
        %2590 = vmatprep.subr.mxu0 0.0
        %2591 = vmatpush1.msra.mxu0 0.0
        %2592 = vmatprep.mubr.f32.mxu0 0.0
        %2593 = vmatmul.mubr.f32.gmra.mrb[0].mxu0 %v2520
        %v2594 = vpop.f32.mrb[0].mxu0
        %v2595 = vadd.f32 0.0, %v2594
        %v2596 = vpop.f32.mrb[0].mxu0
        %v2597 = vadd.f32 0.0, %v2596
        %2598 = vdwg.mxu0
        %v2599 = vadd.f32 %v1294, %v2595
        %v2600 = vrsqrt.pop %v2599
        %v2601 = vadd.f32 %v1344, %v2597
        %v2602 = vrsqrt.pop %v2601
        %v2603 = vld [vmem:[%s23] sm:$0xff]
        %vm2604 = vcmask 64512
        %v2606 = vsel %vm2604, %v2603, 0
        %2608 = vmatprep.subr.mxu0 0.0
        %2609 = vmatpush1.msra.mxu0 %v1527
        %2610 = vmatprep.subr.mxu0 0.0
        %2611 = vmatpush1.msra.mxu0 0.0
        %2612 = vmatprep.subr.mxu0 0.0
        %2613 = vmatpush1.msra.mxu0 0.0
        %2614 = vmatprep.subr.mxu0 0.0
        %2615 = vmatpush1.msra.mxu0 0.0
        %2616 = vmatprep.subr.mxu0 0.0
        %2617 = vmatpush1.msra.mxu0 0.0
        %2618 = vmatprep.subr.mxu0 0.0
        %2619 = vmatpush1.msra.mxu0 0.0
        %2620 = vmatprep.subr.mxu0 0.0
        %2621 = vmatpush1.msra.mxu0 0.0
        %2622 = vmatprep.subr.mxu0 0.0
        %2623 = vmatpush1.msra.mxu0 0.0
        %2624 = vmatprep.subr.mxu0 0.0
        %2625 = vmatpush1.msra.mxu0 0.0
        %2626 = vmatprep.subr.mxu0 0.0
        %2627 = vmatpush1.msra.mxu0 0.0
        %2628 = vmatprep.subr.mxu0 0.0
        %2629 = vmatpush1.msra.mxu0 0.0
        %2630 = vmatprep.subr.mxu0 0.0
        %2631 = vmatpush1.msra.mxu0 0.0
        %2632 = vmatprep.subr.mxu0 0.0
        %2633 = vmatpush1.msra.mxu0 0.0
        %2634 = vmatprep.subr.mxu0 0.0
        %2635 = vmatpush1.msra.mxu0 0.0
        %2636 = vmatprep.subr.mxu0 0.0
        %2637 = vmatpush1.msra.mxu0 0.0
        %2638 = vmatprep.subr.mxu0 0.0
        %2639 = vmatpush1.msra.mxu0 0.0
        %2640 = vmatprep.subr.mxu0 0.0
        %2641 = vmatpush1.msra.mxu0 0.0
        %2642 = vmatprep.subr.mxu0 0.0
        %2643 = vmatpush1.msra.mxu0 0.0
        %2644 = vmatprep.subr.mxu0 0.0
        %2645 = vmatpush1.msra.mxu0 0.0
        %2646 = vmatprep.subr.mxu0 0.0
        %2647 = vmatpush1.msra.mxu0 0.0
        %2648 = vmatprep.subr.mxu0 0.0
        %2649 = vmatpush1.msra.mxu0 0.0
        %2650 = vmatprep.subr.mxu0 0.0
        %2651 = vmatpush1.msra.mxu0 0.0
        %2652 = vmatprep.subr.mxu0 0.0
        %2653 = vmatpush1.msra.mxu0 0.0
        %2654 = vmatprep.subr.mxu0 0.0
        %2655 = vmatpush1.msra.mxu0 0.0
        %2656 = vmatprep.subr.mxu0 0.0
        %2657 = vmatpush1.msra.mxu0 0.0
        %2658 = vmatprep.subr.mxu0 0.0
        %2659 = vmatpush1.msra.mxu0 0.0
        %2660 = vmatprep.subr.mxu0 0.0
        %2661 = vmatpush1.msra.mxu0 0.0
        %2662 = vmatprep.subr.mxu0 0.0
        %2663 = vmatpush1.msra.mxu0 0.0
        %2664 = vmatprep.subr.mxu0 0.0
        %2665 = vmatpush1.msra.mxu0 0.0
        %2666 = vmatprep.subr.mxu0 0.0
        %2667 = vmatpush1.msra.mxu0 0.0
        %2668 = vmatprep.subr.mxu0 0.0
        %2669 = vmatpush1.msra.mxu0 0.0
        %2670 = vmatprep.subr.mxu0 0.0
        %2671 = vmatpush1.msra.mxu0 0.0
        %2672 = vmatprep.mubr.f32.mxu0 0.0
        %2673 = vmatmul.mubr.f32.gmra.mrb[0].mxu0 %v2606
        %v2674 = vpop.f32.mrb[0].mxu0
        %v2675 = vadd.f32 0.0, %v2674
        %v2676 = vpop.f32.mrb[0].mxu0
        %2677 = vdwg.mxu0
        %v2678 = vlaneseq
        %v2679 = vshrl.u32 %v2678, 7
        %v2680 = vsub.s32 0, %v2679
        %v2681 = vrot.slane %v2600, %v2680
        %v2682 = vmul.f32 %v2675, %v2681
        %2683 = vmatprep.subr.mxu0 0.0
        %2684 = vmatpush1.msra.mxu0 %v1705
        %2685 = vmatprep.subr.mxu0 0.0
        %2686 = vmatpush1.msra.mxu0 0.0
        %2687 = vmatprep.subr.mxu0 0.0
        %2688 = vmatpush1.msra.mxu0 0.0
        %2689 = vmatprep.subr.mxu0 0.0
        %2690 = vmatpush1.msra.mxu0 0.0
        %2691 = vmatprep.subr.mxu0 0.0
        %2692 = vmatpush1.msra.mxu0 0.0
        %2693 = vmatprep.subr.mxu0 0.0
        %2694 = vmatpush1.msra.mxu0 0.0
        %2695 = vmatprep.subr.mxu0 0.0
        %2696 = vmatpush1.msra.mxu0 0.0
        %2697 = vmatprep.subr.mxu0 0.0
        %2698 = vmatpush1.msra.mxu0 0.0
        %2699 = vmatprep.subr.mxu0 0.0
        %2700 = vmatpush1.msra.mxu0 0.0
        %2701 = vmatprep.subr.mxu0 0.0
        %2702 = vmatpush1.msra.mxu0 0.0
        %2703 = vmatprep.subr.mxu0 0.0
        %2704 = vmatpush1.msra.mxu0 0.0
        %2705 = vmatprep.subr.mxu0 0.0
        %2706 = vmatpush1.msra.mxu0 0.0
        %2707 = vmatprep.subr.mxu0 0.0
        %2708 = vmatpush1.msra.mxu0 0.0
        %2709 = vmatprep.subr.mxu0 0.0
        %2710 = vmatpush1.msra.mxu0 0.0
        %2711 = vmatprep.subr.mxu0 0.0
        %2712 = vmatpush1.msra.mxu0 0.0
        %2713 = vmatprep.subr.mxu0 0.0
        %2714 = vmatpush1.msra.mxu0 0.0
        %2715 = vmatprep.subr.mxu0 0.0
        %2716 = vmatpush1.msra.mxu0 0.0
        %2717 = vmatprep.subr.mxu0 0.0
        %2718 = vmatpush1.msra.mxu0 0.0
        %2719 = vmatprep.subr.mxu0 0.0
        %2720 = vmatpush1.msra.mxu0 0.0
        %2721 = vmatprep.subr.mxu0 0.0
        %2722 = vmatpush1.msra.mxu0 0.0
        %2723 = vmatprep.subr.mxu0 0.0
        %2724 = vmatpush1.msra.mxu0 0.0
        %2725 = vmatprep.subr.mxu0 0.0
        %2726 = vmatpush1.msra.mxu0 0.0
        %2727 = vmatprep.subr.mxu0 0.0
        %2728 = vmatpush1.msra.mxu0 0.0
        %2729 = vmatprep.subr.mxu0 0.0
        %2730 = vmatpush1.msra.mxu0 0.0
        %2731 = vmatprep.subr.mxu0 0.0
        %2732 = vmatpush1.msra.mxu0 0.0
        %2733 = vmatprep.subr.mxu0 0.0
        %2734 = vmatpush1.msra.mxu0 0.0
        %2735 = vmatprep.subr.mxu0 0.0
        %2736 = vmatpush1.msra.mxu0 0.0
        %2737 = vmatprep.subr.mxu0 0.0
        %2738 = vmatpush1.msra.mxu0 0.0
        %2739 = vmatprep.subr.mxu0 0.0
        %2740 = vmatpush1.msra.mxu0 0.0
        %2741 = vmatprep.subr.mxu0 0.0
        %2742 = vmatpush1.msra.mxu0 0.0
        %2743 = vmatprep.subr.mxu0 0.0
        %2744 = vmatpush1.msra.mxu0 0.0
        %2745 = vmatprep.subr.mxu0 0.0
        %2746 = vmatpush1.msra.mxu0 0.0
        %2747 = vmatprep.mubr.f32.mxu0 0.0
        %2748 = vmatmul.mubr.f32.gmra.mrb[0].mxu0 %v2606
        %v2749 = vpop.f32.mrb[0].mxu0
        %v2750 = vadd.f32 0.0, %v2749
        %v2751 = vpop.f32.mrb[0].mxu0
        %2752 = vdwg.mxu0
        %v2753 = vlaneseq
        %v2754 = vshrl.u32 %v2753, 7
        %v2755 = vsub.s32 0, %v2754
        %v2756 = vrot.slane %v2602, %v2755
        %v2757 = vmul.f32 %v2750, %v2756
        %v2758 = vld [vmem:[%s1232] sm:$0xf]
        %v2759 = vld [vmem:[%s1232 + $0x4] sm:$0xf]
        %v2760 = vld [vmem:[%s1232 + $0x8] sm:$0xf]
        %v2761 = vld [vmem:[%s1232 + $0xc] sm:$0xf]
        %v2762 = vld [vmem:[%s1232 + $0x10] sm:$0xf]
        %v2763 = vld [vmem:[%s1232 + $0x14] sm:$0xf]
        %v2764 = vld [vmem:[%s1232 + $0x18] sm:$0xf]
        %v2765 = vld [vmem:[%s1232 + $0x1c] sm:$0xf]
        %v2766 = vld [vmem:[%s1232 + $0x20] sm:$0xf]
        %v2767 = vld [vmem:[%s1232 + $0x24] sm:$0xf]
        %v2768 = vld [vmem:[%s1232 + $0x28] sm:$0xf]
        %v2769 = vld [vmem:[%s1232 + $0x2c] sm:$0xf]
        %v2770 = vld [vmem:[%s1232 + $0x30] sm:$0xf]
        %v2771 = vld [vmem:[%s1232 + $0x34] sm:$0xf]
        %v2772 = vld [vmem:[%s1232 + $0x38] sm:$0x3]
        %v2773 = vunpack.c.l.bf16 %v2758
        %v2774 = vunpack.c.l.bf16 %v2759
        %v2775 = vunpack.c.l.bf16 %v2760
        %v2776 = vunpack.c.l.bf16 %v2761
        %v2777 = vunpack.c.l.bf16 %v2762
        %v2778 = vunpack.c.l.bf16 %v2763
        %v2779 = vunpack.c.l.bf16 %v2764
        %v2780 = vunpack.c.l.bf16 %v2765
        %v2781 = vunpack.c.l.bf16 %v2766
        %v2782 = vunpack.c.l.bf16 %v2767
        %v2783 = vunpack.c.l.bf16 %v2768
        %v2784 = vunpack.c.l.bf16 %v2769
        %v2785 = vunpack.c.l.bf16 %v2770
        %v2786 = vunpack.c.l.bf16 %v2771
        %v2787 = vunpack.c.l.bf16 %v2772
        %v2788 = vld [vmem:[%s1237] sm:$0xf]
        %v2789 = vld [vmem:[%s1237 + $0x4] sm:$0xf]
        %v2790 = vld [vmem:[%s1237 + $0x8] sm:$0xf]
        %v2791 = vld [vmem:[%s1237 + $0xc] sm:$0xf]
        %v2792 = vld [vmem:[%s1237 + $0x10] sm:$0xf]
        %v2793 = vld [vmem:[%s1237 + $0x14] sm:$0xf]
        %v2794 = vld [vmem:[%s1237 + $0x18] sm:$0xf]
        %v2795 = vld [vmem:[%s1237 + $0x1c] sm:$0xf]
        %v2796 = vld [vmem:[%s1237 + $0x20] sm:$0xf]
        %v2797 = vld [vmem:[%s1237 + $0x24] sm:$0xf]
        %v2798 = vld [vmem:[%s1237 + $0x28] sm:$0xf]
        %v2799 = vld [vmem:[%s1237 + $0x2c] sm:$0xf]
        %v2800 = vld [vmem:[%s1237 + $0x30] sm:$0xf]
        %v2801 = vld [vmem:[%s1237 + $0x34] sm:$0xf]
        %v2802 = vld [vmem:[%s1237 + $0x38] sm:$0x3]
        %v2803 = vunpack.c.l.bf16 %v2788
        %v2804 = vunpack.c.l.bf16 %v2789
        %v2805 = vunpack.c.l.bf16 %v2790
        %v2806 = vunpack.c.l.bf16 %v2791
        %v2807 = vunpack.c.l.bf16 %v2792
        %v2808 = vunpack.c.l.bf16 %v2793
        %v2809 = vunpack.c.l.bf16 %v2794
        %v2810 = vunpack.c.l.bf16 %v2795
        %v2811 = vunpack.c.l.bf16 %v2796
        %v2812 = vunpack.c.l.bf16 %v2797
        %v2813 = vunpack.c.l.bf16 %v2798
        %v2814 = vunpack.c.l.bf16 %v2799
        %v2815 = vunpack.c.l.bf16 %v2800
        %v2816 = vunpack.c.l.bf16 %v2801
        %v2817 = vunpack.c.l.bf16 %v2802
        %v2819 = vsel %vm1258, %v2757, 0
        %v2822 = vsel %vm1445, %v2817, 0
        %2824 = vmatprep.subr.mxu0 0.0
        %2825 = vmatpush1.msra.mxu0 %v2803
        %2826 = vmatprep.subr.mxu0 0.0
        %2827 = vmatpush1.msra.mxu0 %v2804
        %2828 = vmatprep.subr.mxu0 0.0
        %2829 = vmatpush1.msra.mxu0 %v2805
        %2830 = vmatprep.subr.mxu0 0.0
        %2831 = vmatpush1.msra.mxu0 %v2806
        %2832 = vmatprep.subr.mxu0 0.0
        %2833 = vmatpush1.msra.mxu0 %v2807
        %2834 = vmatprep.subr.mxu0 0.0
        %2835 = vmatpush1.msra.mxu0 %v2808
        %2836 = vmatprep.subr.mxu0 0.0
        %2837 = vmatpush1.msra.mxu0 %v2809
        %2838 = vmatprep.subr.mxu0 0.0
        %2839 = vmatpush1.msra.mxu0 %v2810
        %2840 = vmatprep.subr.mxu0 0.0
        %2841 = vmatpush1.msra.mxu0 %v2811
        %2842 = vmatprep.subr.mxu0 0.0
        %2843 = vmatpush1.msra.mxu0 %v2812
        %2844 = vmatprep.subr.mxu0 0.0
        %2845 = vmatpush1.msra.mxu0 %v2813
        %2846 = vmatprep.subr.mxu0 0.0
        %2847 = vmatpush1.msra.mxu0 %v2814
        %2848 = vmatprep.subr.mxu0 0.0
        %2849 = vmatpush1.msra.mxu0 %v2815
        %2850 = vmatprep.subr.mxu0 0.0
        %2851 = vmatpush1.msra.mxu0 %v2816
        %2852 = vmatprep.subr.mxu0 0.0
        %2853 = vmatpush1.msra.mxu0 %v2822
        %2854 = vmatprep.subr.mxu0 0.0
        %2855 = vmatpush1.msra.mxu0 0.0
        %2856 = vmatprep.subr.mxu0 0.0
        %2857 = vmatpush1.msra.mxu0 0.0
        %2858 = vmatprep.subr.mxu0 0.0
        %2859 = vmatpush1.msra.mxu0 0.0
        %2860 = vmatprep.subr.mxu0 0.0
        %2861 = vmatpush1.msra.mxu0 0.0
        %2862 = vmatprep.subr.mxu0 0.0
        %2863 = vmatpush1.msra.mxu0 0.0
        %2864 = vmatprep.subr.mxu0 0.0
        %2865 = vmatpush1.msra.mxu0 0.0
        %2866 = vmatprep.subr.mxu0 0.0
        %2867 = vmatpush1.msra.mxu0 0.0
        %2868 = vmatprep.subr.mxu0 0.0
        %2869 = vmatpush1.msra.mxu0 0.0
        %2870 = vmatprep.subr.mxu0 0.0
        %2871 = vmatpush1.msra.mxu0 0.0
        %2872 = vmatprep.subr.mxu0 0.0
        %2873 = vmatpush1.msra.mxu0 0.0
        %2874 = vmatprep.subr.mxu0 0.0
        %2875 = vmatpush1.msra.mxu0 0.0
        %2876 = vmatprep.subr.mxu0 0.0
        %2877 = vmatpush1.msra.mxu0 0.0
        %2878 = vmatprep.subr.mxu0 0.0
        %2879 = vmatpush1.msra.mxu0 0.0
        %2880 = vmatprep.subr.mxu0 0.0
        %2881 = vmatpush1.msra.mxu0 0.0
        %2882 = vmatprep.subr.mxu0 0.0
        %2883 = vmatpush1.msra.mxu0 0.0
        %2884 = vmatprep.subr.mxu0 0.0
        %2885 = vmatpush1.msra.mxu0 0.0
        %2886 = vmatprep.subr.mxu0 0.0
        %2887 = vmatpush1.msra.mxu0 0.0
        %2888 = vmatprep.mubr.f32.mxu0 0.0
        %2889 = vmatmul.mubr.f32.gmra.mrb[0].mxu0 %v2819
        %v2890 = vpop.f32.mrb[0].mxu0
        %v2891 = vadd.f32 0.0, %v2890
        %v2892 = vpop.f32.mrb[0].mxu0
        %2893 = vdwg.mxu0
        %v2895 = vsel %vm1258, %v2682, 0
        %v2898 = vsel %vm1445, %v2787, 0
        %2900 = vmatprep.subr.mxu0 0.0
        %2901 = vmatpush1.msra.mxu0 %v2773
        %2902 = vmatprep.subr.mxu0 0.0
        %2903 = vmatpush1.msra.mxu0 %v2774
        %2904 = vmatprep.subr.mxu0 0.0
        %2905 = vmatpush1.msra.mxu0 %v2775
        %2906 = vmatprep.subr.mxu0 0.0
        %2907 = vmatpush1.msra.mxu0 %v2776
        %2908 = vmatprep.subr.mxu0 0.0
        %2909 = vmatpush1.msra.mxu0 %v2777
        %2910 = vmatprep.subr.mxu0 0.0
        %2911 = vmatpush1.msra.mxu0 %v2778
        %2912 = vmatprep.subr.mxu0 0.0
        %2913 = vmatpush1.msra.mxu0 %v2779
        %2914 = vmatprep.subr.mxu0 0.0
        %2915 = vmatpush1.msra.mxu0 %v2780
        %2916 = vmatprep.subr.mxu0 0.0
        %2917 = vmatpush1.msra.mxu0 %v2781
        %2918 = vmatprep.subr.mxu0 0.0
        %2919 = vmatpush1.msra.mxu0 %v2782
        %2920 = vmatprep.subr.mxu0 0.0
        %2921 = vmatpush1.msra.mxu0 %v2783
        %2922 = vmatprep.subr.mxu0 0.0
        %2923 = vmatpush1.msra.mxu0 %v2784
        %2924 = vmatprep.subr.mxu0 0.0
        %2925 = vmatpush1.msra.mxu0 %v2785
        %2926 = vmatprep.subr.mxu0 0.0
        %2927 = vmatpush1.msra.mxu0 %v2786
        %2928 = vmatprep.subr.mxu0 0.0
        %2929 = vmatpush1.msra.mxu0 %v2898
        %2930 = vmatprep.subr.mxu0 0.0
        %2931 = vmatpush1.msra.mxu0 0.0
        %2932 = vmatprep.subr.mxu0 0.0
        %2933 = vmatpush1.msra.mxu0 0.0
        %2934 = vmatprep.subr.mxu0 0.0
        %2935 = vmatpush1.msra.mxu0 0.0
        %2936 = vmatprep.subr.mxu0 0.0
        %2937 = vmatpush1.msra.mxu0 0.0
        %2938 = vmatprep.subr.mxu0 0.0
        %2939 = vmatpush1.msra.mxu0 0.0
        %2940 = vmatprep.subr.mxu0 0.0
        %2941 = vmatpush1.msra.mxu0 0.0
        %2942 = vmatprep.subr.mxu0 0.0
        %2943 = vmatpush1.msra.mxu0 0.0
        %2944 = vmatprep.subr.mxu0 0.0
        %2945 = vmatpush1.msra.mxu0 0.0
        %2946 = vmatprep.subr.mxu0 0.0
        %2947 = vmatpush1.msra.mxu0 0.0
        %2948 = vmatprep.subr.mxu0 0.0
        %2949 = vmatpush1.msra.mxu0 0.0
        %2950 = vmatprep.subr.mxu0 0.0
        %2951 = vmatpush1.msra.mxu0 0.0
        %2952 = vmatprep.subr.mxu0 0.0
        %2953 = vmatpush1.msra.mxu0 0.0
        %2954 = vmatprep.subr.mxu0 0.0
        %2955 = vmatpush1.msra.mxu0 0.0
        %2956 = vmatprep.subr.mxu0 0.0
        %2957 = vmatpush1.msra.mxu0 0.0
        %2958 = vmatprep.subr.mxu0 0.0
        %2959 = vmatpush1.msra.mxu0 0.0
        %2960 = vmatprep.subr.mxu0 0.0
        %2961 = vmatpush1.msra.mxu0 0.0
        %2962 = vmatprep.subr.mxu0 0.0
        %2963 = vmatpush1.msra.mxu0 0.0
        %2964 = vmatprep.mubr.f32.mxu0 0.0
        %2965 = vmatmul.mubr.f32.gmra.mrb[0].mxu0 %v2895
        %v2966 = vpop.f32.mrb[0].mxu0
        %v2967 = vadd.f32 %v2891, %v2966
        %v2968 = vpop.f32.mrb[0].mxu0
        %2969 = vdwg.mxu0
        %v2970 = vlaneseq
        %v2971 = vshrl.u32 %v2970, 7
        %v2972 = vsub.s32 0, %v2971
        %v2973 = vrot.slane %v2471, %v2972
        %v2974 = vmul.f32 %v2967, %v2973
        %v2976 = vsel %vm1258, %v2974, 0
        %2978 = vmatprep.subr.mxu0 %v2490
        %2979 = vmatpush1.msra.mxu0 %v2489
        %2980 = vmatprep.subr.mxu0 %v2492
        %2981 = vmatpush1.msra.mxu0 %v2491
        %2982 = vmatprep.subr.mxu0 %v2494
        %2983 = vmatpush1.msra.mxu0 %v2493
        %2984 = vmatprep.subr.mxu0 %v2496
        %2985 = vmatpush1.msra.mxu0 %v2495
        %2986 = vmatprep.subr.mxu0 %v2498
        %2987 = vmatpush1.msra.mxu0 %v2497
        %2988 = vmatprep.subr.mxu0 %v2500
        %2989 = vmatpush1.msra.mxu0 %v2499
        %2990 = vmatprep.subr.mxu0 %v2502
        %2991 = vmatpush1.msra.mxu0 %v2501
        %2992 = vmatprep.subr.mxu0 %v2504
        %2993 = vmatpush1.msra.mxu0 %v2503
        %2994 = vmatprep.subr.mxu0 %v2506
        %2995 = vmatpush1.msra.mxu0 %v2505
        %2996 = vmatprep.subr.mxu0 %v2508
        %2997 = vmatpush1.msra.mxu0 %v2507
        %2998 = vmatprep.subr.mxu0 %v2510
        %2999 = vmatpush1.msra.mxu0 %v2509
        %3000 = vmatprep.subr.mxu0 %v2512
        %3001 = vmatpush1.msra.mxu0 %v2511
        %3002 = vmatprep.subr.mxu0 %v2514
        %3003 = vmatpush1.msra.mxu0 %v2513
        %3004 = vmatprep.subr.mxu0 %v2516
        %3005 = vmatpush1.msra.mxu0 %v2515
        %3006 = vmatprep.subr.mxu0 %v2526
        %3007 = vmatpush1.msra.mxu0 %v2523
        %3008 = vmatprep.subr.mxu0 0.0
        %3009 = vmatpush1.msra.mxu0 0.0
        %3010 = vmatprep.subr.mxu0 0.0
        %3011 = vmatpush1.msra.mxu0 0.0
        %3012 = vmatprep.subr.mxu0 0.0
        %3013 = vmatpush1.msra.mxu0 0.0
        %3014 = vmatprep.subr.mxu0 0.0
        %3015 = vmatpush1.msra.mxu0 0.0
        %3016 = vmatprep.subr.mxu0 0.0
        %3017 = vmatpush1.msra.mxu0 0.0
        %3018 = vmatprep.subr.mxu0 0.0
        %3019 = vmatpush1.msra.mxu0 0.0
        %3020 = vmatprep.subr.mxu0 0.0
        %3021 = vmatpush1.msra.mxu0 0.0
        %3022 = vmatprep.subr.mxu0 0.0
        %3023 = vmatpush1.msra.mxu0 0.0
        %3024 = vmatprep.subr.mxu0 0.0
        %3025 = vmatpush1.msra.mxu0 0.0
        %3026 = vmatprep.subr.mxu0 0.0
        %3027 = vmatpush1.msra.mxu0 0.0
        %3028 = vmatprep.subr.mxu0 0.0
        %3029 = vmatpush1.msra.mxu0 0.0
        %3030 = vmatprep.subr.mxu0 0.0
        %3031 = vmatpush1.msra.mxu0 0.0
        %3032 = vmatprep.subr.mxu0 0.0
        %3033 = vmatpush1.msra.mxu0 0.0
        %3034 = vmatprep.subr.mxu0 0.0
        %3035 = vmatpush1.msra.mxu0 0.0
        %3036 = vmatprep.subr.mxu0 0.0
        %3037 = vmatpush1.msra.mxu0 0.0
        %3038 = vmatprep.subr.mxu0 0.0
        %3039 = vmatpush1.msra.mxu0 0.0
        %3040 = vmatprep.subr.mxu0 0.0
        %3041 = vmatpush1.msra.mxu0 0.0
        %3042 = vmatprep.mubr.f32.mxu0 0.0
        %3043 = vmatmul.mubr.f32.gmra.mrb[0].mxu0 %v2976
        %v3044 = vpop.f32.mrb[0].mxu0
        %v3045 = vadd.f32 0.0, %v3044
        %v3046 = vpop.f32.mrb[0].mxu0
        %v3047 = vadd.f32 0.0, %v3046
        %3048 = vdwg.mxu0
        %v3049 = vld [vmem:[%s1212] sm:$0xff]
        %v3050 = vld [vmem:[%s1212 + $0x8] sm:$0xff]
        %v3051 = vld [vmem:[%s1212 + $0x10] sm:$0xff]
        %v3052 = vld [vmem:[%s1212 + $0x18] sm:$0xff]
        %v3053 = vld [vmem:[%s1212 + $0x20] sm:$0xff]
        %v3054 = vld [vmem:[%s1212 + $0x28] sm:$0xff]
        %v3055 = vld [vmem:[%s1212 + $0x30] sm:$0xff]
        %v3056 = vld [vmem:[%s1212 + $0x38] sm:$0xff]
        %v3057 = vld [vmem:[%s1212 + $0x40] sm:$0xff]
        %v3058 = vld [vmem:[%s1212 + $0x48] sm:$0xff]
        %v3059 = vld [vmem:[%s1212 + $0x50] sm:$0xff]
        %v3060 = vld [vmem:[%s1212 + $0x58] sm:$0xff]
        %v3061 = vld [vmem:[%s1212 + $0x60] sm:$0xff]
        %v3062 = vld [vmem:[%s1212 + $0x68] sm:$0xff]
        %v3063 = vld [vmem:[%s1212 + $0x70] sm:$0xf]
        %v3065 = vsel %vm1445, %v3063, 0
        %3067 = vmatprep.subr.mxu0 0.0
        %3068 = vmatpush1.msra.mxu0 %v3049
        %3069 = vmatprep.subr.mxu0 0.0
        %3070 = vmatpush1.msra.mxu0 %v3050
        %3071 = vmatprep.subr.mxu0 0.0
        %3072 = vmatpush1.msra.mxu0 %v3051
        %3073 = vmatprep.subr.mxu0 0.0
        %3074 = vmatpush1.msra.mxu0 %v3052
        %3075 = vmatprep.subr.mxu0 0.0
        %3076 = vmatpush1.msra.mxu0 %v3053
        %3077 = vmatprep.subr.mxu0 0.0
        %3078 = vmatpush1.msra.mxu0 %v3054
        %3079 = vmatprep.subr.mxu0 0.0
        %3080 = vmatpush1.msra.mxu0 %v3055
        %3081 = vmatprep.subr.mxu0 0.0
        %3082 = vmatpush1.msra.mxu0 %v3056
        %3083 = vmatprep.subr.mxu0 0.0
        %3084 = vmatpush1.msra.mxu0 %v3057
        %3085 = vmatprep.subr.mxu0 0.0
        %3086 = vmatpush1.msra.mxu0 %v3058
        %3087 = vmatprep.subr.mxu0 0.0
        %3088 = vmatpush1.msra.mxu0 %v3059
        %3089 = vmatprep.subr.mxu0 0.0
        %3090 = vmatpush1.msra.mxu0 %v3060
        %3091 = vmatprep.subr.mxu0 0.0
        %3092 = vmatpush1.msra.mxu0 %v3061
        %3093 = vmatprep.subr.mxu0 0.0
        %3094 = vmatpush1.msra.mxu0 %v3062
        %3095 = vmatprep.subr.mxu0 0.0
        %3096 = vmatpush1.msra.mxu0 %v3065
        %3097 = vmatprep.subr.mxu0 0.0
        %3098 = vmatpush1.msra.mxu0 0.0
        %3099 = vmatprep.subr.mxu0 0.0
        %3100 = vmatpush1.msra.mxu0 0.0
        %3101 = vmatprep.subr.mxu0 0.0
        %3102 = vmatpush1.msra.mxu0 0.0
        %3103 = vmatprep.subr.mxu0 0.0
        %3104 = vmatpush1.msra.mxu0 0.0
        %3105 = vmatprep.subr.mxu0 0.0
        %3106 = vmatpush1.msra.mxu0 0.0
        %3107 = vmatprep.subr.mxu0 0.0
        %3108 = vmatpush1.msra.mxu0 0.0
        %3109 = vmatprep.subr.mxu0 0.0
        %3110 = vmatpush1.msra.mxu0 0.0
        %3111 = vmatprep.subr.mxu0 0.0
        %3112 = vmatpush1.msra.mxu0 0.0
        %3113 = vmatprep.subr.mxu0 0.0
        %3114 = vmatpush1.msra.mxu0 0.0
        %3115 = vmatprep.subr.mxu0 0.0
        %3116 = vmatpush1.msra.mxu0 0.0
        %3117 = vmatprep.subr.mxu0 0.0
        %3118 = vmatpush1.msra.mxu0 0.0
        %3119 = vmatprep.subr.mxu0 0.0
        %3120 = vmatpush1.msra.mxu0 0.0
        %3121 = vmatprep.subr.mxu0 0.0
        %3122 = vmatpush1.msra.mxu0 0.0
        %3123 = vmatprep.subr.mxu0 0.0
        %3124 = vmatpush1.msra.mxu0 0.0
        %3125 = vmatprep.subr.mxu0 0.0
        %3126 = vmatpush1.msra.mxu0 0.0
        %3127 = vmatprep.subr.mxu0 0.0
        %3128 = vmatpush1.msra.mxu0 0.0
        %3129 = vmatprep.subr.mxu0 0.0
        %3130 = vmatpush1.msra.mxu0 0.0
        %3131 = vmatprep.mubr.f32.mxu0 0.0
        %3132 = vmatmul.mubr.f32.gmra.mrb[0].mxu0 %v2895
        %v3133 = vpop.f32.mrb[0].mxu0
        %v3134 = vadd.f32 %v3045, %v3133
        %v3135 = vpop.f32.mrb[0].mxu0
        %3136 = vdwg.mxu0
        %v3137 = vld [vmem:[%s1217] sm:$0xff]
        %v3138 = vld [vmem:[%s1217 + $0x8] sm:$0xff]
        %v3139 = vld [vmem:[%s1217 + $0x10] sm:$0xff]
        %v3140 = vld [vmem:[%s1217 + $0x18] sm:$0xff]
        %v3141 = vld [vmem:[%s1217 + $0x20] sm:$0xff]
        %v3142 = vld [vmem:[%s1217 + $0x28] sm:$0xff]
        %v3143 = vld [vmem:[%s1217 + $0x30] sm:$0xff]
        %v3144 = vld [vmem:[%s1217 + $0x38] sm:$0xff]
        %v3145 = vld [vmem:[%s1217 + $0x40] sm:$0xff]
        %v3146 = vld [vmem:[%s1217 + $0x48] sm:$0xff]
        %v3147 = vld [vmem:[%s1217 + $0x50] sm:$0xff]
        %v3148 = vld [vmem:[%s1217 + $0x58] sm:$0xff]
        %v3149 = vld [vmem:[%s1217 + $0x60] sm:$0xff]
        %v3150 = vld [vmem:[%s1217 + $0x68] sm:$0xff]
        %v3151 = vld [vmem:[%s1217 + $0x70] sm:$0xf]
        %v3153 = vsel %vm1445, %v3151, 0
        %3155 = vmatprep.subr.mxu0 0.0
        %3156 = vmatpush1.msra.mxu0 %v3137
        %3157 = vmatprep.subr.mxu0 0.0
        %3158 = vmatpush1.msra.mxu0 %v3138
        %3159 = vmatprep.subr.mxu0 0.0
        %3160 = vmatpush1.msra.mxu0 %v3139
        %3161 = vmatprep.subr.mxu0 0.0
        %3162 = vmatpush1.msra.mxu0 %v3140
        %3163 = vmatprep.subr.mxu0 0.0
        %3164 = vmatpush1.msra.mxu0 %v3141
        %3165 = vmatprep.subr.mxu0 0.0
        %3166 = vmatpush1.msra.mxu0 %v3142
        %3167 = vmatprep.subr.mxu0 0.0
        %3168 = vmatpush1.msra.mxu0 %v3143
        %3169 = vmatprep.subr.mxu0 0.0
        %3170 = vmatpush1.msra.mxu0 %v3144
        %3171 = vmatprep.subr.mxu0 0.0
        %3172 = vmatpush1.msra.mxu0 %v3145
        %3173 = vmatprep.subr.mxu0 0.0
        %3174 = vmatpush1.msra.mxu0 %v3146
        %3175 = vmatprep.subr.mxu0 0.0
        %3176 = vmatpush1.msra.mxu0 %v3147
        %3177 = vmatprep.subr.mxu0 0.0
        %3178 = vmatpush1.msra.mxu0 %v3148
        %3179 = vmatprep.subr.mxu0 0.0
        %3180 = vmatpush1.msra.mxu0 %v3149
        %3181 = vmatprep.subr.mxu0 0.0
        %3182 = vmatpush1.msra.mxu0 %v3150
        %3183 = vmatprep.subr.mxu0 0.0
        %3184 = vmatpush1.msra.mxu0 %v3153
        %3185 = vmatprep.subr.mxu0 0.0
        %3186 = vmatpush1.msra.mxu0 0.0
        %3187 = vmatprep.subr.mxu0 0.0
        %3188 = vmatpush1.msra.mxu0 0.0
        %3189 = vmatprep.subr.mxu0 0.0
        %3190 = vmatpush1.msra.mxu0 0.0
        %3191 = vmatprep.subr.mxu0 0.0
        %3192 = vmatpush1.msra.mxu0 0.0
        %3193 = vmatprep.subr.mxu0 0.0
        %3194 = vmatpush1.msra.mxu0 0.0
        %3195 = vmatprep.subr.mxu0 0.0
        %3196 = vmatpush1.msra.mxu0 0.0
        %3197 = vmatprep.subr.mxu0 0.0
        %3198 = vmatpush1.msra.mxu0 0.0
        %3199 = vmatprep.subr.mxu0 0.0
        %3200 = vmatpush1.msra.mxu0 0.0
        %3201 = vmatprep.subr.mxu0 0.0
        %3202 = vmatpush1.msra.mxu0 0.0
        %3203 = vmatprep.subr.mxu0 0.0
        %3204 = vmatpush1.msra.mxu0 0.0
        %3205 = vmatprep.subr.mxu0 0.0
        %3206 = vmatpush1.msra.mxu0 0.0
        %3207 = vmatprep.subr.mxu0 0.0
        %3208 = vmatpush1.msra.mxu0 0.0
        %3209 = vmatprep.subr.mxu0 0.0
        %3210 = vmatpush1.msra.mxu0 0.0
        %3211 = vmatprep.subr.mxu0 0.0
        %3212 = vmatpush1.msra.mxu0 0.0
        %3213 = vmatprep.subr.mxu0 0.0
        %3214 = vmatpush1.msra.mxu0 0.0
        %3215 = vmatprep.subr.mxu0 0.0
        %3216 = vmatpush1.msra.mxu0 0.0
        %3217 = vmatprep.subr.mxu0 0.0
        %3218 = vmatpush1.msra.mxu0 0.0
        %3219 = vmatprep.mubr.f32.mxu0 0.0
        %3220 = vmatmul.mubr.f32.gmra.mrb[0].mxu0 %v2819
        %v3221 = vpop.f32.mrb[0].mxu0
        %v3222 = vadd.f32 %v3047, %v3221
        %v3223 = vpop.f32.mrb[0].mxu0
        %3224 = vdwg.mxu0
        %v3225 = vld [vmem:[%s25] sm:$0xff]
        %v3226 = vmul.f32 %v3134, %v2681
        %3228 = vset.pattern.permute.xlu0 0
        %3229 = vperm.xlu0 %3228, %v3225
        %v3230 = vpop.permute.xlu0 %3229
        %v3232 = vadd.f32 %v3226, %v3230
        %v3233 = vmax.f32 %v3232, 0.0
        %v3234 = vmul.f32 %v3222, %v2756
        %v3235 = vadd.f32 %v3234, %v3230
        %v3236 = vmax.f32 %v3235, 0.0
        %v3237 = vld [vmem:[%s57] sm:$0xff]
        %v3238 = vld [vmem:[%s57 + $0x8] sm:$0xff]
        %v3239 = vld [vmem:[%s57 + $0x10] sm:$0xff]
        %v3240 = vld [vmem:[%s57 + $0x18] sm:$0xff]
        %v3241 = vld [vmem:[%s57 + $0x20] sm:$0xff]
        %v3242 = vld [vmem:[%s57 + $0x28] sm:$0xff]
        %v3243 = vld [vmem:[%s57 + $0x30] sm:$0xff]
        %v3244 = vld [vmem:[%s57 + $0x38] sm:$0xff]
        %v3245 = vld [vmem:[%s57 + $0x40] sm:$0xff]
        %v3246 = vld [vmem:[%s57 + $0x48] sm:$0xff]
        %v3247 = vld [vmem:[%s57 + $0x50] sm:$0xff]
        %v3248 = vld [vmem:[%s57 + $0x58] sm:$0xff]
        %v3249 = vld [vmem:[%s57 + $0x60] sm:$0xff]
        %v3250 = vld [vmem:[%s57 + $0x68] sm:$0xff]
        %v3251 = vld [vmem:[%s57 + $0x70] sm:$0xff]
        %v3252 = vld [vmem:[%s57 + $0x78] sm:$0xff]
        %v3253 = vld [vmem:[%s57 + $0x80] sm:$0xff]
        %v3254 = vld [vmem:[%s57 + $0x88] sm:$0xff]
        %v3255 = vld [vmem:[%s57 + $0x90] sm:$0xff]
        %v3256 = vld [vmem:[%s57 + $0x98] sm:$0xff]
        %v3257 = vld [vmem:[%s57 + $0xa0] sm:$0xff]
        %v3258 = vld [vmem:[%s57 + $0xa8] sm:$0xff]
        %v3259 = vld [vmem:[%s57 + $0xb0] sm:$0xff]
        %v3260 = vld [vmem:[%s57 + $0xb8] sm:$0xff]
        %v3261 = vld [vmem:[%s57 + $0xc0] sm:$0xff]
        %v3262 = vld [vmem:[%s57 + $0xc8] sm:$0xff]
        %v3263 = vld [vmem:[%s57 + $0xd0] sm:$0xff]
        %v3264 = vld [vmem:[%s57 + $0xd8] sm:$0xff]
        %v3265 = vld [vmem:[%s57 + $0xe0] sm:$0xf]
        %v3266 = vld [vmem:[%s57 + $0xe8] sm:$0xf]
        %v3267 = vld [vmem:[%s59] sm:$0xff]
        %v3268 = vld [vmem:[%s59 + $0x8] sm:$0xff]
        %v3269 = vld [vmem:[%s59 + $0x10] sm:$0xff]
        %v3270 = vld [vmem:[%s59 + $0x18] sm:$0xff]
        %v3271 = vld [vmem:[%s59 + $0x20] sm:$0xff]
        %v3272 = vld [vmem:[%s59 + $0x28] sm:$0xff]
        %v3273 = vld [vmem:[%s59 + $0x30] sm:$0xff]
        %v3274 = vld [vmem:[%s59 + $0x38] sm:$0xff]
        %v3275 = vld [vmem:[%s59 + $0x40] sm:$0xff]
        %v3276 = vld [vmem:[%s59 + $0x48] sm:$0xff]
        %v3277 = vld [vmem:[%s59 + $0x50] sm:$0xff]
        %v3278 = vld [vmem:[%s59 + $0x58] sm:$0xff]
        %v3279 = vld [vmem:[%s59 + $0x60] sm:$0xff]
        %v3280 = vld [vmem:[%s59 + $0x68] sm:$0xff]
        %v3281 = vld [vmem:[%s59 + $0x70] sm:$0xff]
        %v3282 = vld [vmem:[%s59 + $0x78] sm:$0xff]
        %v3283 = vld [vmem:[%s59 + $0x80] sm:$0xff]
        %v3284 = vld [vmem:[%s59 + $0x88] sm:$0xff]
        %v3285 = vld [vmem:[%s59 + $0x90] sm:$0xff]
        %v3286 = vld [vmem:[%s59 + $0x98] sm:$0xff]
        %v3287 = vld [vmem:[%s59 + $0xa0] sm:$0xff]
        %v3288 = vld [vmem:[%s59 + $0xa8] sm:$0xff]
        %v3289 = vld [vmem:[%s59 + $0xb0] sm:$0xff]
        %v3290 = vld [vmem:[%s59 + $0xb8] sm:$0xff]
        %v3291 = vld [vmem:[%s59 + $0xc0] sm:$0xff]
        %v3292 = vld [vmem:[%s59 + $0xc8] sm:$0xff]
        %v3293 = vld [vmem:[%s59 + $0xd0] sm:$0xff]
        %v3294 = vld [vmem:[%s59 + $0xd8] sm:$0xff]
        %v3295 = vld [vmem:[%s59 + $0xe0] sm:$0xf]
        %v3296 = vld [vmem:[%s59 + $0xe8] sm:$0xf]
        %v3298 = vsel %vm1258, %v3236, 0
        %v3301 = vsel %vm1445, %v3295, 0
        %v3304 = vsel %vm1445, %v3296, 0
        %3306 = vmatprep.subr.mxu0 %v3268
        %3307 = vmatpush1.msra.mxu0 %v3267
        %3308 = vmatprep.subr.mxu0 %v3270
        %3309 = vmatpush1.msra.mxu0 %v3269
        %3310 = vmatprep.subr.mxu0 %v3272
        %3311 = vmatpush1.msra.mxu0 %v3271
        %3312 = vmatprep.subr.mxu0 %v3274
        %3313 = vmatpush1.msra.mxu0 %v3273
        %3314 = vmatprep.subr.mxu0 %v3276
        %3315 = vmatpush1.msra.mxu0 %v3275
        %3316 = vmatprep.subr.mxu0 %v3278
        %3317 = vmatpush1.msra.mxu0 %v3277
        %3318 = vmatprep.subr.mxu0 %v3280
        %3319 = vmatpush1.msra.mxu0 %v3279
        %3320 = vmatprep.subr.mxu0 %v3282
        %3321 = vmatpush1.msra.mxu0 %v3281
        %3322 = vmatprep.subr.mxu0 %v3284
        %3323 = vmatpush1.msra.mxu0 %v3283
        %3324 = vmatprep.subr.mxu0 %v3286
        %3325 = vmatpush1.msra.mxu0 %v3285
        %3326 = vmatprep.subr.mxu0 %v3288
        %3327 = vmatpush1.msra.mxu0 %v3287
        %3328 = vmatprep.subr.mxu0 %v3290
        %3329 = vmatpush1.msra.mxu0 %v3289
        %3330 = vmatprep.subr.mxu0 %v3292
        %3331 = vmatpush1.msra.mxu0 %v3291
        %3332 = vmatprep.subr.mxu0 %v3294
        %3333 = vmatpush1.msra.mxu0 %v3293
        %3334 = vmatprep.subr.mxu0 %v3304
        %3335 = vmatpush1.msra.mxu0 %v3301
        %3336 = vmatprep.subr.mxu0 0.0
        %3337 = vmatpush1.msra.mxu0 0.0
        %3338 = vmatprep.subr.mxu0 0.0
        %3339 = vmatpush1.msra.mxu0 0.0
        %3340 = vmatprep.subr.mxu0 0.0
        %3341 = vmatpush1.msra.mxu0 0.0
        %3342 = vmatprep.subr.mxu0 0.0
        %3343 = vmatpush1.msra.mxu0 0.0
        %3344 = vmatprep.subr.mxu0 0.0
        %3345 = vmatpush1.msra.mxu0 0.0
        %3346 = vmatprep.subr.mxu0 0.0
        %3347 = vmatpush1.msra.mxu0 0.0
        %3348 = vmatprep.subr.mxu0 0.0
        %3349 = vmatpush1.msra.mxu0 0.0
        %3350 = vmatprep.subr.mxu0 0.0
        %3351 = vmatpush1.msra.mxu0 0.0
        %3352 = vmatprep.subr.mxu0 0.0
        %3353 = vmatpush1.msra.mxu0 0.0
        %3354 = vmatprep.subr.mxu0 0.0
        %3355 = vmatpush1.msra.mxu0 0.0
        %3356 = vmatprep.subr.mxu0 0.0
        %3357 = vmatpush1.msra.mxu0 0.0
        %3358 = vmatprep.subr.mxu0 0.0
        %3359 = vmatpush1.msra.mxu0 0.0
        %3360 = vmatprep.subr.mxu0 0.0
        %3361 = vmatpush1.msra.mxu0 0.0
        %3362 = vmatprep.subr.mxu0 0.0
        %3363 = vmatpush1.msra.mxu0 0.0
        %3364 = vmatprep.subr.mxu0 0.0
        %3365 = vmatpush1.msra.mxu0 0.0
        %3366 = vmatprep.subr.mxu0 0.0
        %3367 = vmatpush1.msra.mxu0 0.0
        %3368 = vmatprep.subr.mxu0 0.0
        %3369 = vmatpush1.msra.mxu0 0.0
        %3370 = vmatprep.mubr.f32.mxu0 0.0
        %3371 = vmatmul.mubr.f32.gmra.mrb[0].mxu0 %v3298
        %v3372 = vpop.f32.mrb[0].mxu0
        %v3373 = vadd.f32 0.0, %v3372
        %v3374 = vpop.f32.mrb[0].mxu0
        %v3375 = vadd.f32 0.0, %v3374
        %3376 = vdwg.mxu0
        %v3378 = vsel %vm1258, %v3233, 0
        %v3381 = vsel %vm1445, %v3265, 0
        %v3384 = vsel %vm1445, %v3266, 0
        %3386 = vmatprep.subr.mxu0 %v3238
        %3387 = vmatpush1.msra.mxu0 %v3237
        %3388 = vmatprep.subr.mxu0 %v3240
        %3389 = vmatpush1.msra.mxu0 %v3239
        %3390 = vmatprep.subr.mxu0 %v3242
        %3391 = vmatpush1.msra.mxu0 %v3241
        %3392 = vmatprep.subr.mxu0 %v3244
        %3393 = vmatpush1.msra.mxu0 %v3243
        %3394 = vmatprep.subr.mxu0 %v3246
        %3395 = vmatpush1.msra.mxu0 %v3245
        %3396 = vmatprep.subr.mxu0 %v3248
        %3397 = vmatpush1.msra.mxu0 %v3247
        %3398 = vmatprep.subr.mxu0 %v3250
        %3399 = vmatpush1.msra.mxu0 %v3249
        %3400 = vmatprep.subr.mxu0 %v3252
        %3401 = vmatpush1.msra.mxu0 %v3251
        %3402 = vmatprep.subr.mxu0 %v3254
        %3403 = vmatpush1.msra.mxu0 %v3253
        %3404 = vmatprep.subr.mxu0 %v3256
        %3405 = vmatpush1.msra.mxu0 %v3255
        %3406 = vmatprep.subr.mxu0 %v3258
        %3407 = vmatpush1.msra.mxu0 %v3257
        %3408 = vmatprep.subr.mxu0 %v3260
        %3409 = vmatpush1.msra.mxu0 %v3259
        %3410 = vmatprep.subr.mxu0 %v3262
        %3411 = vmatpush1.msra.mxu0 %v3261
        %3412 = vmatprep.subr.mxu0 %v3264
        %3413 = vmatpush1.msra.mxu0 %v3263
        %3414 = vmatprep.subr.mxu0 %v3384
        %3415 = vmatpush1.msra.mxu0 %v3381
        %3416 = vmatprep.subr.mxu0 0.0
        %3417 = vmatpush1.msra.mxu0 0.0
        %3418 = vmatprep.subr.mxu0 0.0
        %3419 = vmatpush1.msra.mxu0 0.0
        %3420 = vmatprep.subr.mxu0 0.0
        %3421 = vmatpush1.msra.mxu0 0.0
        %3422 = vmatprep.subr.mxu0 0.0
        %3423 = vmatpush1.msra.mxu0 0.0
        %3424 = vmatprep.subr.mxu0 0.0
        %3425 = vmatpush1.msra.mxu0 0.0
        %3426 = vmatprep.subr.mxu0 0.0
        %3427 = vmatpush1.msra.mxu0 0.0
        %3428 = vmatprep.subr.mxu0 0.0
        %3429 = vmatpush1.msra.mxu0 0.0
        %3430 = vmatprep.subr.mxu0 0.0
        %3431 = vmatpush1.msra.mxu0 0.0
        %3432 = vmatprep.subr.mxu0 0.0
        %3433 = vmatpush1.msra.mxu0 0.0
        %3434 = vmatprep.subr.mxu0 0.0
        %3435 = vmatpush1.msra.mxu0 0.0
        %3436 = vmatprep.subr.mxu0 0.0
        %3437 = vmatpush1.msra.mxu0 0.0
        %3438 = vmatprep.subr.mxu0 0.0
        %3439 = vmatpush1.msra.mxu0 0.0
        %3440 = vmatprep.subr.mxu0 0.0
        %3441 = vmatpush1.msra.mxu0 0.0
        %3442 = vmatprep.subr.mxu0 0.0
        %3443 = vmatpush1.msra.mxu0 0.0
        %3444 = vmatprep.subr.mxu0 0.0
        %3445 = vmatpush1.msra.mxu0 0.0
        %3446 = vmatprep.subr.mxu0 0.0
        %3447 = vmatpush1.msra.mxu0 0.0
        %3448 = vmatprep.subr.mxu0 0.0
        %3449 = vmatpush1.msra.mxu0 0.0
        %3450 = vmatprep.mubr.f32.mxu0 0.0
        %3451 = vmatmul.mubr.f32.gmra.mrb[0].mxu0 %v3378
        %v3452 = vpop.f32.mrb[0].mxu0
        %v3453 = vadd.f32 %v3373, %v3452
        %v3454 = vpop.f32.mrb[0].mxu0
        %v3455 = vadd.f32 %v3375, %v3454
        %3456 = vdwg.mxu0
        %v3457 = vld [vmem:[%s61] sm:$0x1]
        %v3458 = vadd.f32 %v3457, %v3453
        %v3461 = vunpack.c.l.s4 1966171168
        %v3462 = vunpack.c.0.s8 %v3461
        %v3463 = vlaneseq
        %v3464 = vshrl.u32 %v3463, 7
        %v3465 = vsub.s32 %v3462, %v3464
        %v3466 = vrot.slane %v3453, %v3465
        %v3467 = vcombine.high %v3466, %v3466
        %v3469 = vunpack.c.l.s4 1966171168
        %v3470 = vunpack.c.0.s8 %v3469
        %v3471 = vlaneseq
        %v3472 = vshrl.u32 %v3471, 7
        %v3473 = vsub.s32 %v3470, %v3472
        %v3474 = vrot.slane %v3466, %v3473
        %v3476 = vunpack.c.l.s4 1966171168
        %v3477 = vunpack.c.0.s8 %v3476
        %v3478 = vlaneseq
        %v3479 = vshrl.u32 %v3478, 7
        %v3480 = vsub.s32 %v3477, %v3479
        %v3481 = vrot.slane %v3467, %v3480
        %3482 = vrot.lane.b32.xlu0 %v3481, 96
        %v3483 = vpop.permute.xlu0 %3482
        %v3485 = vadd.f32 %v3458, %v3483
        %v3486 = vcombine.high %v3474, %v3474
        %3487 = vrot.lane.b32.xlu0 %v3486, 64
        %v3488 = vpop.permute.xlu0 %3487
        %v3490 = vadd.f32 %v3485, %v3488
        %v3491 = vcombine.high %v3481, %v3481
        %3492 = vrot.lane.b32.xlu0 %v3491, 32
        %v3493 = vpop.permute.xlu0 %3492
        %v3495 = vadd.f32 %v3490, %v3493
        %v3497 = vcombine.high %v3455, %v3455
        %v3499 = vunpack.c.l.s4 1966171168
        %v3500 = vunpack.c.0.s8 %v3499
        %v3501 = vlaneseq
        %v3502 = vshrl.u32 %v3501, 7
        %v3503 = vsub.s32 %v3500, %v3502
        %v3504 = vrot.slane %v3497, %v3503
        %v3506 = vunpack.c.l.s4 1966171168
        %v3507 = vunpack.c.0.s8 %v3506
        %v3508 = vlaneseq
        %v3509 = vshrl.u32 %v3508, 7
        %v3510 = vsub.s32 %v3507, %v3509
        %v3511 = vrot.slane %v3504, %v3510
        %v3513 = vadd.f32 %v3495, %v3511
        %v3514 = vcombine.high %v3504, %v3504
        %v3516 = vunpack.c.l.s4 1966171168
        %v3517 = vunpack.c.0.s8 %v3516
        %v3518 = vlaneseq
        %v3519 = vshrl.u32 %v3518, 7
        %v3520 = vsub.s32 %v3517, %v3519
        %v3521 = vrot.slane %v3514, %v3520
        %3522 = vrot.lane.b32.xlu0 %v3521, 96
        %v3523 = vpop.permute.xlu0 %3522
        %v3525 = vadd.f32 %v3513, %v3523
        %v3526 = vcombine.high %v3511, %v3511
        %3527 = vrot.lane.b32.xlu0 %v3526, 64
        %v3528 = vpop.permute.xlu0 %3527
        %v3530 = vadd.f32 %v3525, %v3528
        %v3531 = vcombine.high %v3521, %v3521
        %3532 = vrot.lane.b32.xlu0 %v3531, 32
        %v3533 = vpop.permute.xlu0 %3532
        %v3535 = vadd.f32 %v3530, %v3533
        %v3536 = vmax.f32 %v3535, 0.0
        %v3537 = vld [vmem:[%s63] sm:$0xff]
        %v3538 = vld [vmem:[%s63 + $0x8] sm:$0xff]
        %v3539 = vld [vmem:[%s63 + $0x10] sm:$0xff]
        %v3540 = vld [vmem:[%s63 + $0x18] sm:$0xff]
        %v3541 = vld [vmem:[%s65] sm:$0x1]
        %v3543 = vsel %vm1901, %v3536, 0
        %3545 = vmatprep.subr.mxu0 0.0
        %3546 = vmatpush1.msra.mxu0 %v3537
        %3547 = vmatprep.subr.mxu0 0.0
        %3548 = vmatpush1.msra.mxu0 %v3538
        %3549 = vmatprep.subr.mxu0 0.0
        %3550 = vmatpush1.msra.mxu0 %v3539
        %3551 = vmatprep.subr.mxu0 0.0
        %3552 = vmatpush1.msra.mxu0 %v3540
        %3553 = vmatprep.subr.mxu0 0.0
        %3554 = vmatpush1.msra.mxu0 0.0
        %3555 = vmatprep.subr.mxu0 0.0
        %3556 = vmatpush1.msra.mxu0 0.0
        %3557 = vmatprep.subr.mxu0 0.0
        %3558 = vmatpush1.msra.mxu0 0.0
        %3559 = vmatprep.subr.mxu0 0.0
        %3560 = vmatpush1.msra.mxu0 0.0
        %3561 = vmatprep.subr.mxu0 0.0
        %3562 = vmatpush1.msra.mxu0 0.0
        %3563 = vmatprep.subr.mxu0 0.0
        %3564 = vmatpush1.msra.mxu0 0.0
        %3565 = vmatprep.subr.mxu0 0.0
        %3566 = vmatpush1.msra.mxu0 0.0
        %3567 = vmatprep.subr.mxu0 0.0
        %3568 = vmatpush1.msra.mxu0 0.0
        %3569 = vmatprep.subr.mxu0 0.0
        %3570 = vmatpush1.msra.mxu0 0.0
        %3571 = vmatprep.subr.mxu0 0.0
        %3572 = vmatpush1.msra.mxu0 0.0
        %3573 = vmatprep.subr.mxu0 0.0
        %3574 = vmatpush1.msra.mxu0 0.0
        %3575 = vmatprep.subr.mxu0 0.0
        %3576 = vmatpush1.msra.mxu0 0.0
        %3577 = vmatprep.subr.mxu0 0.0
        %3578 = vmatpush1.msra.mxu0 0.0
        %3579 = vmatprep.subr.mxu0 0.0
        %3580 = vmatpush1.msra.mxu0 0.0
        %3581 = vmatprep.subr.mxu0 0.0
        %3582 = vmatpush1.msra.mxu0 0.0
        %3583 = vmatprep.subr.mxu0 0.0
        %3584 = vmatpush1.msra.mxu0 0.0
        %3585 = vmatprep.subr.mxu0 0.0
        %3586 = vmatpush1.msra.mxu0 0.0
        %3587 = vmatprep.subr.mxu0 0.0
        %3588 = vmatpush1.msra.mxu0 0.0
        %3589 = vmatprep.subr.mxu0 0.0
        %3590 = vmatpush1.msra.mxu0 0.0
        %3591 = vmatprep.subr.mxu0 0.0
        %3592 = vmatpush1.msra.mxu0 0.0
        %3593 = vmatprep.subr.mxu0 0.0
        %3594 = vmatpush1.msra.mxu0 0.0
        %3595 = vmatprep.subr.mxu0 0.0
        %3596 = vmatpush1.msra.mxu0 0.0
        %3597 = vmatprep.subr.mxu0 0.0
        %3598 = vmatpush1.msra.mxu0 0.0
        %3599 = vmatprep.subr.mxu0 0.0
        %3600 = vmatpush1.msra.mxu0 0.0
        %3601 = vmatprep.subr.mxu0 0.0
        %3602 = vmatpush1.msra.mxu0 0.0
        %3603 = vmatprep.subr.mxu0 0.0
        %3604 = vmatpush1.msra.mxu0 0.0
        %3605 = vmatprep.subr.mxu0 0.0
        %3606 = vmatpush1.msra.mxu0 0.0
        %3607 = vmatprep.subr.mxu0 0.0
        %3608 = vmatpush1.msra.mxu0 0.0
        %3609 = vmatprep.mubr.f32.mxu0 0.0
        %3610 = vmatmul.mubr.f32.gmra.mrb[0].mxu0 %v3543
        %v3611 = vpop.f32.mrb[0].mxu0
        %v3612 = vadd.f32 %v3541, %v3611
        %v3613 = vpop.f32.mrb[0].mxu0
        %3614 = vdwg.mxu0
        %v3615 = vsel %vm1975, %v3612, -inf
        %3616 = vmax.xlane.f32.xlu0 %v3615
        %v3617 = vpop.xlane.xlu0 %3616
        %v3618 = vsub.f32 %v3612, %v3617
        %v3619 = vmul.f32 %v3618, 1.442695
        %v3620 = vpow.pop %v3619
        %v3621 = vsel %vm1975, %v3620, 0.0
        %3622 = vadd.xlane.f32.xlu0 %v3621
        %v3623 = vpop.xlane.xlu0 %3622
        %v3624 = vrcp.pop %v3623
        %v3625 = vmul.f32 %v3620, %v3624
        %3626 = vst.msk [vmem:[%s1189] sm:$0x1] %vm1975, %v3625
        %s3627 = sand.u32 %s832, 1
        %s3628 = scalar_lea.sflag [#allocation4], %s3627
        %s3629 = sand.u32 %s832, 1
        %s3630 = scalar_lea.vmem [#allocation3], %s3629
        %s3631 = sand.u32 %s96, 1
        %s3632 = scalar_lea.sflag [#allocation6], %s3631
        %s3633 = sand.u32 %s858, 1
        %s3634 = scalar_lea.vmem [#allocation5], %s3633
        %s3635 = sand.u32 %s96, 1
        %s3636 = scalar_lea.sflag [#allocation6], %s3635
        %s3637 = sand.u32 %s884, 1
        %s3638 = scalar_lea.vmem [#allocation7], %s3637
        %s3639 = sand.u32 %s910, 1
        %s3640 = scalar_lea.sflag [#allocation9], %s3639
        %s3641 = sand.u32 %s910, 1
        %s3642 = scalar_lea.vmem [#allocation8], %s3641
        // Predicated region
        $region153: #{_gvae_forward_impl.1} parent=151 // pred_check
          %p3643 = pneg %p842
        $region154: #{_gvae_forward_impl.1} parent=151 // pred_check_branch
          %3645 = sbr.rel (%p3643) target = $region156
        $region155: #{_gvae_forward_impl.1} parent=151 // pred_region
          %s3647 = ssub.s32 16, 16
          %3648 = vsyncadd %s3628, %s3647
          %s3649 = smul.addr %s96, 16
          %s3650 = scalar_lea.hbm %s67, %s3649
          %s3652 = sshll.u32 %s3630, 4
          %s3653 = int_to_ptr.vmem [resolvable:$true] %s3652
          %3655 = dma.vmem_to_hbm [thread:$0]  %s3653, 16, %s3650, %s3628
        $region156: #{_gvae_forward_impl.1} parent=151 // pred_fallthru
          _
        // Predicated region
        $region157: #{_gvae_forward_impl.1} parent=151 // pred_check
          %p3656 = pneg %p868
        $region158: #{_gvae_forward_impl.1} parent=151 // pred_check_branch
          %3658 = sbr.rel (%p3656) target = $region160
        $region159: #{_gvae_forward_impl.1} parent=151 // pred_region
          %s3660 = ssub.s32 16, 16
          %3661 = vsyncadd %s3632, %s3660
          %s3662 = smul.addr %s96, 16
          %s3663 = scalar_lea.hbm %s69, %s3662
          %s3665 = sshll.u32 %s3634, 4
          %s3666 = int_to_ptr.vmem [resolvable:$true] %s3665
          %3668 = dma.vmem_to_hbm [thread:$0]  %s3666, 16, %s3663, %s3632
        $region160: #{_gvae_forward_impl.1} parent=151 // pred_fallthru
          _
        // Predicated region
        $region161: #{_gvae_forward_impl.1} parent=151 // pred_check
          %p3669 = pneg %p894
        $region162: #{_gvae_forward_impl.1} parent=151 // pred_check_branch
          %3671 = sbr.rel (%p3669) target = $region164
        $region163: #{_gvae_forward_impl.1} parent=151 // pred_region
          %s3673 = ssub.s32 16, 16
          %3674 = vsyncadd %s3636, %s3673
          %s3675 = smul.addr %s96, 16
          %s3676 = scalar_lea.hbm %s71, %s3675
          %s3678 = sshll.u32 %s3638, 4
          %s3679 = int_to_ptr.vmem [resolvable:$true] %s3678
          %3681 = dma.vmem_to_hbm [thread:$0]  %s3679, 16, %s3676, %s3636
        $region164: #{_gvae_forward_impl.1} parent=151 // pred_fallthru
          _
        // Predicated region
        $region165: #{_gvae_forward_impl.1} parent=151 // pred_check
          %p3682 = pneg %p920
        $region166: #{_gvae_forward_impl.1} parent=151 // pred_check_branch
          %3684 = sbr.rel (%p3682) target = $region168
        $region167: #{_gvae_forward_impl.1} parent=151 // pred_region
          %s3686 = ssub.s32 16, 16
          %3687 = vsyncadd %s3640, %s3686
          %s3688 = smul.addr %s96, 16
          %s3689 = scalar_lea.hbm %s73, %s3688
          %s3691 = sshll.u32 %s3642, 4
          %s3692 = int_to_ptr.vmem [resolvable:$true] %s3691
          %3694 = dma.vmem_to_hbm [thread:$0]  %s3692, 16, %s3689, %s3640
        $region168: #{_gvae_forward_impl.1} parent=151 // pred_fallthru
          _
      $region152: #{_gvae_forward_impl.1} parent=5 // pred_fallthru
        _
      %p3695 = scmp.le.s32.totalorder 2, %s91
      // Predicated region
      $region169: #{_gvae_forward_impl.1} parent=5 // pred_check
        %p3696 = pneg %p3695
      $region170: #{_gvae_forward_impl.1} parent=5 // pred_check_branch
        %3698 = sbr.rel (%p3696) target = $region172
      $region171: #{_gvae_forward_impl.1} parent=5 // pred_region
        %s3699 = ssub.s32 %s91, 2
        // Predicated region
        $region173: #{_gvae_forward_impl.1} parent=171 // pred_check
          %p3700 = pneg %p848
        $region174: #{_gvae_forward_impl.1} parent=171 // pred_check_branch
          %3702 = sbr.rel (%p3700) target = $region176
        $region175: #{_gvae_forward_impl.1} parent=171 // pred_region
          %s3703 = sand.u32 %s833, 1
          %s3704 = scalar_lea.sflag [#allocation4], %s3703
          %s3705 = sand.u32 %s833, 1
          %s3706 = scalar_lea.vmem [#allocation3], %s3705
          %3707 = dma.done %s3704, 16
        $region176: #{_gvae_forward_impl.1} parent=171 // pred_fallthru
          _
        // Predicated region
        $region177: #{_gvae_forward_impl.1} parent=171 // pred_check
          %p3708 = pneg %p874
        $region178: #{_gvae_forward_impl.1} parent=171 // pred_check_branch
          %3710 = sbr.rel (%p3708) target = $region180
        $region179: #{_gvae_forward_impl.1} parent=171 // pred_region
          %s3711 = sand.u32 %s97, 1
          %s3712 = scalar_lea.sflag [#allocation6], %s3711
          %s3713 = sand.u32 %s859, 1
          %s3714 = scalar_lea.vmem [#allocation5], %s3713
          %3715 = dma.done %s3712, 16
        $region180: #{_gvae_forward_impl.1} parent=171 // pred_fallthru
          _
        // Predicated region
        $region181: #{_gvae_forward_impl.1} parent=171 // pred_check
          %p3716 = pneg %p900
        $region182: #{_gvae_forward_impl.1} parent=171 // pred_check_branch
          %3718 = sbr.rel (%p3716) target = $region184
        $region183: #{_gvae_forward_impl.1} parent=171 // pred_region
          %s3719 = sand.u32 %s97, 1
          %s3720 = scalar_lea.sflag [#allocation6], %s3719
          %s3721 = sand.u32 %s885, 1
          %s3722 = scalar_lea.vmem [#allocation7], %s3721
          %3723 = dma.done %s3720, 16
        $region184: #{_gvae_forward_impl.1} parent=171 // pred_fallthru
          _
        // Predicated region
        $region185: #{_gvae_forward_impl.1} parent=171 // pred_check
          %p3724 = pneg %p926
        $region186: #{_gvae_forward_impl.1} parent=171 // pred_check_branch
          %3726 = sbr.rel (%p3724) target = $region188
        $region187: #{_gvae_forward_impl.1} parent=171 // pred_region
          %s3727 = sand.u32 %s911, 1
          %s3728 = scalar_lea.sflag [#allocation9], %s3727
          %s3729 = sand.u32 %s911, 1
          %s3730 = scalar_lea.vmem [#allocation8], %s3729
          %3731 = dma.done %s3728, 16
        $region188: #{_gvae_forward_impl.1} parent=171 // pred_fallthru
          _
      $region172: #{_gvae_forward_impl.1} parent=5 // pred_fallthru
        _
    $region6: #{_gvae_forward_impl.1} parent=1 // loop_footer
      %s95 = sadd.s32 1, %s91
    $region7: #{_gvae_forward_impl.1} parent=1 // loop_footer_branch
      %90 = sbr.rel target = $region3
    $region8: #{_gvae_forward_impl.1} parent=1 // loop_exit
      _
    %3732 = vsyncpa [#allocation4], 1
    %s3733 = scalar_lea.sflag [#allocation4], 1
    %3734 = vsyncpa %s3733, 1
    %3735 = vsyncpa [#allocation6], 1
    %s3736 = scalar_lea.sflag [#allocation6], 1
    %3737 = vsyncpa %s3736, 1
    %3738 = vsyncpa [#allocation9], 1
    %s3739 = scalar_lea.sflag [#allocation9], 1
    %3740 = vsyncpa %s3739, 1

</llo_original>
